<compile_context>
chip_gen: v5e
topology: v5e:2x2
jax: 0.10.0
libtpu: 0.0.40
codegen_flags: <defaults>
</compile_context>

<pallas_src>
import functools
import math

import jax
import jax.numpy as jnp
from jax import lax
from jax.experimental import pallas as pl
from jax.experimental.pallas import tpu as pltpu

# Hyper-parameters from latent_guard.__init__
NUM_HEADS = 16
HEAD_DIM = 32
HIDDEN = NUM_HEADS * HEAD_DIM      # 512
OUT_DIM = 128
EMB_DIM = 768                      # CLIP ViT-L/14 text embedding dim
THRESHOLD = 9.0131

LANE = 128
NEG_INF = -1e30


def _round_up(x, m):
    return ((x + m - 1) // m) * m


def _latent_guard_kernel(concept_ref, k_ref, v_ref, maskb_ref,
                         wq_ref, bq_ref, wp_ref, wc_ref, bp_ref, bc_ref,
                         dot_ref,
                         acc_p_ref, acc_c_ref):
    """One (concept-block, head-group) grid step of the embedding mapping."""
    hg = pl.program_id(1)
    group = wq_ref.shape[-1] // HEAD_DIM          # heads handled per grid step

    # Initialize the per-block output-projection accumulators with the biases.
    @pl.when(hg == 0)
    def _init():
        acc_p_ref[...] = jnp.broadcast_to(bp_ref[...], acc_p_ref.shape)
        acc_c_ref[...] = jnp.broadcast_to(bc_ref[...], acc_c_ref.shape)

    concepts = concept_ref[...]                   # (TN, E)      bf16
    k_g = k_ref[hg]                               # (S_pad, GD)  bf16 (pre-scaled, +bias)
    v_g = v_ref[hg]                               # (S_pad, GD)  bf16 (+bias)
    mask = maskb_ref[...]                         # (1, S_pad)   f32

    # Q projection for the whole head group: one (TN,768)@(768,G*32) bf16 MXU matmul.
    q = jnp.dot(concepts, wq_ref[hg],
                preferred_element_type=jnp.float32) + bq_ref[hg]     # (TN, GD) f32
    q_bf = q.astype(jnp.bfloat16)

    # Per-head attention inside the group (short, unrolled at trace time).
    att_parts = []
    for g in range(group):
        lo, hi = g * HEAD_DIM, (g + 1) * HEAD_DIM
        # scores = q_h @ k_h^T, contracted over the head dim (no explicit .T).
        s = lax.dot_general(q_bf[:, lo:hi], k_g[:, lo:hi],
                            (((1,), (1,)), ((), ())),
                            preferred_element_type=jnp.float32)      # (TN, S_pad)
        s = s + mask                              # -1e30 bias on padded key tokens
        m = jnp.max(s, axis=-1, keepdims=True)
        p = jnp.exp(s - m)                        # un-normalized probabilities
        denom = jnp.sum(p, axis=-1, keepdims=True)
        att_h = jnp.dot(p.astype(jnp.bfloat16), v_g[:, lo:hi],
                        preferred_element_type=jnp.float32)          # (TN, D)
        # Deferred softmax normalization: EUP reciprocal + small multiply.
        att_parts.append(att_h * pl.reciprocal(denom, approx=True))
    att = jnp.concatenate(att_parts, axis=-1).astype(jnp.bfloat16)   # (TN, GD)

    # Output projections for the whole group: (TN,GD)@(GD,128) bf16 MXU matmuls.
    acc_p_ref[...] += jnp.dot(att, wp_ref[hg], preferred_element_type=jnp.float32)
    acc_c_ref[...] += jnp.dot(q_bf, wc_ref[hg], preferred_element_type=jnp.float32)

    # Last head group: contrastive dot product, written lane-major as (1, TN).
    @pl.when(hg == pl.num_programs(1) - 1)
    def _finalize():
        d = jnp.sum(acc_p_ref[...] * acc_c_ref[...], axis=-1, keepdims=True)  # (TN,1)
        dot_ref[...] = jnp.expand_dims(jnp.transpose(d, (1, 0)), 0)           # (1,1,TN)


def pack_params(params, head_group=8, weights_dtype=jnp.bfloat16):
    """Re-layout torch-style (in,out)/(1,out) params into head-grouped kernel operands.

    head_group = heads per grid step: 8 -> 256-wide MXU output (v6e/v7x),
    4 -> 128-wide (v5e).  Weights are cast to bfloat16 (native MXU operand
    dtype, halves HBM weight traffic); the k/v projections stay flat f32 since
    they are applied ONCE per prompt outside the kernel.
    """
    assert NUM_HEADS % head_group == 0
    hg_count = NUM_HEADS // head_group
    gd = head_group * HEAD_DIM
    scale = 1.0 / math.sqrt(HEAD_DIM)

    def group_in(w):       # (E, H*D) -> (HG, E, GD)
        return jnp.transpose(w.reshape(EMB_DIM, hg_count, gd), (1, 0, 2))

    def group_bias(b):     # (1, H*D) -> (HG, 1, GD)
        return jnp.transpose(b.reshape(1, hg_count, gd), (1, 0, 2))

    return dict(
        wq=group_in(params['wq']).astype(weights_dtype),
        bq=group_bias(params['bq']).astype(jnp.float32),
        # attention scale folded into the key projection (q also feeds wc).
        wk_s=(params['wk'] * scale).astype(jnp.float32),
        bk_s=(params['bk'] * scale).astype(jnp.float32),
        wv=params['wv'].astype(jnp.float32),
        bv=params['bv'].astype(jnp.float32),
        wp=params['wp'].reshape(hg_count, gd, OUT_DIM).astype(weights_dtype),
        wc=params['wc'].reshape(hg_count, gd, OUT_DIM).astype(weights_dtype),
        bp=params['bp'].astype(jnp.float32),
        bc=params['bc'].astype(jnp.float32),
    )


@functools.partial(jax.jit, static_argnames=("concept_block",))
def latent_guard_forward(prompt_emb, concept_embs, packed, *, concept_block=512):
    """Returns (pred_label, per_concept_dot[:N])."""
    S, E = prompt_emb.shape
    N = concept_embs.shape[0]
    assert E == EMB_DIM
    hg_count, _, gd = packed['wq'].shape

    # Lane-align the prompt length; padded keys are masked out of the softmax.
    S_pad = _round_up(max(S, LANE), LANE)
    prompt_p = jnp.pad(prompt_emb.astype(jnp.float32), ((0, S_pad - S), (0, 0)))
    mask_bias = jnp.where(jnp.arange(S_pad)[None, :] < S, 0.0, NEG_INF
                          ).astype(jnp.float32)

    # k/v depend only on the prompt + head: project once for all 16 heads here
    # (two tiny XLA matmuls, f32), then hand them to the kernel pinned in VMEM.
    k_all = prompt_p @ packed['wk_s'] + packed['bk_s']        # (S_pad, HIDDEN) f32
    v_all = prompt_p @ packed['wv'] + packed['bv']
    k_g = jnp.transpose(k_all.reshape(S_pad, hg_count, gd), (1, 0, 2)).astype(jnp.bfloat16)
    v_g = jnp.transpose(v_all.reshape(S_pad, hg_count, gd), (1, 0, 2)).astype(jnp.bfloat16)

    # Concept blocking: lane-dense (>=128) blocks; padded concepts sliced off below.
    # For v7x, pick concept_block <= round_up(N/2, 128) so both TensorCores get work.
    concept_block = max(LANE, (concept_block // LANE) * LANE)
    TN = min(_round_up(N, LANE), concept_block)
    N_pad = _round_up(N, TN)
    n_blocks = N_pad // TN
    concepts_p = jnp.pad(concept_embs, ((0, N_pad - N), (0, 0))).astype(jnp.bfloat16)

    def pinned(shape):      # whole array resident in VMEM across the entire grid
        nd = len(shape)
        return pl.BlockSpec(shape, lambda i, h, _nd=nd: (0,) * _nd)

    grid = (n_blocks, hg_count)

    in_specs = [
        pl.BlockSpec((TN, EMB_DIM), lambda i, h: (i, 0)),    # concept block (bf16)
        pinned((hg_count, S_pad, gd)),                       # keys   (pre-scaled, bf16)
        pinned((hg_count, S_pad, gd)),                       # values (bf16)
        pinned((1, S_pad)),                                  # key-padding mask bias
        pinned((hg_count, EMB_DIM, gd)),                     # wq (bf16)
        pinned((hg_count, 1, gd)),                           # bq
        pinned((hg_count, gd, OUT_DIM)),                     # wp (bf16)
        pinned((hg_count, gd, OUT_DIM)),                     # wc (bf16)
        pinned((1, OUT_DIM)),                                # bp
        pinned((1, OUT_DIM)),                                # bc
    ]
    out_spec = pl.BlockSpec((1, 1, TN), lambda i, h: (i, 0, 0))

    dots = pl.pallas_call(
        _latent_guard_kernel,
        out_shape=jax.ShapeDtypeStruct((n_blocks, 1, TN), jnp.float32),
        grid=grid,
        in_specs=in_specs,
        out_specs=out_spec,
        scratch_shapes=[pltpu.VMEM((TN, OUT_DIM), jnp.float32),   # acc_p
                        pltpu.VMEM((TN, OUT_DIM), jnp.float32)],  # acc_c
        compiler_params=pltpu.CompilerParams(
            dimension_semantics=("parallel", "arbitrary")),
    )(concepts_p, k_g, v_g, mask_bias,
      packed['wq'], packed['bq'], packed['wp'], packed['wc'],
      packed['bp'], packed['bc'])

    dots = dots.reshape(N_pad)[:N]                   # drop padded concepts
    pred_label = (jnp.max(dots) >= THRESHOLD).astype(jnp.int32)
    return pred_label, dots


def init_params(key):
    """Deterministic torch-nn.Linear-style init (uniform +/- 1/sqrt(fan_in))."""
    def linear(k, fan_in, fan_out):
        kw, kb = jax.random.split(k)
        bound = 1.0 / math.sqrt(fan_in)
        w = jax.random.uniform(kw, (fan_in, fan_out), jnp.float32, -bound, bound)
        b = jax.random.uniform(kb, (1, fan_out), jnp.float32, -bound, bound)
        return w, b

    ks = jax.random.split(key, 5)
    wq, bq = linear(ks[0], EMB_DIM, HIDDEN)
    wk, bk = linear(ks[1], EMB_DIM, HIDDEN)
    wv, bv = linear(ks[2], EMB_DIM, HIDDEN)
    wp, bp = linear(ks[3], HIDDEN, OUT_DIM)
    wc, bc = linear(ks[4], HIDDEN, OUT_DIM)
    return dict(wq=wq, bq=bq, wk=wk, bk=bk, wv=wv, bv=bv,
                wp=wp, bp=bp, wc=wc, bc=bc)


def _reference_original(prompt, concepts, params):
    """Pure-JAX mirror of the original all-f32 module math."""
    q = concepts @ params['wq'] + params['bq']
    k = prompt @ params['wk'] + params['bk']
    v = prompt @ params['wv'] + params['bv']
    N, S = q.shape[0], k.shape[0]
    qh = q.reshape(N, NUM_HEADS, HEAD_DIM)
    kh = k.reshape(S, NUM_HEADS, HEAD_DIM)
    vh = v.reshape(S, NUM_HEADS, HEAD_DIM)
    scores = jnp.einsum('nhd,shd->nhs', qh, kh) / math.sqrt(HEAD_DIM)
    pw = jax.nn.softmax(scores, axis=-1)
    att = jnp.einsum('nhs,shd->nhd', pw, vh).reshape(N, HIDDEN)
    mp = att @ params['wp'] + params['bp']
    mc = q @ params['wc'] + params['bc']
    return jnp.sum(mp * mc, axis=-1)


def _reference_packed(prompt, concepts, packed):
    """Mirror of the kernel math: bf16 weights/activations, f32 accumulation."""
    f32 = jnp.float32

    def bf(x):     # round to bf16 like the kernel, compute in f32
        return x.astype(jnp.bfloat16).astype(f32)

    hg_count, _, gd = packed['wq'].shape
    wq = jnp.transpose(packed['wq'].astype(f32), (1, 0, 2)).reshape(EMB_DIM, HIDDEN)
    bq = jnp.transpose(packed['bq'], (1, 0, 2)).reshape(1, HIDDEN)
    wp = packed['wp'].astype(f32).reshape(HIDDEN, OUT_DIM)
    wc = packed['wc'].astype(f32).reshape(HIDDEN, OUT_DIM)

    q = bf(concepts) @ wq + bq
    q_bf = bf(q)
    k_bf = bf(prompt @ packed['wk_s'] + packed['bk_s'])   # scale folded in wk_s
    v_bf = bf(prompt @ packed['wv'] + packed['bv'])

    att_parts = []
    for h in range(NUM_HEADS):
        lo, hi = h * HEAD_DIM, (h + 1) * HEAD_DIM
        s = q_bf[:, lo:hi] @ k_bf[:, lo:hi].T
        m = jnp.max(s, axis=-1, keepdims=True)
        p = jnp.exp(s - m)
        denom = jnp.sum(p, axis=-1, keepdims=True)
        att_parts.append((bf(p) @ v_bf[:, lo:hi]) / denom)
    att = bf(jnp.concatenate(att_parts, axis=-1))

    mp = att @ wp + packed['bp']
    mc = q_bf @ wc + packed['bc']
    return jnp.sum(mp * mc, axis=-1)


if __name__ == "__main__":
    key = jax.random.PRNGKey(0)
    k_prompt, k_concept, k_params = jax.random.split(key, 3)

    S = 77    # CLIP text sequence length (padded to 128 inside the wrapper)
    N = 32    # small stand-in for the train-concept set
    prompt_emb = jax.random.normal(k_prompt, (S, EMB_DIM), jnp.float32)
    concept_embs = jax.random.normal(k_concept, (N, EMB_DIM), jnp.float32)

    params = init_params(k_params)
    # 8 heads per grid step -> 256-wide MXU output (v6e/v7x); use 4 on v5e.
    packed = pack_params(params, head_group=8, weights_dtype=jnp.bfloat16)

    # concept_block=128 keeps the output row lane-dense at this tiny N
    # (grid = 1 concept block x 2 head groups).
    pred_label, dots = latent_guard_forward(prompt_emb, concept_embs, packed,
                                            concept_block=128)
    jax.block_until_ready((pred_label, dots))

    # Tight check against a mirror of the exact kernel math (bf16 rounding at the
    # same points, f32 accumulation); remaining delta ~ approximate reciprocal.
    ref_packed = _reference_packed(prompt_emb, concept_embs, packed)
    assert jnp.allclose(dots, ref_packed, atol=3e-2, rtol=3e-2), (dots, ref_packed)

    # Loose check against the original all-f32 module math.
    ref_f32 = _reference_original(prompt_emb, concept_embs, params)
    assert jnp.allclose(dots, ref_f32, atol=5e-1, rtol=1e-1), (dots, ref_f32)

    assert dots.shape == (N,)
    assert pred_label.shape == () and pred_label.dtype == jnp.int32
    print("KERNEL_OK")
</pallas_src>

<mosaic_0001>
module attributes {stable_mosaic.version = 11 : i64} {
  func.func @_latent_guard_kernel(%arg0: i32, %arg1: i32, %arg2: memref<128x768xbf16, #tpu.memory_space<vmem>>, %arg3: memref<2x128x256xbf16, #tpu.memory_space<vmem>>, %arg4: memref<2x128x256xbf16, #tpu.memory_space<vmem>>, %arg5: memref<1x128xf32, #tpu.memory_space<vmem>>, %arg6: memref<2x768x256xbf16, #tpu.memory_space<vmem>>, %arg7: memref<2x1x256xf32, #tpu.memory_space<vmem>>, %arg8: memref<2x256x128xbf16, #tpu.memory_space<vmem>>, %arg9: memref<2x256x128xbf16, #tpu.memory_space<vmem>>, %arg10: memref<1x128xf32, #tpu.memory_space<vmem>>, %arg11: memref<1x128xf32, #tpu.memory_space<vmem>>, %arg12: memref<1x1x128xf32, #tpu.memory_space<vmem>>, %arg13: memref<128x128xf32, #tpu.memory_space<vmem>>, %arg14: memref<128x128xf32, #tpu.memory_space<vmem>>) attributes {dimension_semantics = [#tpu.dimension_semantics<parallel>, #tpu.dimension_semantics<arbitrary>], iteration_bounds = array<i64: 1, 2>, scalar_prefetch = 0 : i64, scratch_operands = 2 : i64, tpu.core_type = #tpu.core_type<tc>, window_params = [{transform_indices = @transform_0, window_bounds = array<i64: 128, 768>}, {pipeline_mode = #tpu.pipeline_mode<synchronous>, transform_indices = @transform_1, window_bounds = array<i64: 2, 128, 256>}, {pipeline_mode = #tpu.pipeline_mode<synchronous>, transform_indices = @transform_2, window_bounds = array<i64: 2, 128, 256>}, {pipeline_mode = #tpu.pipeline_mode<synchronous>, transform_indices = @transform_3, window_bounds = array<i64: 1, 128>}, {pipeline_mode = #tpu.pipeline_mode<synchronous>, transform_indices = @transform_4, window_bounds = array<i64: 2, 768, 256>}, {pipeline_mode = #tpu.pipeline_mode<synchronous>, transform_indices = @transform_5, window_bounds = array<i64: 2, 1, 256>}, {pipeline_mode = #tpu.pipeline_mode<synchronous>, transform_indices = @transform_6, window_bounds = array<i64: 2, 256, 128>}, {pipeline_mode = #tpu.pipeline_mode<synchronous>, transform_indices = @transform_7, window_bounds = array<i64: 2, 256, 128>}, {pipeline_mode = #tpu.pipeline_mode<synchronous>, transform_indices = @transform_8, window_bounds = array<i64: 1, 128>}, {pipeline_mode = #tpu.pipeline_mode<synchronous>, transform_indices = @transform_9, window_bounds = array<i64: 1, 128>}, {transform_indices = @transform_10, window_bounds = array<i64: 1, 1, 128>}]} {
    %c0_i32 = arith.constant 0 : i32
    %0 = arith.cmpi eq, %arg1, %c0_i32 : i32
    %1 = arith.extui %0 : i1 to i32
    %c0_i32_0 = arith.constant 0 : i32
    %2 = arith.cmpi ne, %1, %c0_i32_0 : i32
    scf.if %2 {
      %c0_59 = arith.constant 0 : index
      %c0_60 = arith.constant 0 : index
      %184 = vector.load %arg10[%c0_59, %c0_60] : memref<1x128xf32, #tpu.memory_space<vmem>>, vector<1x128xf32>
      %185 = vector.shape_cast %184 : vector<1x128xf32> to vector<1x128xf32>
      %186 = vector.broadcast %185 : vector<1x128xf32> to vector<128x128xf32>
      %c0_61 = arith.constant 0 : index
      %c0_62 = arith.constant 0 : index
      %187 = vector.load %arg13[%c0_61, %c0_62] : memref<128x128xf32, #tpu.memory_space<vmem>>, vector<128x128xf32>
      tpu.vector_store %arg13[%c0_61, %c0_62], %186 {strides = array<i32>} : memref<128x128xf32, #tpu.memory_space<vmem>>, vector<128x128xf32>,
      %c0_63 = arith.constant 0 : index
      %c0_64 = arith.constant 0 : index
      %188 = vector.load %arg11[%c0_63, %c0_64] : memref<1x128xf32, #tpu.memory_space<vmem>>, vector<1x128xf32>
      %189 = vector.shape_cast %188 : vector<1x128xf32> to vector<1x128xf32>
      %190 = vector.broadcast %189 : vector<1x128xf32> to vector<128x128xf32>
      %c0_65 = arith.constant 0 : index
      %c0_66 = arith.constant 0 : index
      %191 = vector.load %arg14[%c0_65, %c0_66] : memref<128x128xf32, #tpu.memory_space<vmem>>, vector<128x128xf32>
      tpu.vector_store %arg14[%c0_65, %c0_66], %190 {strides = array<i32>} : memref<128x128xf32, #tpu.memory_space<vmem>>, vector<128x128xf32>,
    } else {
    }
    %c0 = arith.constant 0 : index
    %c0_1 = arith.constant 0 : index
    %3 = vector.load %arg2[%c0, %c0_1] : memref<128x768xbf16, #tpu.memory_space<vmem>>, vector<128x768xbf16>
    %4 = arith.index_cast %arg1 : i32 to index
    %c0_2 = arith.constant 0 : index
    %c0_3 = arith.constant 0 : index
    %5 = vector.load %arg3[%4, %c0_2, %c0_3] : memref<2x128x256xbf16, #tpu.memory_space<vmem>>, vector<1x128x256xbf16>
    %6 = vector.shape_cast %5 : vector<1x128x256xbf16> to vector<128x256xbf16>
    %7 = arith.index_cast %arg1 : i32 to index
    %c0_4 = arith.constant 0 : index
    %c0_5 = arith.constant 0 : index
    %8 = vector.load %arg4[%7, %c0_4, %c0_5] : memref<2x128x256xbf16, #tpu.memory_space<vmem>>, vector<1x128x256xbf16>
    %9 = vector.shape_cast %8 : vector<1x128x256xbf16> to vector<128x256xbf16>
    %c0_6 = arith.constant 0 : index
    %c0_7 = arith.constant 0 : index
    %10 = vector.load %arg5[%c0_6, %c0_7] : memref<1x128xf32, #tpu.memory_space<vmem>>, vector<1x128xf32>
    %11 = arith.index_cast %arg1 : i32 to index
    %c0_8 = arith.constant 0 : index
    %c0_9 = arith.constant 0 : index
    %12 = vector.load %arg6[%11, %c0_8, %c0_9] : memref<2x768x256xbf16, #tpu.memory_space<vmem>>, vector<1x768x256xbf16>
    %13 = vector.shape_cast %12 : vector<1x768x256xbf16> to vector<768x256xbf16>
    %cst = arith.constant dense<0.000000e+00> : vector<128x256xf32>
    %14 = tpu.matmul %3, %13, %cst {dimension_numbers = #tpu.dot_dimension_numbers<[1], [0], [0], [1], [0, 0, 1, 1], [], []>} : vector<128x768xbf16>, vector<768x256xbf16>, vector<128x256xf32> -> vector<128x256xf32>
    %15 = arith.index_cast %arg1 : i32 to index
    %c0_10 = arith.constant 0 : index
    %c0_11 = arith.constant 0 : index
    %16 = vector.load %arg7[%15, %c0_10, %c0_11] : memref<2x1x256xf32, #tpu.memory_space<vmem>>, vector<1x1x256xf32>
    %17 = vector.shape_cast %16 : vector<1x1x256xf32> to vector<1x256xf32>
    %18 = vector.broadcast %17 : vector<1x256xf32> to vector<128x256xf32>
    %19 = arith.addf %14, %18 : vector<128x256xf32>
    %20 = arith.truncf %19 : vector<128x256xf32> to vector<128x256xbf16>
    %21 = vector.extract_strided_slice %20 {offsets = [0, 0], sizes = [128, 32], strides = [1, 1]} : vector<128x256xbf16> to vector<128x32xbf16>
    %22 = vector.extract_strided_slice %6 {offsets = [0, 0], sizes = [128, 32], strides = [1, 1]} : vector<128x256xbf16> to vector<128x32xbf16>
    %cst_12 = arith.constant dense<0.000000e+00> : vector<128x128xf32>
    %23 = tpu.matmul %21, %22, %cst_12 {dimension_numbers = #tpu.dot_dimension_numbers<[1], [1], [0], [0], [0, 0, 1, 0], [], []>} : vector<128x32xbf16>, vector<128x32xbf16>, vector<128x128xf32> -> vector<128x128xf32>
    %24 = vector.broadcast %10 : vector<1x128xf32> to vector<128x128xf32>
    %25 = arith.addf %23, %24 : vector<128x128xf32>
    %cst_13 = arith.constant dense<0xFF800000> : vector<128xf32>
    %26 = vector.multi_reduction <maximumf>, %25, %cst_13 [1] : vector<128x128xf32> to vector<128xf32>
    %27 = vector.shape_cast %26 : vector<128xf32> to vector<128x1xf32>
    %28 = vector.broadcast %27 : vector<128x1xf32> to vector<128x128xf32>
    %29 = arith.subf %25, %28 : vector<128x128xf32>
    %30 = math.exp %29 : vector<128x128xf32>
    %cst_14 = arith.constant dense<0.000000e+00> : vector<128xf32>
    %31 = vector.multi_reduction <add>, %30, %cst_14 [1] : vector<128x128xf32> to vector<128xf32>
    %32 = vector.shape_cast %31 : vector<128xf32> to vector<128x1xf32>
    %33 = arith.truncf %30 : vector<128x128xf32> to vector<128x128xbf16>
    %34 = vector.extract_strided_slice %9 {offsets = [0, 0], sizes = [128, 32], strides = [1, 1]} : vector<128x256xbf16> to vector<128x32xbf16>
    %cst_15 = arith.constant dense<0.000000e+00> : vector<128x32xf32>
    %35 = tpu.matmul %33, %34, %cst_15 {dimension_numbers = #tpu.dot_dimension_numbers<[1], [0], [0], [1], [0, 0, 1, 1], [], []>} : vector<128x128xbf16>, vector<128x32xbf16>, vector<128x32xf32> -> vector<128x32xf32>
    %36 = tpu.reciprocal %32 {approx = true} : vector<128x1xf32> -> vector<128x1xf32>
    %37 = vector.broadcast %36 : vector<128x1xf32> to vector<128x32xf32>
    %38 = arith.mulf %35, %37 : vector<128x32xf32>
    %39 = vector.extract_strided_slice %20 {offsets = [0, 32], sizes = [128, 32], strides = [1, 1]} : vector<128x256xbf16> to vector<128x32xbf16>
    %40 = vector.extract_strided_slice %6 {offsets = [0, 32], sizes = [128, 32], strides = [1, 1]} : vector<128x256xbf16> to vector<128x32xbf16>
    %cst_16 = arith.constant dense<0.000000e+00> : vector<128x128xf32>
    %41 = tpu.matmul %39, %40, %cst_16 {dimension_numbers = #tpu.dot_dimension_numbers<[1], [1], [0], [0], [0, 0, 1, 0], [], []>} : vector<128x32xbf16>, vector<128x32xbf16>, vector<128x128xf32> -> vector<128x128xf32>
    %42 = vector.broadcast %10 : vector<1x128xf32> to vector<128x128xf32>
    %43 = arith.addf %41, %42 : vector<128x128xf32>
    %cst_17 = arith.constant dense<0xFF800000> : vector<128xf32>
    %44 = vector.multi_reduction <maximumf>, %43, %cst_17 [1] : vector<128x128xf32> to vector<128xf32>
    %45 = vector.shape_cast %44 : vector<128xf32> to vector<128x1xf32>
    %46 = vector.broadcast %45 : vector<128x1xf32> to vector<128x128xf32>
    %47 = arith.subf %43, %46 : vector<128x128xf32>
    %48 = math.exp %47 : vector<128x128xf32>
    %cst_18 = arith.constant dense<0.000000e+00> : vector<128xf32>
    %49 = vector.multi_reduction <add>, %48, %cst_18 [1] : vector<128x128xf32> to vector<128xf32>
    %50 = vector.shape_cast %49 : vector<128xf32> to vector<128x1xf32>
    %51 = arith.truncf %48 : vector<128x128xf32> to vector<128x128xbf16>
    %52 = vector.extract_strided_slice %9 {offsets = [0, 32], sizes = [128, 32], strides = [1, 1]} : vector<128x256xbf16> to vector<128x32xbf16>
    %cst_19 = arith.constant dense<0.000000e+00> : vector<128x32xf32>
    %53 = tpu.matmul %51, %52, %cst_19 {dimension_numbers = #tpu.dot_dimension_numbers<[1], [0], [0], [1], [0, 0, 1, 1], [], []>} : vector<128x128xbf16>, vector<128x32xbf16>, vector<128x32xf32> -> vector<128x32xf32>
    %54 = tpu.reciprocal %50 {approx = true} : vector<128x1xf32> -> vector<128x1xf32>
    %55 = vector.broadcast %54 : vector<128x1xf32> to vector<128x32xf32>
    %56 = arith.mulf %53, %55 : vector<128x32xf32>
    %57 = vector.extract_strided_slice %20 {offsets = [0, 64], sizes = [128, 32], strides = [1, 1]} : vector<128x256xbf16> to vector<128x32xbf16>
    %58 = vector.extract_strided_slice %6 {offsets = [0, 64], sizes = [128, 32], strides = [1, 1]} : vector<128x256xbf16> to vector<128x32xbf16>
    %cst_20 = arith.constant dense<0.000000e+00> : vector<128x128xf32>
    %59 = tpu.matmul %57, %58, %cst_20 {dimension_numbers = #tpu.dot_dimension_numbers<[1], [1], [0], [0], [0, 0, 1, 0], [], []>} : vector<128x32xbf16>, vector<128x32xbf16>, vector<128x128xf32> -> vector<128x128xf32>
    %60 = vector.broadcast %10 : vector<1x128xf32> to vector<128x128xf32>
    %61 = arith.addf %59, %60 : vector<128x128xf32>
    %cst_21 = arith.constant dense<0xFF800000> : vector<128xf32>
    %62 = vector.multi_reduction <maximumf>, %61, %cst_21 [1] : vector<128x128xf32> to vector<128xf32>
    %63 = vector.shape_cast %62 : vector<128xf32> to vector<128x1xf32>
    %64 = vector.broadcast %63 : vector<128x1xf32> to vector<128x128xf32>
    %65 = arith.subf %61, %64 : vector<128x128xf32>
    %66 = math.exp %65 : vector<128x128xf32>
    %cst_22 = arith.constant dense<0.000000e+00> : vector<128xf32>
    %67 = vector.multi_reduction <add>, %66, %cst_22 [1] : vector<128x128xf32> to vector<128xf32>
    %68 = vector.shape_cast %67 : vector<128xf32> to vector<128x1xf32>
    %69 = arith.truncf %66 : vector<128x128xf32> to vector<128x128xbf16>
    %70 = vector.extract_strided_slice %9 {offsets = [0, 64], sizes = [128, 32], strides = [1, 1]} : vector<128x256xbf16> to vector<128x32xbf16>
    %cst_23 = arith.constant dense<0.000000e+00> : vector<128x32xf32>
    %71 = tpu.matmul %69, %70, %cst_23 {dimension_numbers = #tpu.dot_dimension_numbers<[1], [0], [0], [1], [0, 0, 1, 1], [], []>} : vector<128x128xbf16>, vector<128x32xbf16>, vector<128x32xf32> -> vector<128x32xf32>
    %72 = tpu.reciprocal %68 {approx = true} : vector<128x1xf32> -> vector<128x1xf32>
    %73 = vector.broadcast %72 : vector<128x1xf32> to vector<128x32xf32>
    %74 = arith.mulf %71, %73 : vector<128x32xf32>
    %75 = vector.extract_strided_slice %20 {offsets = [0, 96], sizes = [128, 32], strides = [1, 1]} : vector<128x256xbf16> to vector<128x32xbf16>
    %76 = vector.extract_strided_slice %6 {offsets = [0, 96], sizes = [128, 32], strides = [1, 1]} : vector<128x256xbf16> to vector<128x32xbf16>
    %cst_24 = arith.constant dense<0.000000e+00> : vector<128x128xf32>
    %77 = tpu.matmul %75, %76, %cst_24 {dimension_numbers = #tpu.dot_dimension_numbers<[1], [1], [0], [0], [0, 0, 1, 0], [], []>} : vector<128x32xbf16>, vector<128x32xbf16>, vector<128x128xf32> -> vector<128x128xf32>
    %78 = vector.broadcast %10 : vector<1x128xf32> to vector<128x128xf32>
    %79 = arith.addf %77, %78 : vector<128x128xf32>
    %cst_25 = arith.constant dense<0xFF800000> : vector<128xf32>
    %80 = vector.multi_reduction <maximumf>, %79, %cst_25 [1] : vector<128x128xf32> to vector<128xf32>
    %81 = vector.shape_cast %80 : vector<128xf32> to vector<128x1xf32>
    %82 = vector.broadcast %81 : vector<128x1xf32> to vector<128x128xf32>
    %83 = arith.subf %79, %82 : vector<128x128xf32>
    %84 = math.exp %83 : vector<128x128xf32>
    %cst_26 = arith.constant dense<0.000000e+00> : vector<128xf32>
    %85 = vector.multi_reduction <add>, %84, %cst_26 [1] : vector<128x128xf32> to vector<128xf32>
    %86 = vector.shape_cast %85 : vector<128xf32> to vector<128x1xf32>
    %87 = arith.truncf %84 : vector<128x128xf32> to vector<128x128xbf16>
    %88 = vector.extract_strided_slice %9 {offsets = [0, 96], sizes = [128, 32], strides = [1, 1]} : vector<128x256xbf16> to vector<128x32xbf16>
    %cst_27 = arith.constant dense<0.000000e+00> : vector<128x32xf32>
    %89 = tpu.matmul %87, %88, %cst_27 {dimension_numbers = #tpu.dot_dimension_numbers<[1], [0], [0], [1], [0, 0, 1, 1], [], []>} : vector<128x128xbf16>, vector<128x32xbf16>, vector<128x32xf32> -> vector<128x32xf32>
    %90 = tpu.reciprocal %86 {approx = true} : vector<128x1xf32> -> vector<128x1xf32>
    %91 = vector.broadcast %90 : vector<128x1xf32> to vector<128x32xf32>
    %92 = arith.mulf %89, %91 : vector<128x32xf32>
    %93 = vector.extract_strided_slice %20 {offsets = [0, 128], sizes = [128, 32], strides = [1, 1]} : vector<128x256xbf16> to vector<128x32xbf16>
    %94 = vector.extract_strided_slice %6 {offsets = [0, 128], sizes = [128, 32], strides = [1, 1]} : vector<128x256xbf16> to vector<128x32xbf16>
    %cst_28 = arith.constant dense<0.000000e+00> : vector<128x128xf32>
    %95 = tpu.matmul %93, %94, %cst_28 {dimension_numbers = #tpu.dot_dimension_numbers<[1], [1], [0], [0], [0, 0, 1, 0], [], []>} : vector<128x32xbf16>, vector<128x32xbf16>, vector<128x128xf32> -> vector<128x128xf32>
    %96 = vector.broadcast %10 : vector<1x128xf32> to vector<128x128xf32>
    %97 = arith.addf %95, %96 : vector<128x128xf32>
    %cst_29 = arith.constant dense<0xFF800000> : vector<128xf32>
    %98 = vector.multi_reduction <maximumf>, %97, %cst_29 [1] : vector<128x128xf32> to vector<128xf32>
    %99 = vector.shape_cast %98 : vector<128xf32> to vector<128x1xf32>
    %100 = vector.broadcast %99 : vector<128x1xf32> to vector<128x128xf32>
    %101 = arith.subf %97, %100 : vector<128x128xf32>
    %102 = math.exp %101 : vector<128x128xf32>
    %cst_30 = arith.constant dense<0.000000e+00> : vector<128xf32>
    %103 = vector.multi_reduction <add>, %102, %cst_30 [1] : vector<128x128xf32> to vector<128xf32>
    %104 = vector.shape_cast %103 : vector<128xf32> to vector<128x1xf32>
    %105 = arith.truncf %102 : vector<128x128xf32> to vector<128x128xbf16>
    %106 = vector.extract_strided_slice %9 {offsets = [0, 128], sizes = [128, 32], strides = [1, 1]} : vector<128x256xbf16> to vector<128x32xbf16>
    %cst_31 = arith.constant dense<0.000000e+00> : vector<128x32xf32>
    %107 = tpu.matmul %105, %106, %cst_31 {dimension_numbers = #tpu.dot_dimension_numbers<[1], [0], [0], [1], [0, 0, 1, 1], [], []>} : vector<128x128xbf16>, vector<128x32xbf16>, vector<128x32xf32> -> vector<128x32xf32>
    %108 = tpu.reciprocal %104 {approx = true} : vector<128x1xf32> -> vector<128x1xf32>
    %109 = vector.broadcast %108 : vector<128x1xf32> to vector<128x32xf32>
    %110 = arith.mulf %107, %109 : vector<128x32xf32>
    %111 = vector.extract_strided_slice %20 {offsets = [0, 160], sizes = [128, 32], strides = [1, 1]} : vector<128x256xbf16> to vector<128x32xbf16>
    %112 = vector.extract_strided_slice %6 {offsets = [0, 160], sizes = [128, 32], strides = [1, 1]} : vector<128x256xbf16> to vector<128x32xbf16>
    %cst_32 = arith.constant dense<0.000000e+00> : vector<128x128xf32>
    %113 = tpu.matmul %111, %112, %cst_32 {dimension_numbers = #tpu.dot_dimension_numbers<[1], [1], [0], [0], [0, 0, 1, 0], [], []>} : vector<128x32xbf16>, vector<128x32xbf16>, vector<128x128xf32> -> vector<128x128xf32>
    %114 = vector.broadcast %10 : vector<1x128xf32> to vector<128x128xf32>
    %115 = arith.addf %113, %114 : vector<128x128xf32>
    %cst_33 = arith.constant dense<0xFF800000> : vector<128xf32>
    %116 = vector.multi_reduction <maximumf>, %115, %cst_33 [1] : vector<128x128xf32> to vector<128xf32>
    %117 = vector.shape_cast %116 : vector<128xf32> to vector<128x1xf32>
    %118 = vector.broadcast %117 : vector<128x1xf32> to vector<128x128xf32>
    %119 = arith.subf %115, %118 : vector<128x128xf32>
    %120 = math.exp %119 : vector<128x128xf32>
    %cst_34 = arith.constant dense<0.000000e+00> : vector<128xf32>
    %121 = vector.multi_reduction <add>, %120, %cst_34 [1] : vector<128x128xf32> to vector<128xf32>
    %122 = vector.shape_cast %121 : vector<128xf32> to vector<128x1xf32>
    %123 = arith.truncf %120 : vector<128x128xf32> to vector<128x128xbf16>
    %124 = vector.extract_strided_slice %9 {offsets = [0, 160], sizes = [128, 32], strides = [1, 1]} : vector<128x256xbf16> to vector<128x32xbf16>
    %cst_35 = arith.constant dense<0.000000e+00> : vector<128x32xf32>
    %125 = tpu.matmul %123, %124, %cst_35 {dimension_numbers = #tpu.dot_dimension_numbers<[1], [0], [0], [1], [0, 0, 1, 1], [], []>} : vector<128x128xbf16>, vector<128x32xbf16>, vector<128x32xf32> -> vector<128x32xf32>
    %126 = tpu.reciprocal %122 {approx = true} : vector<128x1xf32> -> vector<128x1xf32>
    %127 = vector.broadcast %126 : vector<128x1xf32> to vector<128x32xf32>
    %128 = arith.mulf %125, %127 : vector<128x32xf32>
    %129 = vector.extract_strided_slice %20 {offsets = [0, 192], sizes = [128, 32], strides = [1, 1]} : vector<128x256xbf16> to vector<128x32xbf16>
    %130 = vector.extract_strided_slice %6 {offsets = [0, 192], sizes = [128, 32], strides = [1, 1]} : vector<128x256xbf16> to vector<128x32xbf16>
    %cst_36 = arith.constant dense<0.000000e+00> : vector<128x128xf32>
    %131 = tpu.matmul %129, %130, %cst_36 {dimension_numbers = #tpu.dot_dimension_numbers<[1], [1], [0], [0], [0, 0, 1, 0], [], []>} : vector<128x32xbf16>, vector<128x32xbf16>, vector<128x128xf32> -> vector<128x128xf32>
    %132 = vector.broadcast %10 : vector<1x128xf32> to vector<128x128xf32>
    %133 = arith.addf %131, %132 : vector<128x128xf32>
    %cst_37 = arith.constant dense<0xFF800000> : vector<128xf32>
    %134 = vector.multi_reduction <maximumf>, %133, %cst_37 [1] : vector<128x128xf32> to vector<128xf32>
    %135 = vector.shape_cast %134 : vector<128xf32> to vector<128x1xf32>
    %136 = vector.broadcast %135 : vector<128x1xf32> to vector<128x128xf32>
    %137 = arith.subf %133, %136 : vector<128x128xf32>
    %138 = math.exp %137 : vector<128x128xf32>
    %cst_38 = arith.constant dense<0.000000e+00> : vector<128xf32>
    %139 = vector.multi_reduction <add>, %138, %cst_38 [1] : vector<128x128xf32> to vector<128xf32>
    %140 = vector.shape_cast %139 : vector<128xf32> to vector<128x1xf32>
    %141 = arith.truncf %138 : vector<128x128xf32> to vector<128x128xbf16>
    %142 = vector.extract_strided_slice %9 {offsets = [0, 192], sizes = [128, 32], strides = [1, 1]} : vector<128x256xbf16> to vector<128x32xbf16>
    %cst_39 = arith.constant dense<0.000000e+00> : vector<128x32xf32>
    %143 = tpu.matmul %141, %142, %cst_39 {dimension_numbers = #tpu.dot_dimension_numbers<[1], [0], [0], [1], [0, 0, 1, 1], [], []>} : vector<128x128xbf16>, vector<128x32xbf16>, vector<128x32xf32> -> vector<128x32xf32>
    %144 = tpu.reciprocal %140 {approx = true} : vector<128x1xf32> -> vector<128x1xf32>
    %145 = vector.broadcast %144 : vector<128x1xf32> to vector<128x32xf32>
    %146 = arith.mulf %143, %145 : vector<128x32xf32>
    %147 = vector.extract_strided_slice %20 {offsets = [0, 224], sizes = [128, 32], strides = [1, 1]} : vector<128x256xbf16> to vector<128x32xbf16>
    %148 = vector.extract_strided_slice %6 {offsets = [0, 224], sizes = [128, 32], strides = [1, 1]} : vector<128x256xbf16> to vector<128x32xbf16>
    %cst_40 = arith.constant dense<0.000000e+00> : vector<128x128xf32>
    %149 = tpu.matmul %147, %148, %cst_40 {dimension_numbers = #tpu.dot_dimension_numbers<[1], [1], [0], [0], [0, 0, 1, 0], [], []>} : vector<128x32xbf16>, vector<128x32xbf16>, vector<128x128xf32> -> vector<128x128xf32>
    %150 = vector.broadcast %10 : vector<1x128xf32> to vector<128x128xf32>
    %151 = arith.addf %149, %150 : vector<128x128xf32>
    %cst_41 = arith.constant dense<0xFF800000> : vector<128xf32>
    %152 = vector.multi_reduction <maximumf>, %151, %cst_41 [1] : vector<128x128xf32> to vector<128xf32>
    %153 = vector.shape_cast %152 : vector<128xf32> to vector<128x1xf32>
    %154 = vector.broadcast %153 : vector<128x1xf32> to vector<128x128xf32>
    %155 = arith.subf %151, %154 : vector<128x128xf32>
    %156 = math.exp %155 : vector<128x128xf32>
    %cst_42 = arith.constant dense<0.000000e+00> : vector<128xf32>
    %157 = vector.multi_reduction <add>, %156, %cst_42 [1] : vector<128x128xf32> to vector<128xf32>
    %158 = vector.shape_cast %157 : vector<128xf32> to vector<128x1xf32>
    %159 = arith.truncf %156 : vector<128x128xf32> to vector<128x128xbf16>
    %160 = vector.extract_strided_slice %9 {offsets = [0, 224], sizes = [128, 32], strides = [1, 1]} : vector<128x256xbf16> to vector<128x32xbf16>
    %cst_43 = arith.constant dense<0.000000e+00> : vector<128x32xf32>
    %161 = tpu.matmul %159, %160, %cst_43 {dimension_numbers = #tpu.dot_dimension_numbers<[1], [0], [0], [1], [0, 0, 1, 1], [], []>} : vector<128x128xbf16>, vector<128x32xbf16>, vector<128x32xf32> -> vector<128x32xf32>
    %162 = tpu.reciprocal %158 {approx = true} : vector<128x1xf32> -> vector<128x1xf32>
    %163 = vector.broadcast %162 : vector<128x1xf32> to vector<128x32xf32>
    %164 = arith.mulf %161, %163 : vector<128x32xf32>
    %165 = tpu.concatenate %38, %56, %74, %92, %110, %128, %146, %164 in 1 : vector<128x32xf32>, vector<128x32xf32>, vector<128x32xf32>, vector<128x32xf32>, vector<128x32xf32>, vector<128x32xf32>, vector<128x32xf32>, vector<128x32xf32> -> vector<128x256xf32>
    %166 = arith.truncf %165 : vector<128x256xf32> to vector<128x256xbf16>
    %c0_44 = arith.constant 0 : index
    %c0_45 = arith.constant 0 : index
    %167 = vector.load %arg13[%c0_44, %c0_45] : memref<128x128xf32, #tpu.memory_space<vmem>>, vector<128x128xf32>
    %168 = arith.index_cast %arg1 : i32 to index
    %c0_46 = arith.constant 0 : index
    %c0_47 = arith.constant 0 : index
    %169 = vector.load %arg8[%168, %c0_46, %c0_47] : memref<2x256x128xbf16, #tpu.memory_space<vmem>>, vector<1x256x128xbf16>
    %170 = vector.shape_cast %169 : vector<1x256x128xbf16> to vector<256x128xbf16>
    %cst_48 = arith.constant dense<0.000000e+00> : vector<128x128xf32>
    %171 = tpu.matmul %166, %170, %cst_48 {dimension_numbers = #tpu.dot_dimension_numbers<[1], [0], [0], [1], [0, 0, 1, 1], [], []>} : vector<128x256xbf16>, vector<256x128xbf16>, vector<128x128xf32> -> vector<128x128xf32>
    %172 = arith.addf %167, %171 : vector<128x128xf32>
    %c0_49 = arith.constant 0 : index
    %c0_50 = arith.constant 0 : index
    %173 = vector.load %arg13[%c0_49, %c0_50] : memref<128x128xf32, #tpu.memory_space<vmem>>, vector<128x128xf32>
    tpu.vector_store %arg13[%c0_49, %c0_50], %172 {strides = array<i32>} : memref<128x128xf32, #tpu.memory_space<vmem>>, vector<128x128xf32>,
    %c0_51 = arith.constant 0 : index
    %c0_52 = arith.constant 0 : index
    %174 = vector.load %arg14[%c0_51, %c0_52] : memref<128x128xf32, #tpu.memory_space<vmem>>, vector<128x128xf32>
    %175 = arith.index_cast %arg1 : i32 to index
    %c0_53 = arith.constant 0 : index
    %c0_54 = arith.constant 0 : index
    %176 = vector.load %arg9[%175, %c0_53, %c0_54] : memref<2x256x128xbf16, #tpu.memory_space<vmem>>, vector<1x256x128xbf16>
    %177 = vector.shape_cast %176 : vector<1x256x128xbf16> to vector<256x128xbf16>
    %cst_55 = arith.constant dense<0.000000e+00> : vector<128x128xf32>
    %178 = tpu.matmul %20, %177, %cst_55 {dimension_numbers = #tpu.dot_dimension_numbers<[1], [0], [0], [1], [0, 0, 1, 1], [], []>} : vector<128x256xbf16>, vector<256x128xbf16>, vector<128x128xf32> -> vector<128x128xf32>
    %179 = arith.addf %174, %178 : vector<128x128xf32>
    %c0_56 = arith.constant 0 : index
    %c0_57 = arith.constant 0 : index
    %180 = vector.load %arg14[%c0_56, %c0_57] : memref<128x128xf32, #tpu.memory_space<vmem>>, vector<128x128xf32>
    tpu.vector_store %arg14[%c0_56, %c0_57], %179 {strides = array<i32>} : memref<128x128xf32, #tpu.memory_space<vmem>>, vector<128x128xf32>,
    %c1_i32 = arith.constant 1 : i32
    %181 = arith.cmpi eq, %arg1, %c1_i32 : i32
    %182 = arith.extui %181 : i1 to i32
    %c0_i32_58 = arith.constant 0 : i32
    %183 = arith.cmpi ne, %182, %c0_i32_58 : i32
    scf.if %183 {
      %c0_59 = arith.constant 0 : index
      %c0_60 = arith.constant 0 : index
      %184 = vector.load %arg13[%c0_59, %c0_60] : memref<128x128xf32, #tpu.memory_space<vmem>>, vector<128x128xf32>
      %c0_61 = arith.constant 0 : index
      %c0_62 = arith.constant 0 : index
      %185 = vector.load %arg14[%c0_61, %c0_62] : memref<128x128xf32, #tpu.memory_space<vmem>>, vector<128x128xf32>
      %186 = arith.mulf %184, %185 : vector<128x128xf32>
      %cst_63 = arith.constant dense<0.000000e+00> : vector<128xf32>
      %187 = vector.multi_reduction <add>, %186, %cst_63 [1] : vector<128x128xf32> to vector<128xf32>
      %188 = vector.shape_cast %187 : vector<128xf32> to vector<128x1xf32>
      %189 = tpu.transpose %188, [1, 0] : vector<128x1xf32> -> vector<1x128xf32>
      %190 = vector.shape_cast %189 : vector<1x128xf32> to vector<1x1x128xf32>
      %c0_64 = arith.constant 0 : index
      %c0_65 = arith.constant 0 : index
      %c0_66 = arith.constant 0 : index
      %191 = vector.load %arg12[%c0_64, %c0_65, %c0_66] : memref<1x1x128xf32, #tpu.memory_space<vmem>>, vector<1x1x128xf32>
      tpu.vector_store %arg12[%c0_64, %c0_65, %c0_66], %190 {strides = array<i32>} : memref<1x1x128xf32, #tpu.memory_space<vmem>>, vector<1x1x128xf32>,
    } else {
    }
    return
  }
  func.func @transform_0(%arg0: i32, %arg1: i32) -> (i32, i32) {
    %c0_i32 = arith.constant 0 : i32
    %c0_i32_0 = arith.constant 0 : i32
    return %arg0, %c0_i32 : i32, i32
  }
  func.func @transform_1(%arg0: i32, %arg1: i32) -> (i32, i32, i32) {
    %c0_i32 = arith.constant 0 : i32
    %c0_i32_0 = arith.constant 0 : i32
    %c0_i32_1 = arith.constant 0 : i32
    %c0_i32_2 = arith.constant 0 : i32
    return %c0_i32, %c0_i32_0, %c0_i32_1 : i32, i32, i32
  }
  func.func @transform_2(%arg0: i32, %arg1: i32) -> (i32, i32, i32) {
    %c0_i32 = arith.constant 0 : i32
    %c0_i32_0 = arith.constant 0 : i32
    %c0_i32_1 = arith.constant 0 : i32
    %c0_i32_2 = arith.constant 0 : i32
    return %c0_i32, %c0_i32_0, %c0_i32_1 : i32, i32, i32
  }
  func.func @transform_3(%arg0: i32, %arg1: i32) -> (i32, i32) {
    %c0_i32 = arith.constant 0 : i32
    %c0_i32_0 = arith.constant 0 : i32
    %c0_i32_1 = arith.constant 0 : i32
    return %c0_i32, %c0_i32_0 : i32, i32
  }
  func.func @transform_4(%arg0: i32, %arg1: i32) -> (i32, i32, i32) {
    %c0_i32 = arith.constant 0 : i32
    %c0_i32_0 = arith.constant 0 : i32
    %c0_i32_1 = arith.constant 0 : i32
    %c0_i32_2 = arith.constant 0 : i32
    return %c0_i32, %c0_i32_0, %c0_i32_1 : i32, i32, i32
  }
  func.func @transform_5(%arg0: i32, %arg1: i32) -> (i32, i32, i32) {
    %c0_i32 = arith.constant 0 : i32
    %c0_i32_0 = arith.constant 0 : i32
    %c0_i32_1 = arith.constant 0 : i32
    %c0_i32_2 = arith.constant 0 : i32
    return %c0_i32, %c0_i32_0, %c0_i32_1 : i32, i32, i32
  }
  func.func @transform_6(%arg0: i32, %arg1: i32) -> (i32, i32, i32) {
    %c0_i32 = arith.constant 0 : i32
    %c0_i32_0 = arith.constant 0 : i32
    %c0_i32_1 = arith.constant 0 : i32
    %c0_i32_2 = arith.constant 0 : i32
    return %c0_i32, %c0_i32_0, %c0_i32_1 : i32, i32, i32
  }
  func.func @transform_7(%arg0: i32, %arg1: i32) -> (i32, i32, i32) {
    %c0_i32 = arith.constant 0 : i32
    %c0_i32_0 = arith.constant 0 : i32
    %c0_i32_1 = arith.constant 0 : i32
    %c0_i32_2 = arith.constant 0 : i32
    return %c0_i32, %c0_i32_0, %c0_i32_1 : i32, i32, i32
  }
  func.func @transform_8(%arg0: i32, %arg1: i32) -> (i32, i32) {
    %c0_i32 = arith.constant 0 : i32
    %c0_i32_0 = arith.constant 0 : i32
    %c0_i32_1 = arith.constant 0 : i32
    return %c0_i32, %c0_i32_0 : i32, i32
  }
  func.func @transform_9(%arg0: i32, %arg1: i32) -> (i32, i32) {
    %c0_i32 = arith.constant 0 : i32
    %c0_i32_0 = arith.constant 0 : i32
    %c0_i32_1 = arith.constant 0 : i32
    return %c0_i32, %c0_i32_0 : i32, i32
  }
  func.func @transform_10(%arg0: i32, %arg1: i32) -> (i32, i32, i32) {
    %c0_i32 = arith.constant 0 : i32
    %c0_i32_0 = arith.constant 0 : i32
    %c0_i32_1 = arith.constant 0 : i32
    return %arg0, %c0_i32, %c0_i32_0 : i32, i32, i32
  }
}

</mosaic_0001>

<llo_original>
// kernel: latent_guard_forward.1
$region0: #{latent_guard_forward.1}
  #allocation0 [shape = 'u32[]', space=smem, size = 0x4, offset = 0x4, fixed_abs, tag = 'smem constant byte address 0x4 - core index']
  #allocation1 [shape = 'u32[72,128]{1,0:T(1,128)}', space=vmem, size = 0x9000, scoped, tag = 'internal scratch']
  #allocation2 [shape = 'f32[128,128]{1,0:T(8,128)}', space=vmem, size = 0x10000, scoped, tag = 'scratch operand']
  #allocation3 [shape = 'f32[128,128]{1,0:T(8,128)}', space=vmem, size = 0x10000, scoped, tag = 'scratch operand']
  %s0 = inlined_call_operand.vmem [shape: bf16[128,768], index: 0, kind: input, shape index: {}]
  %s1 = inlined_call_operand.vmem [shape: bf16[2,128,256], index: 1, kind: input, shape index: {}]
  %s2 = inlined_call_operand.vmem [shape: bf16[2,128,256], index: 2, kind: input, shape index: {}]
  %s3 = inlined_call_operand.vmem [shape: f32[1,128], index: 3, kind: input, shape index: {}]
  %s4 = inlined_call_operand.vmem [shape: bf16[2,768,256], index: 4, kind: input, shape index: {}]
  %s5 = inlined_call_operand.vmem [shape: f32[2,1,256], index: 5, kind: input, shape index: {}]
  %s6 = inlined_call_operand.vmem [shape: bf16[2,256,128], index: 6, kind: input, shape index: {}]
  %s7 = inlined_call_operand.vmem [shape: bf16[2,256,128], index: 7, kind: input, shape index: {}]
  %s8 = inlined_call_operand.vmem [shape: f32[1,128], index: 8, kind: input, shape index: {}]
  %s9 = inlined_call_operand.vmem [shape: f32[1,128], index: 9, kind: input, shape index: {}]
  %s10 = inlined_call_operand.vmem [shape: f32[1,1,128], index: 10, kind: output, shape index: {}]
  %s11 = sld [smem:[#allocation0]]
  $region81: #{latent_guard_forward.1} parent=0
    _
  %s13 = ssub.s32 1, %s11
  %s14 = scalar_select 0, %s13, %s11
  loop: start=0, step=1, limit=4
  $region2: #{latent_guard_forward.1} parent=0 // loop_pre_header
    _
  $region3: #{latent_guard_forward.1} parent=0 // loop_header
    %s16 = sphi 0, %s20
    %p17 = scmp.ge.s32.totalorder %s16, 4
    %s23 = sphi 0, %s35
    %s24 = sphi 0, %s31
    %s25 = sphi 0, %s23
    %s26 = sphi 0, %s24
    %s27 = sphi 0, %s25
    %s28 = sphi 0, %s26
    %s38 = sphi 0, %s40
    %s41 = sphi 0, %s38
    %s42 = sphi 0, %s41
    %s58 = sphi 0, %s42
    %s62 = sphi 0, %s62
    %s64 = sphi 0, %s62
    %s65 = sphi 0, %s64
    %s79 = sphi 0, %s65
    %s83 = sphi 0, %s83
    %s85 = sphi 0, %s83
    %s86 = sphi 0, %s85
    %s100 = sphi 0, %s86
    %s104 = sphi 0, %s104
    %s106 = sphi 0, %s104
    %s107 = sphi 0, %s106
    %s121 = sphi 0, %s107
    %s125 = sphi 0, %s125
    %s127 = sphi 0, %s125
    %s128 = sphi 0, %s127
    %s142 = sphi 0, %s128
    %s146 = sphi 0, %s146
    %s148 = sphi 0, %s146
    %s149 = sphi 0, %s148
    %s163 = sphi 0, %s149
    %s167 = sphi 0, %s167
    %s169 = sphi 0, %s167
    %s170 = sphi 0, %s169
    %s184 = sphi 0, %s170
    %s188 = sphi 0, %s188
    %s190 = sphi 0, %s188
    %s191 = sphi 0, %s190
    %s205 = sphi 0, %s191
    %s209 = sphi 0, %s209
    %s211 = sphi 0, %s209
    %s212 = sphi 0, %s211
    %s226 = sphi 0, %s212
    %s230 = sphi 0, %s230
    %s232 = sphi 0, %s230
    %s233 = sphi 0, %s232
    %s247 = sphi 0, %s233
    %s253 = sphi 0, %s255
    %s256 = sphi 0, %s253
    %s257 = sphi 0, %s256
    %s273 = sphi 0, %s257
  $region4: #{latent_guard_forward.1} parent=0 // loop_header_branch
    %19 = sbr.rel (%p17) target = $region8
  $region5: #{latent_guard_forward.1} parent=0 // loop_body
    %s21 = ssub.s32 %s16, 1
    %s22 = ssub.s32 %s16, 2
    %s29 = sadd.s32 1, %s24
    %p30 = scmp.ge.s32.totalorder %s29, 2
    %s31 = scalar_select %p30, 0, %s29
    %s32 = sadd.s32 1, %s23
    %s33 = scalar_select %p30, %s32, %s23
    %p34 = scmp.ge.s32.totalorder %s33, 1
    %s35 = scalar_select %p34, 0, %s33
    %s36 = ssub.s32 %s23, %s35
    %p37 = scmp.eq.s32.totalorder %s36, 0
    %s39 = sadd.s32 %s38, 1
    %s40 = scalar_select %p37, %s38, %s39
    %p43 = pneg %p37
    %p44 = scmp.eq.s32.totalorder %s16, 1
    %p45 = por %p43, %p44
    %p46 = scmp.ne.s32.totalorder %s38, %s41
    %p47 = scmp.eq.s32.totalorder %s16, 0
    %p48 = por %p46, %p47
    %p49 = scmp.ne.s32.totalorder %s38, %s41
    %p50 = scmp.eq.s32.totalorder %s21, 1
    %p51 = por %p49, %p50
    %p52 = scmp.ne.s32.totalorder %s41, %s42
    %p53 = scmp.eq.s32.totalorder %s21, 0
    %p54 = por %p52, %p53
    %p55 = scmp.ne.s32.totalorder %s41, %s42
    %p56 = scmp.eq.s32.totalorder %s22, 1
    %p57 = por %p55, %p56
    %p59 = scmp.ne.s32.totalorder %s42, %s58
    %p60 = scmp.eq.s32.totalorder %s22, 0
    %p61 = por %p59, %p60
    %s63 = sadd.s32 %s62, 1
    %p66 = scmp.eq.s32.totalorder %s16, 1
    %p67 = scmp.ne.s32.totalorder %s62, %s64
    %p68 = scmp.eq.s32.totalorder %s16, 0
    %p69 = por %p67, %p68
    %p70 = scmp.ne.s32.totalorder %s62, %s64
    %p71 = scmp.eq.s32.totalorder %s21, 1
    %p72 = por %p70, %p71
    %p73 = scmp.ne.s32.totalorder %s64, %s65
    %p74 = scmp.eq.s32.totalorder %s21, 0
    %p75 = por %p73, %p74
    %p76 = scmp.ne.s32.totalorder %s64, %s65
    %p77 = scmp.eq.s32.totalorder %s22, 1
    %p78 = por %p76, %p77
    %p80 = scmp.ne.s32.totalorder %s65, %s79
    %p81 = scmp.eq.s32.totalorder %s22, 0
    %p82 = por %p80, %p81
    %s84 = sadd.s32 %s83, 1
    %p87 = scmp.eq.s32.totalorder %s16, 1
    %p88 = scmp.ne.s32.totalorder %s83, %s85
    %p89 = scmp.eq.s32.totalorder %s16, 0
    %p90 = por %p88, %p89
    %p91 = scmp.ne.s32.totalorder %s83, %s85
    %p92 = scmp.eq.s32.totalorder %s21, 1
    %p93 = por %p91, %p92
    %p94 = scmp.ne.s32.totalorder %s85, %s86
    %p95 = scmp.eq.s32.totalorder %s21, 0
    %p96 = por %p94, %p95
    %p97 = scmp.ne.s32.totalorder %s85, %s86
    %p98 = scmp.eq.s32.totalorder %s22, 1
    %p99 = por %p97, %p98
    %p101 = scmp.ne.s32.totalorder %s86, %s100
    %p102 = scmp.eq.s32.totalorder %s22, 0
    %p103 = por %p101, %p102
    %s105 = sadd.s32 %s104, 1
    %p108 = scmp.eq.s32.totalorder %s16, 1
    %p109 = scmp.ne.s32.totalorder %s104, %s106
    %p110 = scmp.eq.s32.totalorder %s16, 0
    %p111 = por %p109, %p110
    %p112 = scmp.ne.s32.totalorder %s104, %s106
    %p113 = scmp.eq.s32.totalorder %s21, 1
    %p114 = por %p112, %p113
    %p115 = scmp.ne.s32.totalorder %s106, %s107
    %p116 = scmp.eq.s32.totalorder %s21, 0
    %p117 = por %p115, %p116
    %p118 = scmp.ne.s32.totalorder %s106, %s107
    %p119 = scmp.eq.s32.totalorder %s22, 1
    %p120 = por %p118, %p119
    %p122 = scmp.ne.s32.totalorder %s107, %s121
    %p123 = scmp.eq.s32.totalorder %s22, 0
    %p124 = por %p122, %p123
    %s126 = sadd.s32 %s125, 1
    %p129 = scmp.eq.s32.totalorder %s16, 1
    %p130 = scmp.ne.s32.totalorder %s125, %s127
    %p131 = scmp.eq.s32.totalorder %s16, 0
    %p132 = por %p130, %p131
    %p133 = scmp.ne.s32.totalorder %s125, %s127
    %p134 = scmp.eq.s32.totalorder %s21, 1
    %p135 = por %p133, %p134
    %p136 = scmp.ne.s32.totalorder %s127, %s128
    %p137 = scmp.eq.s32.totalorder %s21, 0
    %p138 = por %p136, %p137
    %p139 = scmp.ne.s32.totalorder %s127, %s128
    %p140 = scmp.eq.s32.totalorder %s22, 1
    %p141 = por %p139, %p140
    %p143 = scmp.ne.s32.totalorder %s128, %s142
    %p144 = scmp.eq.s32.totalorder %s22, 0
    %p145 = por %p143, %p144
    %s147 = sadd.s32 %s146, 1
    %p150 = scmp.eq.s32.totalorder %s16, 1
    %p151 = scmp.ne.s32.totalorder %s146, %s148
    %p152 = scmp.eq.s32.totalorder %s16, 0
    %p153 = por %p151, %p152
    %p154 = scmp.ne.s32.totalorder %s146, %s148
    %p155 = scmp.eq.s32.totalorder %s21, 1
    %p156 = por %p154, %p155
    %p157 = scmp.ne.s32.totalorder %s148, %s149
    %p158 = scmp.eq.s32.totalorder %s21, 0
    %p159 = por %p157, %p158
    %p160 = scmp.ne.s32.totalorder %s148, %s149
    %p161 = scmp.eq.s32.totalorder %s22, 1
    %p162 = por %p160, %p161
    %p164 = scmp.ne.s32.totalorder %s149, %s163
    %p165 = scmp.eq.s32.totalorder %s22, 0
    %p166 = por %p164, %p165
    %s168 = sadd.s32 %s167, 1
    %p171 = scmp.eq.s32.totalorder %s16, 1
    %p172 = scmp.ne.s32.totalorder %s167, %s169
    %p173 = scmp.eq.s32.totalorder %s16, 0
    %p174 = por %p172, %p173
    %p175 = scmp.ne.s32.totalorder %s167, %s169
    %p176 = scmp.eq.s32.totalorder %s21, 1
    %p177 = por %p175, %p176
    %p178 = scmp.ne.s32.totalorder %s169, %s170
    %p179 = scmp.eq.s32.totalorder %s21, 0
    %p180 = por %p178, %p179
    %p181 = scmp.ne.s32.totalorder %s169, %s170
    %p182 = scmp.eq.s32.totalorder %s22, 1
    %p183 = por %p181, %p182
    %p185 = scmp.ne.s32.totalorder %s170, %s184
    %p186 = scmp.eq.s32.totalorder %s22, 0
    %p187 = por %p185, %p186
    %s189 = sadd.s32 %s188, 1
    %p192 = scmp.eq.s32.totalorder %s16, 1
    %p193 = scmp.ne.s32.totalorder %s188, %s190
    %p194 = scmp.eq.s32.totalorder %s16, 0
    %p195 = por %p193, %p194
    %p196 = scmp.ne.s32.totalorder %s188, %s190
    %p197 = scmp.eq.s32.totalorder %s21, 1
    %p198 = por %p196, %p197
    %p199 = scmp.ne.s32.totalorder %s190, %s191
    %p200 = scmp.eq.s32.totalorder %s21, 0
    %p201 = por %p199, %p200
    %p202 = scmp.ne.s32.totalorder %s190, %s191
    %p203 = scmp.eq.s32.totalorder %s22, 1
    %p204 = por %p202, %p203
    %p206 = scmp.ne.s32.totalorder %s191, %s205
    %p207 = scmp.eq.s32.totalorder %s22, 0
    %p208 = por %p206, %p207
    %s210 = sadd.s32 %s209, 1
    %p213 = scmp.eq.s32.totalorder %s16, 1
    %p214 = scmp.ne.s32.totalorder %s209, %s211
    %p215 = scmp.eq.s32.totalorder %s16, 0
    %p216 = por %p214, %p215
    %p217 = scmp.ne.s32.totalorder %s209, %s211
    %p218 = scmp.eq.s32.totalorder %s21, 1
    %p219 = por %p217, %p218
    %p220 = scmp.ne.s32.totalorder %s211, %s212
    %p221 = scmp.eq.s32.totalorder %s21, 0
    %p222 = por %p220, %p221
    %p223 = scmp.ne.s32.totalorder %s211, %s212
    %p224 = scmp.eq.s32.totalorder %s22, 1
    %p225 = por %p223, %p224
    %p227 = scmp.ne.s32.totalorder %s212, %s226
    %p228 = scmp.eq.s32.totalorder %s22, 0
    %p229 = por %p227, %p228
    %s231 = sadd.s32 %s230, 1
    %p234 = scmp.eq.s32.totalorder %s16, 1
    %p235 = scmp.ne.s32.totalorder %s230, %s232
    %p236 = scmp.eq.s32.totalorder %s16, 0
    %p237 = por %p235, %p236
    %p238 = scmp.ne.s32.totalorder %s230, %s232
    %p239 = scmp.eq.s32.totalorder %s21, 1
    %p240 = por %p238, %p239
    %p241 = scmp.ne.s32.totalorder %s232, %s233
    %p242 = scmp.eq.s32.totalorder %s21, 0
    %p243 = por %p241, %p242
    %p244 = scmp.ne.s32.totalorder %s232, %s233
    %p245 = scmp.eq.s32.totalorder %s22, 1
    %p246 = por %p244, %p245
    %p248 = scmp.ne.s32.totalorder %s233, %s247
    %p249 = scmp.eq.s32.totalorder %s22, 0
    %p250 = por %p248, %p249
    %s251 = ssub.s32 %s23, %s35
    %p252 = scmp.eq.s32.totalorder %s251, 0
    %s254 = sadd.s32 %s253, 1
    %s255 = scalar_select %p252, %s253, %s254
    %p258 = pneg %p252
    %p259 = scmp.eq.s32.totalorder %s16, 1
    %p260 = por %p258, %p259
    %p261 = scmp.ne.s32.totalorder %s253, %s256
    %p262 = scmp.eq.s32.totalorder %s16, 0
    %p263 = por %p261, %p262
    %p264 = scmp.ne.s32.totalorder %s253, %s256
    %p265 = scmp.eq.s32.totalorder %s21, 1
    %p266 = por %p264, %p265
    %p267 = scmp.ne.s32.totalorder %s256, %s257
    %p268 = scmp.eq.s32.totalorder %s21, 0
    %p269 = por %p267, %p268
    %p270 = scmp.ne.s32.totalorder %s256, %s257
    %p271 = scmp.eq.s32.totalorder %s22, 1
    %p272 = por %p270, %p271
    %p274 = scmp.ne.s32.totalorder %s257, %s273
    %p275 = scmp.eq.s32.totalorder %s22, 0
    %p276 = por %p274, %p275
    %p277 = scmp.le.s32.totalorder 1, %s16
    %p278 = scmp.lt.s32.totalorder %s16, 3
    %p279 = pnand %p277, %p278
    %p280 = pneg %p279
    // Predicated region
    $region9: #{latent_guard_forward.1} parent=5 // pred_check
      _
    $region10: #{latent_guard_forward.1} parent=5 // pred_check_branch
      %282 = sbr.rel (%p279) target = $region12
    $region11: #{latent_guard_forward.1} parent=5 // pred_region
      %s283 = ssub.s32 %s16, 1
      // Predicated region
      $region13: #{latent_guard_forward.1} parent=11 // pred_check
        %p284 = pneg %p54
      $region14: #{latent_guard_forward.1} parent=11 // pred_check_branch
        %286 = sbr.rel (%p284) target = $region16
      $region15: #{latent_guard_forward.1} parent=11 // pred_region
        %s287 = smul.u32 16, %s25
        %p288 = scmp.lt.s32.totalorder %s287, 15
        %s289 = scalar_select %p288, %s287, 15
        %s290 = smul.addr %s289, 6
        %s291 = smul.addr %s290, 4
        %s292 = scalar_lea.vmem %s0, %s291
        %s293 = smul.u32 16, %s25
      $region16: #{latent_guard_forward.1} parent=11 // pred_fallthru
        _
      // Predicated region
      $region17: #{latent_guard_forward.1} parent=11 // pred_check
        %p294 = pneg %p75
      $region18: #{latent_guard_forward.1} parent=11 // pred_check_branch
        %296 = sbr.rel (%p294) target = $region20
      $region19: #{latent_guard_forward.1} parent=11 // pred_region
        _
      $region20: #{latent_guard_forward.1} parent=11 // pred_fallthru
        _
      // Predicated region
      $region21: #{latent_guard_forward.1} parent=11 // pred_check
        %p297 = pneg %p96
      $region22: #{latent_guard_forward.1} parent=11 // pred_check_branch
        %299 = sbr.rel (%p297) target = $region24
      $region23: #{latent_guard_forward.1} parent=11 // pred_region
        _
      $region24: #{latent_guard_forward.1} parent=11 // pred_fallthru
        _
      // Predicated region
      $region25: #{latent_guard_forward.1} parent=11 // pred_check
        %p300 = pneg %p117
      $region26: #{latent_guard_forward.1} parent=11 // pred_check_branch
        %302 = sbr.rel (%p300) target = $region28
      $region27: #{latent_guard_forward.1} parent=11 // pred_region
        _
      $region28: #{latent_guard_forward.1} parent=11 // pred_fallthru
        _
      // Predicated region
      $region29: #{latent_guard_forward.1} parent=11 // pred_check
        %p303 = pneg %p138
      $region30: #{latent_guard_forward.1} parent=11 // pred_check_branch
        %305 = sbr.rel (%p303) target = $region32
      $region31: #{latent_guard_forward.1} parent=11 // pred_region
        _
      $region32: #{latent_guard_forward.1} parent=11 // pred_fallthru
        _
      // Predicated region
      $region33: #{latent_guard_forward.1} parent=11 // pred_check
        %p306 = pneg %p159
      $region34: #{latent_guard_forward.1} parent=11 // pred_check_branch
        %308 = sbr.rel (%p306) target = $region36
      $region35: #{latent_guard_forward.1} parent=11 // pred_region
        _
      $region36: #{latent_guard_forward.1} parent=11 // pred_fallthru
        _
      // Predicated region
      $region37: #{latent_guard_forward.1} parent=11 // pred_check
        %p309 = pneg %p180
      $region38: #{latent_guard_forward.1} parent=11 // pred_check_branch
        %311 = sbr.rel (%p309) target = $region40
      $region39: #{latent_guard_forward.1} parent=11 // pred_region
        _
      $region40: #{latent_guard_forward.1} parent=11 // pred_fallthru
        _
      // Predicated region
      $region41: #{latent_guard_forward.1} parent=11 // pred_check
        %p312 = pneg %p201
      $region42: #{latent_guard_forward.1} parent=11 // pred_check_branch
        %314 = sbr.rel (%p312) target = $region44
      $region43: #{latent_guard_forward.1} parent=11 // pred_region
        _
      $region44: #{latent_guard_forward.1} parent=11 // pred_fallthru
        _
      // Predicated region
      $region45: #{latent_guard_forward.1} parent=11 // pred_check
        %p315 = pneg %p222
      $region46: #{latent_guard_forward.1} parent=11 // pred_check_branch
        %317 = sbr.rel (%p315) target = $region48
      $region47: #{latent_guard_forward.1} parent=11 // pred_region
        _
      $region48: #{latent_guard_forward.1} parent=11 // pred_fallthru
        _
      // Predicated region
      $region49: #{latent_guard_forward.1} parent=11 // pred_check
        %p318 = pneg %p243
      $region50: #{latent_guard_forward.1} parent=11 // pred_check_branch
        %320 = sbr.rel (%p318) target = $region52
      $region51: #{latent_guard_forward.1} parent=11 // pred_region
        _
      $region52: #{latent_guard_forward.1} parent=11 // pred_fallthru
        _
    $region12: #{latent_guard_forward.1} parent=5 // pred_fallthru
      _
    %p321 = scmp.lt.s32.totalorder %s16, 2
    // Predicated region
    $region53: #{latent_guard_forward.1} parent=5 // pred_check
      %p322 = pneg %p321
    $region54: #{latent_guard_forward.1} parent=5 // pred_check_branch
      %324 = sbr.rel (%p322) target = $region56
    $region55: #{latent_guard_forward.1} parent=5 // pred_region
      _
    $region56: #{latent_guard_forward.1} parent=5 // pred_fallthru
      _
    %p325 = scmp.le.s32.totalorder 1, %s16
    %p326 = scmp.lt.s32.totalorder %s16, 3
    %p327 = pnand %p325, %p326
    %p328 = pneg %p327
    // Predicated region
    $region57: #{latent_guard_forward.1} parent=5 // pred_check
      _
    $region58: #{latent_guard_forward.1} parent=5 // pred_check_branch
      %330 = sbr.rel (%p327) target = $region60
    $region59: #{latent_guard_forward.1} parent=5 // pred_region
      %s331 = ssub.s32 %s16, 1
      %s332 = smul.u32 16, %s25
      %p333 = scmp.lt.s32.totalorder %s332, 15
      %s334 = scalar_select %p333, %s332, 15
      %s335 = smul.addr %s334, 6
      %s336 = smul.addr %s335, 4
      %s337 = scalar_lea.vmem %s0, %s336
      %p338 = pneg %p54
      %p339 = pneg %p51
      %p340 = pneg %p75
      %p341 = pneg %p72
      %p342 = pneg %p96
      %p343 = pneg %p93
      %p344 = pneg %p117
      %p345 = pneg %p114
      %p346 = pneg %p138
      %p347 = pneg %p135
      %p348 = pneg %p159
      %p349 = pneg %p156
      %p350 = pneg %p180
      %p351 = pneg %p177
      %p352 = pneg %p201
      %p353 = pneg %p198
      %p354 = pneg %p222
      %p355 = pneg %p219
      %p356 = pneg %p243
      %p357 = pneg %p240
      %p358 = pneg %p269
      %p359 = pneg %p266
      %p360 = scmp.lt.s32.totalorder %s25, 0
      %s361 = scalar_select %p360, %s25, 0
      %s362 = scalar_lea.vmem %s10, %s361
      %s363 = smul.u32 16, %s25
      %p364 = scmp.lt.s32.totalorder %s363, 15
      %s365 = scalar_select %p364, %s363, 15
      %s366 = smul.addr %s365, 6
      %s367 = smul.addr %s366, 4
      %s368 = scalar_lea.vmem %s0, %s367
      %s369 = smul.u32 16, %s25
      %p370 = scmp.lt.s32.totalorder %s25, 0
      %s371 = scalar_select %p370, %s25, 0
      %s372 = scalar_lea.vmem %s10, %s371
      %p373 = scmp.eq.s32.totalorder %s26, 0
      // Predicated region
      $region61: #{latent_guard_forward.1} parent=59 // pred_check
        %p374 = pneg %p373
      $region62: #{latent_guard_forward.1} parent=59 // pred_check_branch
        %376 = sbr.rel (%p374) target = $region64
      $region63: #{latent_guard_forward.1} parent=59 // pred_region
        %v377 = vld [vmem:[%s8] sm:$0x1]
        %v379 = vperm.slane %v377, 0
        %381 = vst [vmem:[#allocation2] sm:$0xff] %v379
        %382 = vst [vmem:[#allocation2 + $0x8] sm:$0xff] %v379
        %383 = vst [vmem:[#allocation2 + $0x10] sm:$0xff] %v379
        %384 = vst [vmem:[#allocation2 + $0x18] sm:$0xff] %v379
        %385 = vst [vmem:[#allocation2 + $0x20] sm:$0xff] %v379
        %386 = vst [vmem:[#allocation2 + $0x28] sm:$0xff] %v379
        %387 = vst [vmem:[#allocation2 + $0x30] sm:$0xff] %v379
        %388 = vst [vmem:[#allocation2 + $0x38] sm:$0xff] %v379
        %389 = vst [vmem:[#allocation2 + $0x40] sm:$0xff] %v379
        %390 = vst [vmem:[#allocation2 + $0x48] sm:$0xff] %v379
        %391 = vst [vmem:[#allocation2 + $0x50] sm:$0xff] %v379
        %392 = vst [vmem:[#allocation2 + $0x58] sm:$0xff] %v379
        %393 = vst [vmem:[#allocation2 + $0x60] sm:$0xff] %v379
        %394 = vst [vmem:[#allocation2 + $0x68] sm:$0xff] %v379
        %395 = vst [vmem:[#allocation2 + $0x70] sm:$0xff] %v379
        %396 = vst [vmem:[#allocation2 + $0x78] sm:$0xff] %v379
        %v397 = vld [vmem:[%s9] sm:$0x1]
        %v399 = vperm.slane %v397, 0
        %401 = vst [vmem:[#allocation3] sm:$0xff] %v399
        %402 = vst [vmem:[#allocation3 + $0x8] sm:$0xff] %v399
        %403 = vst [vmem:[#allocation3 + $0x10] sm:$0xff] %v399
        %404 = vst [vmem:[#allocation3 + $0x18] sm:$0xff] %v399
        %405 = vst [vmem:[#allocation3 + $0x20] sm:$0xff] %v399
        %406 = vst [vmem:[#allocation3 + $0x28] sm:$0xff] %v399
        %407 = vst [vmem:[#allocation3 + $0x30] sm:$0xff] %v399
        %408 = vst [vmem:[#allocation3 + $0x38] sm:$0xff] %v399
        %409 = vst [vmem:[#allocation3 + $0x40] sm:$0xff] %v399
        %410 = vst [vmem:[#allocation3 + $0x48] sm:$0xff] %v399
        %411 = vst [vmem:[#allocation3 + $0x50] sm:$0xff] %v399
        %412 = vst [vmem:[#allocation3 + $0x58] sm:$0xff] %v399
        %413 = vst [vmem:[#allocation3 + $0x60] sm:$0xff] %v399
        %414 = vst [vmem:[#allocation3 + $0x68] sm:$0xff] %v399
        %415 = vst [vmem:[#allocation3 + $0x70] sm:$0xff] %v399
        %416 = vst [vmem:[#allocation3 + $0x78] sm:$0xff] %v399
      $region64: #{latent_guard_forward.1} parent=59 // pred_fallthru
        _
      %v417 = vld [vmem:[%s368] sm:$0xff]
      %v418 = vld [vmem:[%s368 + $0x8] sm:$0xff]
      %v419 = vld [vmem:[%s368 + $0x10] sm:$0xff]
      %v420 = vld [vmem:[%s368 + $0x18] sm:$0xff]
      %v421 = vld [vmem:[%s368 + $0x20] sm:$0xff]
      %v422 = vld [vmem:[%s368 + $0x28] sm:$0xff]
      %v423 = vld [vmem:[%s368 + $0x30] sm:$0xff]
      %v424 = vld [vmem:[%s368 + $0x38] sm:$0xff]
      %v425 = vld [vmem:[%s368 + $0x40] sm:$0xff]
      %v426 = vld [vmem:[%s368 + $0x48] sm:$0xff]
      %v427 = vld [vmem:[%s368 + $0x50] sm:$0xff]
      %v428 = vld [vmem:[%s368 + $0x58] sm:$0xff]
      %v429 = vld [vmem:[%s368 + $0x60] sm:$0xff]
      %v430 = vld [vmem:[%s368 + $0x68] sm:$0xff]
      %v431 = vld [vmem:[%s368 + $0x70] sm:$0xff]
      %v432 = vld [vmem:[%s368 + $0x78] sm:$0xff]
      %v433 = vld [vmem:[%s368 + $0x80] sm:$0xff]
      %v434 = vld [vmem:[%s368 + $0x88] sm:$0xff]
      %v435 = vld [vmem:[%s368 + $0x90] sm:$0xff]
      %v436 = vld [vmem:[%s368 + $0x98] sm:$0xff]
      %v437 = vld [vmem:[%s368 + $0xa0] sm:$0xff]
      %v438 = vld [vmem:[%s368 + $0xa8] sm:$0xff]
      %v439 = vld [vmem:[%s368 + $0xb0] sm:$0xff]
      %v440 = vld [vmem:[%s368 + $0xb8] sm:$0xff]
      %v441 = vld [vmem:[%s368 + $0xc0] sm:$0xff]
      %v442 = vld [vmem:[%s368 + $0xc8] sm:$0xff]
      %v443 = vld [vmem:[%s368 + $0xd0] sm:$0xff]
      %v444 = vld [vmem:[%s368 + $0xd8] sm:$0xff]
      %v445 = vld [vmem:[%s368 + $0xe0] sm:$0xff]
      %v446 = vld [vmem:[%s368 + $0xe8] sm:$0xff]
      %v447 = vld [vmem:[%s368 + $0xf0] sm:$0xff]
      %v448 = vld [vmem:[%s368 + $0xf8] sm:$0xff]
      %v449 = vld [vmem:[%s368 + $0x100] sm:$0xff]
      %v450 = vld [vmem:[%s368 + $0x108] sm:$0xff]
      %v451 = vld [vmem:[%s368 + $0x110] sm:$0xff]
      %v452 = vld [vmem:[%s368 + $0x118] sm:$0xff]
      %v453 = vld [vmem:[%s368 + $0x120] sm:$0xff]
      %v454 = vld [vmem:[%s368 + $0x128] sm:$0xff]
      %v455 = vld [vmem:[%s368 + $0x130] sm:$0xff]
      %v456 = vld [vmem:[%s368 + $0x138] sm:$0xff]
      %v457 = vld [vmem:[%s368 + $0x140] sm:$0xff]
      %v458 = vld [vmem:[%s368 + $0x148] sm:$0xff]
      %v459 = vld [vmem:[%s368 + $0x150] sm:$0xff]
      %v460 = vld [vmem:[%s368 + $0x158] sm:$0xff]
      %v461 = vld [vmem:[%s368 + $0x160] sm:$0xff]
      %v462 = vld [vmem:[%s368 + $0x168] sm:$0xff]
      %v463 = vld [vmem:[%s368 + $0x170] sm:$0xff]
      %v464 = vld [vmem:[%s368 + $0x178] sm:$0xff]
      %s465 = smul.u32 %s26, 32
      %s466 = smul.addr %s465, 4
      %s467 = scalar_lea.vmem %s1, %s466
      %v468 = vld [vmem:[%s467] sm:$0xff]
      %v469 = vld [vmem:[%s467 + $0x8] sm:$0xff]
      %v470 = vld [vmem:[%s467 + $0x10] sm:$0xff]
      %v471 = vld [vmem:[%s467 + $0x18] sm:$0xff]
      %v472 = vld [vmem:[%s467 + $0x20] sm:$0xff]
      %v473 = vld [vmem:[%s467 + $0x28] sm:$0xff]
      %v474 = vld [vmem:[%s467 + $0x30] sm:$0xff]
      %v475 = vld [vmem:[%s467 + $0x38] sm:$0xff]
      %v476 = vld [vmem:[%s467 + $0x40] sm:$0xff]
      %v477 = vld [vmem:[%s467 + $0x48] sm:$0xff]
      %v478 = vld [vmem:[%s467 + $0x50] sm:$0xff]
      %v479 = vld [vmem:[%s467 + $0x58] sm:$0xff]
      %v480 = vld [vmem:[%s467 + $0x60] sm:$0xff]
      %v481 = vld [vmem:[%s467 + $0x68] sm:$0xff]
      %v482 = vld [vmem:[%s467 + $0x70] sm:$0xff]
      %v483 = vld [vmem:[%s467 + $0x78] sm:$0xff]
      %s484 = smul.addr %s465, 4
      %s485 = scalar_lea.vmem %s2, %s484
      %v486 = vld [vmem:[%s485] sm:$0xff]
      %v487 = vld [vmem:[%s485 + $0x8] sm:$0xff]
      %v488 = vld [vmem:[%s485 + $0x10] sm:$0xff]
      %v489 = vld [vmem:[%s485 + $0x18] sm:$0xff]
      %v490 = vld [vmem:[%s485 + $0x20] sm:$0xff]
      %v491 = vld [vmem:[%s485 + $0x28] sm:$0xff]
      %v492 = vld [vmem:[%s485 + $0x30] sm:$0xff]
      %v493 = vld [vmem:[%s485 + $0x38] sm:$0xff]
      %v494 = vld [vmem:[%s485 + $0x40] sm:$0xff]
      %v495 = vld [vmem:[%s485 + $0x48] sm:$0xff]
      %v496 = vld [vmem:[%s485 + $0x50] sm:$0xff]
      %v497 = vld [vmem:[%s485 + $0x58] sm:$0xff]
      %v498 = vld [vmem:[%s485 + $0x60] sm:$0xff]
      %v499 = vld [vmem:[%s485 + $0x68] sm:$0xff]
      %v500 = vld [vmem:[%s485 + $0x70] sm:$0xff]
      %v501 = vld [vmem:[%s485 + $0x78] sm:$0xff]
      %v502 = vld [vmem:[%s3] sm:$0x1]
      %s503 = smul.u32 %s26, 192
      %s504 = smul.addr %s503, 4
      %s505 = scalar_lea.vmem %s4, %s504
      %v506 = vld [vmem:[%s505] sm:$0xff]
      %v507 = vld [vmem:[%s505 + $0x8] sm:$0xff]
      %v508 = vld [vmem:[%s505 + $0x10] sm:$0xff]
      %v509 = vld [vmem:[%s505 + $0x18] sm:$0xff]
      %v510 = vld [vmem:[%s505 + $0x20] sm:$0xff]
      %v511 = vld [vmem:[%s505 + $0x28] sm:$0xff]
      %v512 = vld [vmem:[%s505 + $0x30] sm:$0xff]
      %v513 = vld [vmem:[%s505 + $0x38] sm:$0xff]
      %v514 = vld [vmem:[%s505 + $0x40] sm:$0xff]
      %v515 = vld [vmem:[%s505 + $0x48] sm:$0xff]
      %v516 = vld [vmem:[%s505 + $0x50] sm:$0xff]
      %v517 = vld [vmem:[%s505 + $0x58] sm:$0xff]
      %v518 = vld [vmem:[%s505 + $0x60] sm:$0xff]
      %v519 = vld [vmem:[%s505 + $0x68] sm:$0xff]
      %v520 = vld [vmem:[%s505 + $0x70] sm:$0xff]
      %v521 = vld [vmem:[%s505 + $0x78] sm:$0xff]
      %v522 = vld [vmem:[%s505 + $0x80] sm:$0xff]
      %v523 = vld [vmem:[%s505 + $0x88] sm:$0xff]
      %v524 = vld [vmem:[%s505 + $0x90] sm:$0xff]
      %v525 = vld [vmem:[%s505 + $0x98] sm:$0xff]
      %v526 = vld [vmem:[%s505 + $0xa0] sm:$0xff]
      %v527 = vld [vmem:[%s505 + $0xa8] sm:$0xff]
      %v528 = vld [vmem:[%s505 + $0xb0] sm:$0xff]
      %v529 = vld [vmem:[%s505 + $0xb8] sm:$0xff]
      %v530 = vld [vmem:[%s505 + $0xc0] sm:$0xff]
      %v531 = vld [vmem:[%s505 + $0xc8] sm:$0xff]
      %v532 = vld [vmem:[%s505 + $0xd0] sm:$0xff]
      %v533 = vld [vmem:[%s505 + $0xd8] sm:$0xff]
      %v534 = vld [vmem:[%s505 + $0xe0] sm:$0xff]
      %v535 = vld [vmem:[%s505 + $0xe8] sm:$0xff]
      %v536 = vld [vmem:[%s505 + $0xf0] sm:$0xff]
      %v537 = vld [vmem:[%s505 + $0xf8] sm:$0xff]
      %v538 = vld [vmem:[%s505 + $0x100] sm:$0xff]
      %v539 = vld [vmem:[%s505 + $0x108] sm:$0xff]
      %v540 = vld [vmem:[%s505 + $0x110] sm:$0xff]
      %v541 = vld [vmem:[%s505 + $0x118] sm:$0xff]
      %v542 = vld [vmem:[%s505 + $0x120] sm:$0xff]
      %v543 = vld [vmem:[%s505 + $0x128] sm:$0xff]
      %v544 = vld [vmem:[%s505 + $0x130] sm:$0xff]
      %v545 = vld [vmem:[%s505 + $0x138] sm:$0xff]
      %v546 = vld [vmem:[%s505 + $0x140] sm:$0xff]
      %v547 = vld [vmem:[%s505 + $0x148] sm:$0xff]
      %v548 = vld [vmem:[%s505 + $0x150] sm:$0xff]
      %v549 = vld [vmem:[%s505 + $0x158] sm:$0xff]
      %v550 = vld [vmem:[%s505 + $0x160] sm:$0xff]
      %v551 = vld [vmem:[%s505 + $0x168] sm:$0xff]
      %v552 = vld [vmem:[%s505 + $0x170] sm:$0xff]
      %v553 = vld [vmem:[%s505 + $0x178] sm:$0xff]
      %v554 = vld [vmem:[%s505 + $0x180] sm:$0xff]
      %v555 = vld [vmem:[%s505 + $0x188] sm:$0xff]
      %v556 = vld [vmem:[%s505 + $0x190] sm:$0xff]
      %v557 = vld [vmem:[%s505 + $0x198] sm:$0xff]
      %v558 = vld [vmem:[%s505 + $0x1a0] sm:$0xff]
      %v559 = vld [vmem:[%s505 + $0x1a8] sm:$0xff]
      %v560 = vld [vmem:[%s505 + $0x1b0] sm:$0xff]
      %v561 = vld [vmem:[%s505 + $0x1b8] sm:$0xff]
      %v562 = vld [vmem:[%s505 + $0x1c0] sm:$0xff]
      %v563 = vld [vmem:[%s505 + $0x1c8] sm:$0xff]
      %v564 = vld [vmem:[%s505 + $0x1d0] sm:$0xff]
      %v565 = vld [vmem:[%s505 + $0x1d8] sm:$0xff]
      %v566 = vld [vmem:[%s505 + $0x1e0] sm:$0xff]
      %v567 = vld [vmem:[%s505 + $0x1e8] sm:$0xff]
      %v568 = vld [vmem:[%s505 + $0x1f0] sm:$0xff]
      %v569 = vld [vmem:[%s505 + $0x1f8] sm:$0xff]
      %v570 = vld [vmem:[%s505 + $0x200] sm:$0xff]
      %v571 = vld [vmem:[%s505 + $0x208] sm:$0xff]
      %v572 = vld [vmem:[%s505 + $0x210] sm:$0xff]
      %v573 = vld [vmem:[%s505 + $0x218] sm:$0xff]
      %v574 = vld [vmem:[%s505 + $0x220] sm:$0xff]
      %v575 = vld [vmem:[%s505 + $0x228] sm:$0xff]
      %v576 = vld [vmem:[%s505 + $0x230] sm:$0xff]
      %v577 = vld [vmem:[%s505 + $0x238] sm:$0xff]
      %v578 = vld [vmem:[%s505 + $0x240] sm:$0xff]
      %v579 = vld [vmem:[%s505 + $0x248] sm:$0xff]
      %v580 = vld [vmem:[%s505 + $0x250] sm:$0xff]
      %v581 = vld [vmem:[%s505 + $0x258] sm:$0xff]
      %v582 = vld [vmem:[%s505 + $0x260] sm:$0xff]
      %v583 = vld [vmem:[%s505 + $0x268] sm:$0xff]
      %v584 = vld [vmem:[%s505 + $0x270] sm:$0xff]
      %v585 = vld [vmem:[%s505 + $0x278] sm:$0xff]
      %v586 = vld [vmem:[%s505 + $0x280] sm:$0xff]
      %v587 = vld [vmem:[%s505 + $0x288] sm:$0xff]
      %v588 = vld [vmem:[%s505 + $0x290] sm:$0xff]
      %v589 = vld [vmem:[%s505 + $0x298] sm:$0xff]
      %v590 = vld [vmem:[%s505 + $0x2a0] sm:$0xff]
      %v591 = vld [vmem:[%s505 + $0x2a8] sm:$0xff]
      %v592 = vld [vmem:[%s505 + $0x2b0] sm:$0xff]
      %v593 = vld [vmem:[%s505 + $0x2b8] sm:$0xff]
      %v594 = vld [vmem:[%s505 + $0x2c0] sm:$0xff]
      %v595 = vld [vmem:[%s505 + $0x2c8] sm:$0xff]
      %v596 = vld [vmem:[%s505 + $0x2d0] sm:$0xff]
      %v597 = vld [vmem:[%s505 + $0x2d8] sm:$0xff]
      %v598 = vld [vmem:[%s505 + $0x2e0] sm:$0xff]
      %v599 = vld [vmem:[%s505 + $0x2e8] sm:$0xff]
      %v600 = vld [vmem:[%s505 + $0x2f0] sm:$0xff]
      %v601 = vld [vmem:[%s505 + $0x2f8] sm:$0xff]
      %s602 = smul.u32 %s26, 2
      %s603 = scalar_lea.vmem %s5, %s602
      %v604 = vld [vmem:[%s603] sm:$0x3]
      %v606 = vperm.slane %v604, 0
      %v607 = vperm.slane %v604, 1
      %v658 = vunpack.c.l.b16 %v417
      %v659 = vunpack.c.h.b16 %v417
      %v660 = vunpack.c.l.b16 %v418
      %v661 = vunpack.c.h.b16 %v418
      %v662 = vunpack.c.l.b16 %v419
      %v663 = vunpack.c.h.b16 %v419
      %v664 = vunpack.c.l.b16 %v420
      %v665 = vunpack.c.h.b16 %v420
      %v666 = vunpack.c.l.b16 %v421
      %v667 = vunpack.c.h.b16 %v421
      %v668 = vunpack.c.l.b16 %v422
      %v669 = vunpack.c.h.b16 %v422
      %v670 = vunpack.c.l.b16 %v423
      %v671 = vunpack.c.h.b16 %v423
      %v672 = vunpack.c.l.b16 %v424
      %v673 = vunpack.c.h.b16 %v424
      %v674 = vunpack.c.l.b16 %v425
      %v675 = vunpack.c.h.b16 %v425
      %v676 = vunpack.c.l.b16 %v426
      %v677 = vunpack.c.h.b16 %v426
      %v678 = vunpack.c.l.b16 %v427
      %v679 = vunpack.c.h.b16 %v427
      %v680 = vunpack.c.l.b16 %v428
      %v681 = vunpack.c.h.b16 %v428
      %v682 = vunpack.c.l.b16 %v429
      %v683 = vunpack.c.h.b16 %v429
      %v684 = vunpack.c.l.b16 %v430
      %v685 = vunpack.c.h.b16 %v430
      %v686 = vunpack.c.l.b16 %v431
      %v687 = vunpack.c.h.b16 %v431
      %v688 = vunpack.c.l.b16 %v432
      %v689 = vunpack.c.h.b16 %v432
      %v690 = vunpack.c.l.b16 %v433
      %v691 = vunpack.c.h.b16 %v433
      %v692 = vunpack.c.l.b16 %v434
      %v693 = vunpack.c.h.b16 %v434
      %v694 = vunpack.c.l.b16 %v435
      %v695 = vunpack.c.h.b16 %v435
      %v696 = vunpack.c.l.b16 %v436
      %v697 = vunpack.c.h.b16 %v436
      %v698 = vunpack.c.l.b16 %v437
      %v699 = vunpack.c.h.b16 %v437
      %v700 = vunpack.c.l.b16 %v438
      %v701 = vunpack.c.h.b16 %v438
      %v702 = vunpack.c.l.b16 %v439
      %v703 = vunpack.c.h.b16 %v439
      %v704 = vunpack.c.l.b16 %v440
      %v705 = vunpack.c.h.b16 %v440
      %v706 = vunpack.c.l.b16 %v441
      %v707 = vunpack.c.h.b16 %v441
      %v708 = vunpack.c.l.b16 %v442
      %v709 = vunpack.c.h.b16 %v442
      %v710 = vunpack.c.l.b16 %v443
      %v711 = vunpack.c.h.b16 %v443
      %v712 = vunpack.c.l.b16 %v444
      %v713 = vunpack.c.h.b16 %v444
      %v714 = vunpack.c.l.b16 %v445
      %v715 = vunpack.c.h.b16 %v445
      %v716 = vunpack.c.l.b16 %v446
      %v717 = vunpack.c.h.b16 %v446
      %v718 = vunpack.c.l.b16 %v447
      %v719 = vunpack.c.h.b16 %v447
      %v720 = vunpack.c.l.b16 %v448
      %v721 = vunpack.c.h.b16 %v448
      %v722 = vunpack.c.l.b16 %v449
      %v723 = vunpack.c.h.b16 %v449
      %v724 = vunpack.c.l.b16 %v450
      %v725 = vunpack.c.h.b16 %v450
      %v726 = vunpack.c.l.b16 %v451
      %v727 = vunpack.c.h.b16 %v451
      %v728 = vunpack.c.l.b16 %v452
      %v729 = vunpack.c.h.b16 %v452
      %v730 = vunpack.c.l.b16 %v453
      %v731 = vunpack.c.h.b16 %v453
      %v732 = vunpack.c.l.b16 %v454
      %v733 = vunpack.c.h.b16 %v454
      %v734 = vunpack.c.l.b16 %v455
      %v735 = vunpack.c.h.b16 %v455
      %v736 = vunpack.c.l.b16 %v456
      %v737 = vunpack.c.h.b16 %v456
      %v738 = vunpack.c.l.b16 %v457
      %v739 = vunpack.c.h.b16 %v457
      %v740 = vunpack.c.l.b16 %v458
      %v741 = vunpack.c.h.b16 %v458
      %v742 = vunpack.c.l.b16 %v459
      %v743 = vunpack.c.h.b16 %v459
      %v744 = vunpack.c.l.b16 %v460
      %v745 = vunpack.c.h.b16 %v460
      %v746 = vunpack.c.l.b16 %v461
      %v747 = vunpack.c.h.b16 %v461
      %v748 = vunpack.c.l.b16 %v462
      %v749 = vunpack.c.h.b16 %v462
      %v750 = vunpack.c.l.b16 %v463
      %v751 = vunpack.c.h.b16 %v463
      %v752 = vunpack.c.l.b16 %v464
      %v753 = vunpack.c.h.b16 %v464
      %v754 = vpack.c.b16 %v664, %v658
      %v755 = vpack.c.b16 %v665, %v659
      %v756 = vpack.c.b16 %v666, %v660
      %v757 = vpack.c.b16 %v667, %v661
      %v758 = vpack.c.b16 %v668, %v662
      %v759 = vpack.c.b16 %v669, %v663
      %v760 = vpack.c.b16 %v676, %v670
      %v761 = vpack.c.b16 %v677, %v671
      %v762 = vpack.c.b16 %v678, %v672
      %v763 = vpack.c.b16 %v679, %v673
      %v764 = vpack.c.b16 %v680, %v674
      %v765 = vpack.c.b16 %v681, %v675
      %v766 = vpack.c.b16 %v688, %v682
      %v767 = vpack.c.b16 %v689, %v683
      %v768 = vpack.c.b16 %v690, %v684
      %v769 = vpack.c.b16 %v691, %v685
      %v770 = vpack.c.b16 %v692, %v686
      %v771 = vpack.c.b16 %v693, %v687
      %v772 = vpack.c.b16 %v700, %v694
      %v773 = vpack.c.b16 %v701, %v695
      %v774 = vpack.c.b16 %v702, %v696
      %v775 = vpack.c.b16 %v703, %v697
      %v776 = vpack.c.b16 %v704, %v698
      %v777 = vpack.c.b16 %v705, %v699
      %v778 = vpack.c.b16 %v712, %v706
      %v779 = vpack.c.b16 %v713, %v707
      %v780 = vpack.c.b16 %v714, %v708
      %v781 = vpack.c.b16 %v715, %v709
      %v782 = vpack.c.b16 %v716, %v710
      %v783 = vpack.c.b16 %v717, %v711
      %v784 = vpack.c.b16 %v724, %v718
      %v785 = vpack.c.b16 %v725, %v719
      %v786 = vpack.c.b16 %v726, %v720
      %v787 = vpack.c.b16 %v727, %v721
      %v788 = vpack.c.b16 %v728, %v722
      %v789 = vpack.c.b16 %v729, %v723
      %v790 = vpack.c.b16 %v736, %v730
      %v791 = vpack.c.b16 %v737, %v731
      %v792 = vpack.c.b16 %v738, %v732
      %v793 = vpack.c.b16 %v739, %v733
      %v794 = vpack.c.b16 %v740, %v734
      %v795 = vpack.c.b16 %v741, %v735
      %v796 = vpack.c.b16 %v748, %v742
      %v797 = vpack.c.b16 %v749, %v743
      %v798 = vpack.c.b16 %v750, %v744
      %v799 = vpack.c.b16 %v751, %v745
      %v800 = vpack.c.b16 %v752, %v746
      %v801 = vpack.c.b16 %v753, %v747
      %v946 = vunpack.c.l.b16 %v506
      %v947 = vunpack.c.h.b16 %v506
      %v948 = vunpack.c.l.b16 %v507
      %v949 = vunpack.c.h.b16 %v507
      %v950 = vunpack.c.l.b16 %v508
      %v951 = vunpack.c.h.b16 %v508
      %v952 = vunpack.c.l.b16 %v509
      %v953 = vunpack.c.h.b16 %v509
      %v954 = vunpack.c.l.b16 %v510
      %v955 = vunpack.c.h.b16 %v510
      %v956 = vunpack.c.l.b16 %v511
      %v957 = vunpack.c.h.b16 %v511
      %v958 = vunpack.c.l.b16 %v512
      %v959 = vunpack.c.h.b16 %v512
      %v960 = vunpack.c.l.b16 %v513
      %v961 = vunpack.c.h.b16 %v513
      %v962 = vunpack.c.l.b16 %v514
      %v963 = vunpack.c.h.b16 %v514
      %v964 = vunpack.c.l.b16 %v515
      %v965 = vunpack.c.h.b16 %v515
      %v966 = vunpack.c.l.b16 %v516
      %v967 = vunpack.c.h.b16 %v516
      %v968 = vunpack.c.l.b16 %v517
      %v969 = vunpack.c.h.b16 %v517
      %v970 = vunpack.c.l.b16 %v518
      %v971 = vunpack.c.h.b16 %v518
      %v972 = vunpack.c.l.b16 %v519
      %v973 = vunpack.c.h.b16 %v519
      %v974 = vunpack.c.l.b16 %v520
      %v975 = vunpack.c.h.b16 %v520
      %v976 = vunpack.c.l.b16 %v521
      %v977 = vunpack.c.h.b16 %v521
      %v978 = vunpack.c.l.b16 %v522
      %v979 = vunpack.c.h.b16 %v522
      %v980 = vunpack.c.l.b16 %v523
      %v981 = vunpack.c.h.b16 %v523
      %v982 = vunpack.c.l.b16 %v524
      %v983 = vunpack.c.h.b16 %v524
      %v984 = vunpack.c.l.b16 %v525
      %v985 = vunpack.c.h.b16 %v525
      %v986 = vunpack.c.l.b16 %v526
      %v987 = vunpack.c.h.b16 %v526
      %v988 = vunpack.c.l.b16 %v527
      %v989 = vunpack.c.h.b16 %v527
      %v990 = vunpack.c.l.b16 %v528
      %v991 = vunpack.c.h.b16 %v528
      %v992 = vunpack.c.l.b16 %v529
      %v993 = vunpack.c.h.b16 %v529
      %v994 = vunpack.c.l.b16 %v530
      %v995 = vunpack.c.h.b16 %v530
      %v996 = vunpack.c.l.b16 %v531
      %v997 = vunpack.c.h.b16 %v531
      %v998 = vunpack.c.l.b16 %v532
      %v999 = vunpack.c.h.b16 %v532
      %v1000 = vunpack.c.l.b16 %v533
      %v1001 = vunpack.c.h.b16 %v533
      %v1002 = vunpack.c.l.b16 %v534
      %v1003 = vunpack.c.h.b16 %v534
      %v1004 = vunpack.c.l.b16 %v535
      %v1005 = vunpack.c.h.b16 %v535
      %v1006 = vunpack.c.l.b16 %v536
      %v1007 = vunpack.c.h.b16 %v536
      %v1008 = vunpack.c.l.b16 %v537
      %v1009 = vunpack.c.h.b16 %v537
      %v1010 = vunpack.c.l.b16 %v538
      %v1011 = vunpack.c.h.b16 %v538
      %v1012 = vunpack.c.l.b16 %v539
      %v1013 = vunpack.c.h.b16 %v539
      %v1014 = vunpack.c.l.b16 %v540
      %v1015 = vunpack.c.h.b16 %v540
      %v1016 = vunpack.c.l.b16 %v541
      %v1017 = vunpack.c.h.b16 %v541
      %v1018 = vunpack.c.l.b16 %v542
      %v1019 = vunpack.c.h.b16 %v542
      %v1020 = vunpack.c.l.b16 %v543
      %v1021 = vunpack.c.h.b16 %v543
      %v1022 = vunpack.c.l.b16 %v544
      %v1023 = vunpack.c.h.b16 %v544
      %v1024 = vunpack.c.l.b16 %v545
      %v1025 = vunpack.c.h.b16 %v545
      %v1026 = vunpack.c.l.b16 %v546
      %v1027 = vunpack.c.h.b16 %v546
      %v1028 = vunpack.c.l.b16 %v547
      %v1029 = vunpack.c.h.b16 %v547
      %v1030 = vunpack.c.l.b16 %v548
      %v1031 = vunpack.c.h.b16 %v548
      %v1032 = vunpack.c.l.b16 %v549
      %v1033 = vunpack.c.h.b16 %v549
      %v1034 = vunpack.c.l.b16 %v550
      %v1035 = vunpack.c.h.b16 %v550
      %v1036 = vunpack.c.l.b16 %v551
      %v1037 = vunpack.c.h.b16 %v551
      %v1038 = vunpack.c.l.b16 %v552
      %v1039 = vunpack.c.h.b16 %v552
      %v1040 = vunpack.c.l.b16 %v553
      %v1041 = vunpack.c.h.b16 %v553
      %v1042 = vunpack.c.l.b16 %v554
      %v1043 = vunpack.c.h.b16 %v554
      %v1044 = vunpack.c.l.b16 %v555
      %v1045 = vunpack.c.h.b16 %v555
      %v1046 = vunpack.c.l.b16 %v556
      %v1047 = vunpack.c.h.b16 %v556
      %v1048 = vunpack.c.l.b16 %v557
      %v1049 = vunpack.c.h.b16 %v557
      %v1050 = vunpack.c.l.b16 %v558
      %v1051 = vunpack.c.h.b16 %v558
      %v1052 = vunpack.c.l.b16 %v559
      %v1053 = vunpack.c.h.b16 %v559
      %v1054 = vunpack.c.l.b16 %v560
      %v1055 = vunpack.c.h.b16 %v560
      %v1056 = vunpack.c.l.b16 %v561
      %v1057 = vunpack.c.h.b16 %v561
      %v1058 = vunpack.c.l.b16 %v562
      %v1059 = vunpack.c.h.b16 %v562
      %v1060 = vunpack.c.l.b16 %v563
      %v1061 = vunpack.c.h.b16 %v563
      %v1062 = vunpack.c.l.b16 %v564
      %v1063 = vunpack.c.h.b16 %v564
      %v1064 = vunpack.c.l.b16 %v565
      %v1065 = vunpack.c.h.b16 %v565
      %v1066 = vunpack.c.l.b16 %v566
      %v1067 = vunpack.c.h.b16 %v566
      %v1068 = vunpack.c.l.b16 %v567
      %v1069 = vunpack.c.h.b16 %v567
      %v1070 = vunpack.c.l.b16 %v568
      %v1071 = vunpack.c.h.b16 %v568
      %v1072 = vunpack.c.l.b16 %v569
      %v1073 = vunpack.c.h.b16 %v569
      %v1074 = vunpack.c.l.b16 %v570
      %v1075 = vunpack.c.h.b16 %v570
      %v1076 = vunpack.c.l.b16 %v571
      %v1077 = vunpack.c.h.b16 %v571
      %v1078 = vunpack.c.l.b16 %v572
      %v1079 = vunpack.c.h.b16 %v572
      %v1080 = vunpack.c.l.b16 %v573
      %v1081 = vunpack.c.h.b16 %v573
      %v1082 = vunpack.c.l.b16 %v574
      %v1083 = vunpack.c.h.b16 %v574
      %v1084 = vunpack.c.l.b16 %v575
      %v1085 = vunpack.c.h.b16 %v575
      %v1086 = vunpack.c.l.b16 %v576
      %v1087 = vunpack.c.h.b16 %v576
      %v1088 = vunpack.c.l.b16 %v577
      %v1089 = vunpack.c.h.b16 %v577
      %v1090 = vunpack.c.l.b16 %v578
      %v1091 = vunpack.c.h.b16 %v578
      %v1092 = vunpack.c.l.b16 %v579
      %v1093 = vunpack.c.h.b16 %v579
      %v1094 = vunpack.c.l.b16 %v580
      %v1095 = vunpack.c.h.b16 %v580
      %v1096 = vunpack.c.l.b16 %v581
      %v1097 = vunpack.c.h.b16 %v581
      %v1098 = vunpack.c.l.b16 %v582
      %v1099 = vunpack.c.h.b16 %v582
      %v1100 = vunpack.c.l.b16 %v583
      %v1101 = vunpack.c.h.b16 %v583
      %v1102 = vunpack.c.l.b16 %v584
      %v1103 = vunpack.c.h.b16 %v584
      %v1104 = vunpack.c.l.b16 %v585
      %v1105 = vunpack.c.h.b16 %v585
      %v1106 = vunpack.c.l.b16 %v586
      %v1107 = vunpack.c.h.b16 %v586
      %v1108 = vunpack.c.l.b16 %v587
      %v1109 = vunpack.c.h.b16 %v587
      %v1110 = vunpack.c.l.b16 %v588
      %v1111 = vunpack.c.h.b16 %v588
      %v1112 = vunpack.c.l.b16 %v589
      %v1113 = vunpack.c.h.b16 %v589
      %v1114 = vunpack.c.l.b16 %v590
      %v1115 = vunpack.c.h.b16 %v590
      %v1116 = vunpack.c.l.b16 %v591
      %v1117 = vunpack.c.h.b16 %v591
      %v1118 = vunpack.c.l.b16 %v592
      %v1119 = vunpack.c.h.b16 %v592
      %v1120 = vunpack.c.l.b16 %v593
      %v1121 = vunpack.c.h.b16 %v593
      %v1122 = vunpack.c.l.b16 %v594
      %v1123 = vunpack.c.h.b16 %v594
      %v1124 = vunpack.c.l.b16 %v595
      %v1125 = vunpack.c.h.b16 %v595
      %v1126 = vunpack.c.l.b16 %v596
      %v1127 = vunpack.c.h.b16 %v596
      %v1128 = vunpack.c.l.b16 %v597
      %v1129 = vunpack.c.h.b16 %v597
      %v1130 = vunpack.c.l.b16 %v598
      %v1131 = vunpack.c.h.b16 %v598
      %v1132 = vunpack.c.l.b16 %v599
      %v1133 = vunpack.c.h.b16 %v599
      %v1134 = vunpack.c.l.b16 %v600
      %v1135 = vunpack.c.h.b16 %v600
      %v1136 = vunpack.c.l.b16 %v601
      %v1137 = vunpack.c.h.b16 %v601
      %v1138 = vpack.c.b16 %v948, %v946
      %v1139 = vpack.c.b16 %v949, %v947
      %v1140 = vpack.c.b16 %v952, %v950
      %v1141 = vpack.c.b16 %v953, %v951
      %v1142 = vpack.c.b16 %v956, %v954
      %v1143 = vpack.c.b16 %v957, %v955
      %v1144 = vpack.c.b16 %v960, %v958
      %v1145 = vpack.c.b16 %v961, %v959
      %v1146 = vpack.c.b16 %v964, %v962
      %v1147 = vpack.c.b16 %v965, %v963
      %v1148 = vpack.c.b16 %v968, %v966
      %v1149 = vpack.c.b16 %v969, %v967
      %v1150 = vpack.c.b16 %v972, %v970
      %v1151 = vpack.c.b16 %v973, %v971
      %v1152 = vpack.c.b16 %v976, %v974
      %v1153 = vpack.c.b16 %v977, %v975
      %v1154 = vpack.c.b16 %v980, %v978
      %v1155 = vpack.c.b16 %v981, %v979
      %v1156 = vpack.c.b16 %v984, %v982
      %v1157 = vpack.c.b16 %v985, %v983
      %v1158 = vpack.c.b16 %v988, %v986
      %v1159 = vpack.c.b16 %v989, %v987
      %v1160 = vpack.c.b16 %v992, %v990
      %v1161 = vpack.c.b16 %v993, %v991
      %v1162 = vpack.c.b16 %v996, %v994
      %v1163 = vpack.c.b16 %v997, %v995
      %v1164 = vpack.c.b16 %v1000, %v998
      %v1165 = vpack.c.b16 %v1001, %v999
      %v1166 = vpack.c.b16 %v1004, %v1002
      %v1167 = vpack.c.b16 %v1005, %v1003
      %v1168 = vpack.c.b16 %v1008, %v1006
      %v1169 = vpack.c.b16 %v1009, %v1007
      %v1170 = vpack.c.b16 %v1012, %v1010
      %v1171 = vpack.c.b16 %v1013, %v1011
      %v1172 = vpack.c.b16 %v1016, %v1014
      %v1173 = vpack.c.b16 %v1017, %v1015
      %v1174 = vpack.c.b16 %v1020, %v1018
      %v1175 = vpack.c.b16 %v1021, %v1019
      %v1176 = vpack.c.b16 %v1024, %v1022
      %v1177 = vpack.c.b16 %v1025, %v1023
      %v1178 = vpack.c.b16 %v1028, %v1026
      %v1179 = vpack.c.b16 %v1029, %v1027
      %v1180 = vpack.c.b16 %v1032, %v1030
      %v1181 = vpack.c.b16 %v1033, %v1031
      %v1182 = vpack.c.b16 %v1036, %v1034
      %v1183 = vpack.c.b16 %v1037, %v1035
      %v1184 = vpack.c.b16 %v1040, %v1038
      %v1185 = vpack.c.b16 %v1041, %v1039
      %v1186 = vpack.c.b16 %v1044, %v1042
      %v1187 = vpack.c.b16 %v1045, %v1043
      %v1188 = vpack.c.b16 %v1048, %v1046
      %v1189 = vpack.c.b16 %v1049, %v1047
      %v1190 = vpack.c.b16 %v1052, %v1050
      %v1191 = vpack.c.b16 %v1053, %v1051
      %v1192 = vpack.c.b16 %v1056, %v1054
      %v1193 = vpack.c.b16 %v1057, %v1055
      %v1194 = vpack.c.b16 %v1060, %v1058
      %v1195 = vpack.c.b16 %v1061, %v1059
      %v1196 = vpack.c.b16 %v1064, %v1062
      %v1197 = vpack.c.b16 %v1065, %v1063
      %v1198 = vpack.c.b16 %v1068, %v1066
      %v1199 = vpack.c.b16 %v1069, %v1067
      %v1200 = vpack.c.b16 %v1072, %v1070
      %v1201 = vpack.c.b16 %v1073, %v1071
      %v1202 = vpack.c.b16 %v1076, %v1074
      %v1203 = vpack.c.b16 %v1077, %v1075
      %v1204 = vpack.c.b16 %v1080, %v1078
      %v1205 = vpack.c.b16 %v1081, %v1079
      %v1206 = vpack.c.b16 %v1084, %v1082
      %v1207 = vpack.c.b16 %v1085, %v1083
      %v1208 = vpack.c.b16 %v1088, %v1086
      %v1209 = vpack.c.b16 %v1089, %v1087
      %v1210 = vpack.c.b16 %v1092, %v1090
      %v1211 = vpack.c.b16 %v1093, %v1091
      %v1212 = vpack.c.b16 %v1096, %v1094
      %v1213 = vpack.c.b16 %v1097, %v1095
      %v1214 = vpack.c.b16 %v1100, %v1098
      %v1215 = vpack.c.b16 %v1101, %v1099
      %v1216 = vpack.c.b16 %v1104, %v1102
      %v1217 = vpack.c.b16 %v1105, %v1103
      %v1218 = vpack.c.b16 %v1108, %v1106
      %v1219 = vpack.c.b16 %v1109, %v1107
      %v1220 = vpack.c.b16 %v1112, %v1110
      %v1221 = vpack.c.b16 %v1113, %v1111
      %v1222 = vpack.c.b16 %v1116, %v1114
      %v1223 = vpack.c.b16 %v1117, %v1115
      %v1224 = vpack.c.b16 %v1120, %v1118
      %v1225 = vpack.c.b16 %v1121, %v1119
      %v1226 = vpack.c.b16 %v1124, %v1122
      %v1227 = vpack.c.b16 %v1125, %v1123
      %v1228 = vpack.c.b16 %v1128, %v1126
      %v1229 = vpack.c.b16 %v1129, %v1127
      %v1230 = vpack.c.b16 %v1132, %v1130
      %v1231 = vpack.c.b16 %v1133, %v1131
      %v1232 = vpack.c.b16 %v1136, %v1134
      %v1233 = vpack.c.b16 %v1137, %v1135
      %1330 = vmatpush.bf16.msra.mxu0 %v1152
      %1331 = vmatpush.bf16.msra.mxu0 %v1150
      %1332 = vmatpush.bf16.msra.mxu0 %v1148
      %1333 = vmatpush.bf16.msra.mxu0 %v1146
      %1334 = vmatpush.bf16.msra.mxu0 %v1144
      %1335 = vmatpush.bf16.msra.mxu0 %v1142
      %1336 = vmatpush.bf16.msra.mxu0 %v1140
      %1337 = vmatpush.bf16.msra.mxu0 %v1138
      %1338 = vmatmul.bf16.gmra.mxu0 %v754
      %v1339 = vpop.f32.mrf.mxu0
      %v1340 = vadd.f32 %v606, %v1339
      %v1341 = vpop.f32.mrf.mxu0
      %v1342 = vadd.f32 %v606, %v1341
      %1343 = vmatmul.bf16.gmra.mxu0 %v760
      %v1344 = vpop.f32.mrf.mxu0
      %v1345 = vadd.f32 %v606, %v1344
      %v1346 = vpop.f32.mrf.mxu0
      %v1347 = vadd.f32 %v606, %v1346
      %1348 = vmatmul.bf16.gmra.mxu0 %v766
      %v1349 = vpop.f32.mrf.mxu0
      %v1350 = vadd.f32 %v606, %v1349
      %v1351 = vpop.f32.mrf.mxu0
      %v1352 = vadd.f32 %v606, %v1351
      %1353 = vmatmul.bf16.gmra.mxu0 %v772
      %v1354 = vpop.f32.mrf.mxu0
      %v1355 = vadd.f32 %v606, %v1354
      %v1356 = vpop.f32.mrf.mxu0
      %v1357 = vadd.f32 %v606, %v1356
      %1358 = vmatmul.bf16.gmra.mxu0 %v778
      %v1359 = vpop.f32.mrf.mxu0
      %v1360 = vadd.f32 %v606, %v1359
      %v1361 = vpop.f32.mrf.mxu0
      %v1362 = vadd.f32 %v606, %v1361
      %1363 = vmatmul.bf16.gmra.mxu0 %v784
      %v1364 = vpop.f32.mrf.mxu0
      %v1365 = vadd.f32 %v606, %v1364
      %v1366 = vpop.f32.mrf.mxu0
      %v1367 = vadd.f32 %v606, %v1366
      %1368 = vmatmul.bf16.gmra.mxu0 %v790
      %v1369 = vpop.f32.mrf.mxu0
      %v1370 = vadd.f32 %v606, %v1369
      %v1371 = vpop.f32.mrf.mxu0
      %v1372 = vadd.f32 %v606, %v1371
      %1373 = vmatmul.bf16.gmra.mxu0 %v796
      %v1374 = vpop.f32.mrf.mxu0
      %v1375 = vadd.f32 %v606, %v1374
      %v1376 = vpop.f32.mrf.mxu0
      %v1377 = vadd.f32 %v606, %v1376
      %1378 = vdwg.mxu0
      %1379 = vmatpush.bf16.msra.mxu0 %v1168
      %1380 = vmatpush.bf16.msra.mxu0 %v1166
      %1381 = vmatpush.bf16.msra.mxu0 %v1164
      %1382 = vmatpush.bf16.msra.mxu0 %v1162
      %1383 = vmatpush.bf16.msra.mxu0 %v1160
      %1384 = vmatpush.bf16.msra.mxu0 %v1158
      %1385 = vmatpush.bf16.msra.mxu0 %v1156
      %1386 = vmatpush.bf16.msra.mxu0 %v1154
      %1387 = vmatmul.bf16.gmra.mxu0 %v755
      %v1388 = vpop.f32.mrf.mxu0
      %v1389 = vadd.f32 %v1340, %v1388
      %v1390 = vpop.f32.mrf.mxu0
      %v1391 = vadd.f32 %v1342, %v1390
      %1392 = vmatmul.bf16.gmra.mxu0 %v761
      %v1393 = vpop.f32.mrf.mxu0
      %v1394 = vadd.f32 %v1345, %v1393
      %v1395 = vpop.f32.mrf.mxu0
      %v1396 = vadd.f32 %v1347, %v1395
      %1397 = vmatmul.bf16.gmra.mxu0 %v767
      %v1398 = vpop.f32.mrf.mxu0
      %v1399 = vadd.f32 %v1350, %v1398
      %v1400 = vpop.f32.mrf.mxu0
      %v1401 = vadd.f32 %v1352, %v1400
      %1402 = vmatmul.bf16.gmra.mxu0 %v773
      %v1403 = vpop.f32.mrf.mxu0
      %v1404 = vadd.f32 %v1355, %v1403
      %v1405 = vpop.f32.mrf.mxu0
      %v1406 = vadd.f32 %v1357, %v1405
      %1407 = vmatmul.bf16.gmra.mxu0 %v779
      %v1408 = vpop.f32.mrf.mxu0
      %v1409 = vadd.f32 %v1360, %v1408
      %v1410 = vpop.f32.mrf.mxu0
      %v1411 = vadd.f32 %v1362, %v1410
      %1412 = vmatmul.bf16.gmra.mxu0 %v785
      %v1413 = vpop.f32.mrf.mxu0
      %v1414 = vadd.f32 %v1365, %v1413
      %v1415 = vpop.f32.mrf.mxu0
      %v1416 = vadd.f32 %v1367, %v1415
      %1417 = vmatmul.bf16.gmra.mxu0 %v791
      %v1418 = vpop.f32.mrf.mxu0
      %v1419 = vadd.f32 %v1370, %v1418
      %v1420 = vpop.f32.mrf.mxu0
      %v1421 = vadd.f32 %v1372, %v1420
      %1422 = vmatmul.bf16.gmra.mxu0 %v797
      %v1423 = vpop.f32.mrf.mxu0
      %v1424 = vadd.f32 %v1375, %v1423
      %v1425 = vpop.f32.mrf.mxu0
      %v1426 = vadd.f32 %v1377, %v1425
      %1427 = vdwg.mxu0
      %1428 = vmatpush.bf16.msra.mxu0 %v1184
      %1429 = vmatpush.bf16.msra.mxu0 %v1182
      %1430 = vmatpush.bf16.msra.mxu0 %v1180
      %1431 = vmatpush.bf16.msra.mxu0 %v1178
      %1432 = vmatpush.bf16.msra.mxu0 %v1176
      %1433 = vmatpush.bf16.msra.mxu0 %v1174
      %1434 = vmatpush.bf16.msra.mxu0 %v1172
      %1435 = vmatpush.bf16.msra.mxu0 %v1170
      %1436 = vmatmul.bf16.gmra.mxu0 %v756
      %v1437 = vpop.f32.mrf.mxu0
      %v1438 = vadd.f32 %v1389, %v1437
      %v1439 = vpop.f32.mrf.mxu0
      %v1440 = vadd.f32 %v1391, %v1439
      %1441 = vmatmul.bf16.gmra.mxu0 %v762
      %v1442 = vpop.f32.mrf.mxu0
      %v1443 = vadd.f32 %v1394, %v1442
      %v1444 = vpop.f32.mrf.mxu0
      %v1445 = vadd.f32 %v1396, %v1444
      %1446 = vmatmul.bf16.gmra.mxu0 %v768
      %v1447 = vpop.f32.mrf.mxu0
      %v1448 = vadd.f32 %v1399, %v1447
      %v1449 = vpop.f32.mrf.mxu0
      %v1450 = vadd.f32 %v1401, %v1449
      %1451 = vmatmul.bf16.gmra.mxu0 %v774
      %v1452 = vpop.f32.mrf.mxu0
      %v1453 = vadd.f32 %v1404, %v1452
      %v1454 = vpop.f32.mrf.mxu0
      %v1455 = vadd.f32 %v1406, %v1454
      %1456 = vmatmul.bf16.gmra.mxu0 %v780
      %v1457 = vpop.f32.mrf.mxu0
      %v1458 = vadd.f32 %v1409, %v1457
      %v1459 = vpop.f32.mrf.mxu0
      %v1460 = vadd.f32 %v1411, %v1459
      %1461 = vmatmul.bf16.gmra.mxu0 %v786
      %v1462 = vpop.f32.mrf.mxu0
      %v1463 = vadd.f32 %v1414, %v1462
      %v1464 = vpop.f32.mrf.mxu0
      %v1465 = vadd.f32 %v1416, %v1464
      %1466 = vmatmul.bf16.gmra.mxu0 %v792
      %v1467 = vpop.f32.mrf.mxu0
      %v1468 = vadd.f32 %v1419, %v1467
      %v1469 = vpop.f32.mrf.mxu0
      %v1470 = vadd.f32 %v1421, %v1469
      %1471 = vmatmul.bf16.gmra.mxu0 %v798
      %v1472 = vpop.f32.mrf.mxu0
      %v1473 = vadd.f32 %v1424, %v1472
      %v1474 = vpop.f32.mrf.mxu0
      %v1475 = vadd.f32 %v1426, %v1474
      %1476 = vdwg.mxu0
      %1477 = vmatpush.bf16.msra.mxu0 %v1200
      %1478 = vmatpush.bf16.msra.mxu0 %v1198
      %1479 = vmatpush.bf16.msra.mxu0 %v1196
      %1480 = vmatpush.bf16.msra.mxu0 %v1194
      %1481 = vmatpush.bf16.msra.mxu0 %v1192
      %1482 = vmatpush.bf16.msra.mxu0 %v1190
      %1483 = vmatpush.bf16.msra.mxu0 %v1188
      %1484 = vmatpush.bf16.msra.mxu0 %v1186
      %1485 = vmatmul.bf16.gmra.mxu0 %v757
      %v1486 = vpop.f32.mrf.mxu0
      %v1487 = vadd.f32 %v1438, %v1486
      %v1488 = vpop.f32.mrf.mxu0
      %v1489 = vadd.f32 %v1440, %v1488
      %1490 = vmatmul.bf16.gmra.mxu0 %v763
      %v1491 = vpop.f32.mrf.mxu0
      %v1492 = vadd.f32 %v1443, %v1491
      %v1493 = vpop.f32.mrf.mxu0
      %v1494 = vadd.f32 %v1445, %v1493
      %1495 = vmatmul.bf16.gmra.mxu0 %v769
      %v1496 = vpop.f32.mrf.mxu0
      %v1497 = vadd.f32 %v1448, %v1496
      %v1498 = vpop.f32.mrf.mxu0
      %v1499 = vadd.f32 %v1450, %v1498
      %1500 = vmatmul.bf16.gmra.mxu0 %v775
      %v1501 = vpop.f32.mrf.mxu0
      %v1502 = vadd.f32 %v1453, %v1501
      %v1503 = vpop.f32.mrf.mxu0
      %v1504 = vadd.f32 %v1455, %v1503
      %1505 = vmatmul.bf16.gmra.mxu0 %v781
      %v1506 = vpop.f32.mrf.mxu0
      %v1507 = vadd.f32 %v1458, %v1506
      %v1508 = vpop.f32.mrf.mxu0
      %v1509 = vadd.f32 %v1460, %v1508
      %1510 = vmatmul.bf16.gmra.mxu0 %v787
      %v1511 = vpop.f32.mrf.mxu0
      %v1512 = vadd.f32 %v1463, %v1511
      %v1513 = vpop.f32.mrf.mxu0
      %v1514 = vadd.f32 %v1465, %v1513
      %1515 = vmatmul.bf16.gmra.mxu0 %v793
      %v1516 = vpop.f32.mrf.mxu0
      %v1517 = vadd.f32 %v1468, %v1516
      %v1518 = vpop.f32.mrf.mxu0
      %v1519 = vadd.f32 %v1470, %v1518
      %1520 = vmatmul.bf16.gmra.mxu0 %v799
      %v1521 = vpop.f32.mrf.mxu0
      %v1522 = vadd.f32 %v1473, %v1521
      %v1523 = vpop.f32.mrf.mxu0
      %v1524 = vadd.f32 %v1475, %v1523
      %1525 = vdwg.mxu0
      %1526 = vmatpush.bf16.msra.mxu0 %v1216
      %1527 = vmatpush.bf16.msra.mxu0 %v1214
      %1528 = vmatpush.bf16.msra.mxu0 %v1212
      %1529 = vmatpush.bf16.msra.mxu0 %v1210
      %1530 = vmatpush.bf16.msra.mxu0 %v1208
      %1531 = vmatpush.bf16.msra.mxu0 %v1206
      %1532 = vmatpush.bf16.msra.mxu0 %v1204
      %1533 = vmatpush.bf16.msra.mxu0 %v1202
      %1534 = vmatmul.bf16.gmra.mxu0 %v758
      %v1535 = vpop.f32.mrf.mxu0
      %v1536 = vadd.f32 %v1487, %v1535
      %v1537 = vpop.f32.mrf.mxu0
      %v1538 = vadd.f32 %v1489, %v1537
      %1539 = vmatmul.bf16.gmra.mxu0 %v764
      %v1540 = vpop.f32.mrf.mxu0
      %v1541 = vadd.f32 %v1492, %v1540
      %v1542 = vpop.f32.mrf.mxu0
      %v1543 = vadd.f32 %v1494, %v1542
      %1544 = vmatmul.bf16.gmra.mxu0 %v770
      %v1545 = vpop.f32.mrf.mxu0
      %v1546 = vadd.f32 %v1497, %v1545
      %v1547 = vpop.f32.mrf.mxu0
      %v1548 = vadd.f32 %v1499, %v1547
      %1549 = vmatmul.bf16.gmra.mxu0 %v776
      %v1550 = vpop.f32.mrf.mxu0
      %v1551 = vadd.f32 %v1502, %v1550
      %v1552 = vpop.f32.mrf.mxu0
      %v1553 = vadd.f32 %v1504, %v1552
      %1554 = vmatmul.bf16.gmra.mxu0 %v782
      %v1555 = vpop.f32.mrf.mxu0
      %v1556 = vadd.f32 %v1507, %v1555
      %v1557 = vpop.f32.mrf.mxu0
      %v1558 = vadd.f32 %v1509, %v1557
      %1559 = vmatmul.bf16.gmra.mxu0 %v788
      %v1560 = vpop.f32.mrf.mxu0
      %v1561 = vadd.f32 %v1512, %v1560
      %v1562 = vpop.f32.mrf.mxu0
      %v1563 = vadd.f32 %v1514, %v1562
      %1564 = vmatmul.bf16.gmra.mxu0 %v794
      %v1565 = vpop.f32.mrf.mxu0
      %v1566 = vadd.f32 %v1517, %v1565
      %v1567 = vpop.f32.mrf.mxu0
      %v1568 = vadd.f32 %v1519, %v1567
      %1569 = vmatmul.bf16.gmra.mxu0 %v800
      %v1570 = vpop.f32.mrf.mxu0
      %v1571 = vadd.f32 %v1522, %v1570
      %v1572 = vpop.f32.mrf.mxu0
      %v1573 = vadd.f32 %v1524, %v1572
      %1574 = vdwg.mxu0
      %1575 = vmatpush.bf16.msra.mxu0 %v1232
      %1576 = vmatpush.bf16.msra.mxu0 %v1230
      %1577 = vmatpush.bf16.msra.mxu0 %v1228
      %1578 = vmatpush.bf16.msra.mxu0 %v1226
      %1579 = vmatpush.bf16.msra.mxu0 %v1224
      %1580 = vmatpush.bf16.msra.mxu0 %v1222
      %1581 = vmatpush.bf16.msra.mxu0 %v1220
      %1582 = vmatpush.bf16.msra.mxu0 %v1218
      %1583 = vmatmul.bf16.gmra.mxu0 %v759
      %v1584 = vpop.f32.mrf.mxu0
      %v1585 = vadd.f32 %v1536, %v1584
      %v1586 = vpop.f32.mrf.mxu0
      %v1587 = vadd.f32 %v1538, %v1586
      %1588 = vmatmul.bf16.gmra.mxu0 %v765
      %v1589 = vpop.f32.mrf.mxu0
      %v1590 = vadd.f32 %v1541, %v1589
      %v1591 = vpop.f32.mrf.mxu0
      %v1592 = vadd.f32 %v1543, %v1591
      %1593 = vmatmul.bf16.gmra.mxu0 %v771
      %v1594 = vpop.f32.mrf.mxu0
      %v1595 = vadd.f32 %v1546, %v1594
      %v1596 = vpop.f32.mrf.mxu0
      %v1597 = vadd.f32 %v1548, %v1596
      %1598 = vmatmul.bf16.gmra.mxu0 %v777
      %v1599 = vpop.f32.mrf.mxu0
      %v1600 = vadd.f32 %v1551, %v1599
      %v1601 = vpop.f32.mrf.mxu0
      %v1602 = vadd.f32 %v1553, %v1601
      %1603 = vmatmul.bf16.gmra.mxu0 %v783
      %v1604 = vpop.f32.mrf.mxu0
      %v1605 = vadd.f32 %v1556, %v1604
      %v1606 = vpop.f32.mrf.mxu0
      %v1607 = vadd.f32 %v1558, %v1606
      %1608 = vmatmul.bf16.gmra.mxu0 %v789
      %v1609 = vpop.f32.mrf.mxu0
      %v1610 = vadd.f32 %v1561, %v1609
      %v1611 = vpop.f32.mrf.mxu0
      %v1612 = vadd.f32 %v1563, %v1611
      %1613 = vmatmul.bf16.gmra.mxu0 %v795
      %v1614 = vpop.f32.mrf.mxu0
      %v1615 = vadd.f32 %v1566, %v1614
      %v1616 = vpop.f32.mrf.mxu0
      %v1617 = vadd.f32 %v1568, %v1616
      %1618 = vmatmul.bf16.gmra.mxu0 %v801
      %v1619 = vpop.f32.mrf.mxu0
      %v1620 = vadd.f32 %v1571, %v1619
      %v1621 = vpop.f32.mrf.mxu0
      %v1622 = vadd.f32 %v1573, %v1621
      %1623 = vdwg.mxu0
      %1624 = vmatpush.bf16.msra.mxu0 %v1153
      %1625 = vmatpush.bf16.msra.mxu0 %v1151
      %1626 = vmatpush.bf16.msra.mxu0 %v1149
      %1627 = vmatpush.bf16.msra.mxu0 %v1147
      %1628 = vmatpush.bf16.msra.mxu0 %v1145
      %1629 = vmatpush.bf16.msra.mxu0 %v1143
      %1630 = vmatpush.bf16.msra.mxu0 %v1141
      %1631 = vmatpush.bf16.msra.mxu0 %v1139
      %1632 = vmatmul.bf16.gmra.mxu0 %v754
      %v1633 = vpop.f32.mrf.mxu0
      %v1634 = vadd.f32 %v607, %v1633
      %v1635 = vpop.f32.mrf.mxu0
      %v1636 = vadd.f32 %v607, %v1635
      %1637 = vmatmul.bf16.gmra.mxu0 %v760
      %v1638 = vpop.f32.mrf.mxu0
      %v1639 = vadd.f32 %v607, %v1638
      %v1640 = vpop.f32.mrf.mxu0
      %v1641 = vadd.f32 %v607, %v1640
      %1642 = vmatmul.bf16.gmra.mxu0 %v766
      %v1643 = vpop.f32.mrf.mxu0
      %v1644 = vadd.f32 %v607, %v1643
      %v1645 = vpop.f32.mrf.mxu0
      %v1646 = vadd.f32 %v607, %v1645
      %1647 = vmatmul.bf16.gmra.mxu0 %v772
      %v1648 = vpop.f32.mrf.mxu0
      %v1649 = vadd.f32 %v607, %v1648
      %v1650 = vpop.f32.mrf.mxu0
      %v1651 = vadd.f32 %v607, %v1650
      %1652 = vmatmul.bf16.gmra.mxu0 %v778
      %v1653 = vpop.f32.mrf.mxu0
      %v1654 = vadd.f32 %v607, %v1653
      %v1655 = vpop.f32.mrf.mxu0
      %v1656 = vadd.f32 %v607, %v1655
      %1657 = vmatmul.bf16.gmra.mxu0 %v784
      %v1658 = vpop.f32.mrf.mxu0
      %v1659 = vadd.f32 %v607, %v1658
      %v1660 = vpop.f32.mrf.mxu0
      %v1661 = vadd.f32 %v607, %v1660
      %1662 = vmatmul.bf16.gmra.mxu0 %v790
      %v1663 = vpop.f32.mrf.mxu0
      %v1664 = vadd.f32 %v607, %v1663
      %v1665 = vpop.f32.mrf.mxu0
      %v1666 = vadd.f32 %v607, %v1665
      %1667 = vmatmul.bf16.gmra.mxu0 %v796
      %v1668 = vpop.f32.mrf.mxu0
      %v1669 = vadd.f32 %v607, %v1668
      %v1670 = vpop.f32.mrf.mxu0
      %v1671 = vadd.f32 %v607, %v1670
      %1672 = vdwg.mxu0
      %1673 = vmatpush.bf16.msra.mxu0 %v1169
      %1674 = vmatpush.bf16.msra.mxu0 %v1167
      %1675 = vmatpush.bf16.msra.mxu0 %v1165
      %1676 = vmatpush.bf16.msra.mxu0 %v1163
      %1677 = vmatpush.bf16.msra.mxu0 %v1161
      %1678 = vmatpush.bf16.msra.mxu0 %v1159
      %1679 = vmatpush.bf16.msra.mxu0 %v1157
      %1680 = vmatpush.bf16.msra.mxu0 %v1155
      %1681 = vmatmul.bf16.gmra.mxu0 %v755
      %v1682 = vpop.f32.mrf.mxu0
      %v1683 = vadd.f32 %v1634, %v1682
      %v1684 = vpop.f32.mrf.mxu0
      %v1685 = vadd.f32 %v1636, %v1684
      %1686 = vmatmul.bf16.gmra.mxu0 %v761
      %v1687 = vpop.f32.mrf.mxu0
      %v1688 = vadd.f32 %v1639, %v1687
      %v1689 = vpop.f32.mrf.mxu0
      %v1690 = vadd.f32 %v1641, %v1689
      %1691 = vmatmul.bf16.gmra.mxu0 %v767
      %v1692 = vpop.f32.mrf.mxu0
      %v1693 = vadd.f32 %v1644, %v1692
      %v1694 = vpop.f32.mrf.mxu0
      %v1695 = vadd.f32 %v1646, %v1694
      %1696 = vmatmul.bf16.gmra.mxu0 %v773
      %v1697 = vpop.f32.mrf.mxu0
      %v1698 = vadd.f32 %v1649, %v1697
      %v1699 = vpop.f32.mrf.mxu0
      %v1700 = vadd.f32 %v1651, %v1699
      %1701 = vmatmul.bf16.gmra.mxu0 %v779
      %v1702 = vpop.f32.mrf.mxu0
      %v1703 = vadd.f32 %v1654, %v1702
      %v1704 = vpop.f32.mrf.mxu0
      %v1705 = vadd.f32 %v1656, %v1704
      %1706 = vmatmul.bf16.gmra.mxu0 %v785
      %v1707 = vpop.f32.mrf.mxu0
      %v1708 = vadd.f32 %v1659, %v1707
      %v1709 = vpop.f32.mrf.mxu0
      %v1710 = vadd.f32 %v1661, %v1709
      %1711 = vmatmul.bf16.gmra.mxu0 %v791
      %v1712 = vpop.f32.mrf.mxu0
      %v1713 = vadd.f32 %v1664, %v1712
      %v1714 = vpop.f32.mrf.mxu0
      %v1715 = vadd.f32 %v1666, %v1714
      %1716 = vmatmul.bf16.gmra.mxu0 %v797
      %v1717 = vpop.f32.mrf.mxu0
      %v1718 = vadd.f32 %v1669, %v1717
      %v1719 = vpop.f32.mrf.mxu0
      %v1720 = vadd.f32 %v1671, %v1719
      %1721 = vdwg.mxu0
      %1722 = vmatpush.bf16.msra.mxu0 %v1185
      %1723 = vmatpush.bf16.msra.mxu0 %v1183
      %1724 = vmatpush.bf16.msra.mxu0 %v1181
      %1725 = vmatpush.bf16.msra.mxu0 %v1179
      %1726 = vmatpush.bf16.msra.mxu0 %v1177
      %1727 = vmatpush.bf16.msra.mxu0 %v1175
      %1728 = vmatpush.bf16.msra.mxu0 %v1173
      %1729 = vmatpush.bf16.msra.mxu0 %v1171
      %1730 = vmatmul.bf16.gmra.mxu0 %v756
      %v1731 = vpop.f32.mrf.mxu0
      %v1732 = vadd.f32 %v1683, %v1731
      %v1733 = vpop.f32.mrf.mxu0
      %v1734 = vadd.f32 %v1685, %v1733
      %1735 = vmatmul.bf16.gmra.mxu0 %v762
      %v1736 = vpop.f32.mrf.mxu0
      %v1737 = vadd.f32 %v1688, %v1736
      %v1738 = vpop.f32.mrf.mxu0
      %v1739 = vadd.f32 %v1690, %v1738
      %1740 = vmatmul.bf16.gmra.mxu0 %v768
      %v1741 = vpop.f32.mrf.mxu0
      %v1742 = vadd.f32 %v1693, %v1741
      %v1743 = vpop.f32.mrf.mxu0
      %v1744 = vadd.f32 %v1695, %v1743
      %1745 = vmatmul.bf16.gmra.mxu0 %v774
      %v1746 = vpop.f32.mrf.mxu0
      %v1747 = vadd.f32 %v1698, %v1746
      %v1748 = vpop.f32.mrf.mxu0
      %v1749 = vadd.f32 %v1700, %v1748
      %1750 = vmatmul.bf16.gmra.mxu0 %v780
      %v1751 = vpop.f32.mrf.mxu0
      %v1752 = vadd.f32 %v1703, %v1751
      %v1753 = vpop.f32.mrf.mxu0
      %v1754 = vadd.f32 %v1705, %v1753
      %1755 = vmatmul.bf16.gmra.mxu0 %v786
      %v1756 = vpop.f32.mrf.mxu0
      %v1757 = vadd.f32 %v1708, %v1756
      %v1758 = vpop.f32.mrf.mxu0
      %v1759 = vadd.f32 %v1710, %v1758
      %1760 = vmatmul.bf16.gmra.mxu0 %v792
      %v1761 = vpop.f32.mrf.mxu0
      %v1762 = vadd.f32 %v1713, %v1761
      %v1763 = vpop.f32.mrf.mxu0
      %v1764 = vadd.f32 %v1715, %v1763
      %1765 = vmatmul.bf16.gmra.mxu0 %v798
      %v1766 = vpop.f32.mrf.mxu0
      %v1767 = vadd.f32 %v1718, %v1766
      %v1768 = vpop.f32.mrf.mxu0
      %v1769 = vadd.f32 %v1720, %v1768
      %1770 = vdwg.mxu0
      %1771 = vmatpush.bf16.msra.mxu0 %v1201
      %1772 = vmatpush.bf16.msra.mxu0 %v1199
      %1773 = vmatpush.bf16.msra.mxu0 %v1197
      %1774 = vmatpush.bf16.msra.mxu0 %v1195
      %1775 = vmatpush.bf16.msra.mxu0 %v1193
      %1776 = vmatpush.bf16.msra.mxu0 %v1191
      %1777 = vmatpush.bf16.msra.mxu0 %v1189
      %1778 = vmatpush.bf16.msra.mxu0 %v1187
      %1779 = vmatmul.bf16.gmra.mxu0 %v757
      %v1780 = vpop.f32.mrf.mxu0
      %v1781 = vadd.f32 %v1732, %v1780
      %v1782 = vpop.f32.mrf.mxu0
      %v1783 = vadd.f32 %v1734, %v1782
      %1784 = vmatmul.bf16.gmra.mxu0 %v763
      %v1785 = vpop.f32.mrf.mxu0
      %v1786 = vadd.f32 %v1737, %v1785
      %v1787 = vpop.f32.mrf.mxu0
      %v1788 = vadd.f32 %v1739, %v1787
      %1789 = vmatmul.bf16.gmra.mxu0 %v769
      %v1790 = vpop.f32.mrf.mxu0
      %v1791 = vadd.f32 %v1742, %v1790
      %v1792 = vpop.f32.mrf.mxu0
      %v1793 = vadd.f32 %v1744, %v1792
      %1794 = vmatmul.bf16.gmra.mxu0 %v775
      %v1795 = vpop.f32.mrf.mxu0
      %v1796 = vadd.f32 %v1747, %v1795
      %v1797 = vpop.f32.mrf.mxu0
      %v1798 = vadd.f32 %v1749, %v1797
      %1799 = vmatmul.bf16.gmra.mxu0 %v781
      %v1800 = vpop.f32.mrf.mxu0
      %v1801 = vadd.f32 %v1752, %v1800
      %v1802 = vpop.f32.mrf.mxu0
      %v1803 = vadd.f32 %v1754, %v1802
      %1804 = vmatmul.bf16.gmra.mxu0 %v787
      %v1805 = vpop.f32.mrf.mxu0
      %v1806 = vadd.f32 %v1757, %v1805
      %v1807 = vpop.f32.mrf.mxu0
      %v1808 = vadd.f32 %v1759, %v1807
      %1809 = vmatmul.bf16.gmra.mxu0 %v793
      %v1810 = vpop.f32.mrf.mxu0
      %v1811 = vadd.f32 %v1762, %v1810
      %v1812 = vpop.f32.mrf.mxu0
      %v1813 = vadd.f32 %v1764, %v1812
      %1814 = vmatmul.bf16.gmra.mxu0 %v799
      %v1815 = vpop.f32.mrf.mxu0
      %v1816 = vadd.f32 %v1767, %v1815
      %v1817 = vpop.f32.mrf.mxu0
      %v1818 = vadd.f32 %v1769, %v1817
      %1819 = vdwg.mxu0
      %1820 = vmatpush.bf16.msra.mxu0 %v1217
      %1821 = vmatpush.bf16.msra.mxu0 %v1215
      %1822 = vmatpush.bf16.msra.mxu0 %v1213
      %1823 = vmatpush.bf16.msra.mxu0 %v1211
      %1824 = vmatpush.bf16.msra.mxu0 %v1209
      %1825 = vmatpush.bf16.msra.mxu0 %v1207
      %1826 = vmatpush.bf16.msra.mxu0 %v1205
      %1827 = vmatpush.bf16.msra.mxu0 %v1203
      %1828 = vmatmul.bf16.gmra.mxu0 %v758
      %v1829 = vpop.f32.mrf.mxu0
      %v1830 = vadd.f32 %v1781, %v1829
      %v1831 = vpop.f32.mrf.mxu0
      %v1832 = vadd.f32 %v1783, %v1831
      %1833 = vmatmul.bf16.gmra.mxu0 %v764
      %v1834 = vpop.f32.mrf.mxu0
      %v1835 = vadd.f32 %v1786, %v1834
      %v1836 = vpop.f32.mrf.mxu0
      %v1837 = vadd.f32 %v1788, %v1836
      %1838 = vmatmul.bf16.gmra.mxu0 %v770
      %v1839 = vpop.f32.mrf.mxu0
      %v1840 = vadd.f32 %v1791, %v1839
      %v1841 = vpop.f32.mrf.mxu0
      %v1842 = vadd.f32 %v1793, %v1841
      %1843 = vmatmul.bf16.gmra.mxu0 %v776
      %v1844 = vpop.f32.mrf.mxu0
      %v1845 = vadd.f32 %v1796, %v1844
      %v1846 = vpop.f32.mrf.mxu0
      %v1847 = vadd.f32 %v1798, %v1846
      %1848 = vmatmul.bf16.gmra.mxu0 %v782
      %v1849 = vpop.f32.mrf.mxu0
      %v1850 = vadd.f32 %v1801, %v1849
      %v1851 = vpop.f32.mrf.mxu0
      %v1852 = vadd.f32 %v1803, %v1851
      %1853 = vmatmul.bf16.gmra.mxu0 %v788
      %v1854 = vpop.f32.mrf.mxu0
      %v1855 = vadd.f32 %v1806, %v1854
      %v1856 = vpop.f32.mrf.mxu0
      %v1857 = vadd.f32 %v1808, %v1856
      %1858 = vmatmul.bf16.gmra.mxu0 %v794
      %v1859 = vpop.f32.mrf.mxu0
      %v1860 = vadd.f32 %v1811, %v1859
      %v1861 = vpop.f32.mrf.mxu0
      %v1862 = vadd.f32 %v1813, %v1861
      %1863 = vmatmul.bf16.gmra.mxu0 %v800
      %v1864 = vpop.f32.mrf.mxu0
      %v1865 = vadd.f32 %v1816, %v1864
      %v1866 = vpop.f32.mrf.mxu0
      %v1867 = vadd.f32 %v1818, %v1866
      %1868 = vdwg.mxu0
      %1869 = vmatpush.bf16.msra.mxu0 %v1233
      %1870 = vmatpush.bf16.msra.mxu0 %v1231
      %1871 = vmatpush.bf16.msra.mxu0 %v1229
      %1872 = vmatpush.bf16.msra.mxu0 %v1227
      %1873 = vmatpush.bf16.msra.mxu0 %v1225
      %1874 = vmatpush.bf16.msra.mxu0 %v1223
      %1875 = vmatpush.bf16.msra.mxu0 %v1221
      %1876 = vmatpush.bf16.msra.mxu0 %v1219
      %1877 = vmatmul.bf16.gmra.mxu0 %v759
      %v1878 = vpop.f32.mrf.mxu0
      %v1879 = vadd.f32 %v1830, %v1878
      %v1880 = vpop.f32.mrf.mxu0
      %v1881 = vadd.f32 %v1832, %v1880
      %1882 = vmatmul.bf16.gmra.mxu0 %v765
      %v1883 = vpop.f32.mrf.mxu0
      %v1884 = vadd.f32 %v1835, %v1883
      %v1885 = vpop.f32.mrf.mxu0
      %v1886 = vadd.f32 %v1837, %v1885
      %1887 = vmatmul.bf16.gmra.mxu0 %v771
      %v1888 = vpop.f32.mrf.mxu0
      %v1889 = vadd.f32 %v1840, %v1888
      %v1890 = vpop.f32.mrf.mxu0
      %v1891 = vadd.f32 %v1842, %v1890
      %1892 = vmatmul.bf16.gmra.mxu0 %v777
      %v1893 = vpop.f32.mrf.mxu0
      %v1894 = vadd.f32 %v1845, %v1893
      %v1895 = vpop.f32.mrf.mxu0
      %v1896 = vadd.f32 %v1847, %v1895
      %1897 = vmatmul.bf16.gmra.mxu0 %v783
      %v1898 = vpop.f32.mrf.mxu0
      %v1899 = vadd.f32 %v1850, %v1898
      %v1900 = vpop.f32.mrf.mxu0
      %v1901 = vadd.f32 %v1852, %v1900
      %1902 = vmatmul.bf16.gmra.mxu0 %v789
      %v1903 = vpop.f32.mrf.mxu0
      %v1904 = vadd.f32 %v1855, %v1903
      %v1905 = vpop.f32.mrf.mxu0
      %v1906 = vadd.f32 %v1857, %v1905
      %1907 = vmatmul.bf16.gmra.mxu0 %v795
      %v1908 = vpop.f32.mrf.mxu0
      %v1909 = vadd.f32 %v1860, %v1908
      %v1910 = vpop.f32.mrf.mxu0
      %v1911 = vadd.f32 %v1862, %v1910
      %1912 = vmatmul.bf16.gmra.mxu0 %v801
      %v1913 = vpop.f32.mrf.mxu0
      %v1914 = vadd.f32 %v1865, %v1913
      %v1915 = vpop.f32.mrf.mxu0
      %v1916 = vadd.f32 %v1867, %v1915
      %1917 = vdwg.mxu0
      %v1918 = vpack.c.bf16 %v1879, %v1585
      %v1919 = vpack.c.bf16 %v1881, %v1587
      %v1920 = vpack.c.bf16 %v1884, %v1590
      %v1921 = vpack.c.bf16 %v1886, %v1592
      %v1922 = vpack.c.bf16 %v1889, %v1595
      %v1923 = vpack.c.bf16 %v1891, %v1597
      %v1924 = vpack.c.bf16 %v1894, %v1600
      %v1925 = vpack.c.bf16 %v1896, %v1602
      %v1926 = vpack.c.bf16 %v1899, %v1605
      %v1927 = vpack.c.bf16 %v1901, %v1607
      %v1928 = vpack.c.bf16 %v1904, %v1610
      %v1929 = vpack.c.bf16 %v1906, %v1612
      %v1930 = vpack.c.bf16 %v1909, %v1615
      %v1931 = vpack.c.bf16 %v1911, %v1617
      %v1932 = vpack.c.bf16 %v1914, %v1620
      %v1933 = vpack.c.bf16 %v1916, %v1622
      %v1935 = vperm.slane %v502, 0
      %v1953 = vunpack.c.l.b16 %v1918
      %v1954 = vunpack.c.l.b16 %v1919
      %v1955 = vunpack.c.l.b16 %v1920
      %v1956 = vunpack.c.l.b16 %v1921
      %v1957 = vunpack.c.l.b16 %v1922
      %v1958 = vunpack.c.l.b16 %v1923
      %v1959 = vunpack.c.l.b16 %v1924
      %v1960 = vunpack.c.l.b16 %v1925
      %v1961 = vunpack.c.l.b16 %v1926
      %v1962 = vunpack.c.l.b16 %v1927
      %v1963 = vunpack.c.l.b16 %v1928
      %v1964 = vunpack.c.l.b16 %v1929
      %v1965 = vunpack.c.l.b16 %v1930
      %v1966 = vunpack.c.l.b16 %v1931
      %v1967 = vunpack.c.l.b16 %v1932
      %v1968 = vunpack.c.l.b16 %v1933
      %v1969 = vpack.c.b16 %v1954, %v1953
      %v1970 = vpack.c.b16 %v1956, %v1955
      %v1971 = vpack.c.b16 %v1958, %v1957
      %v1972 = vpack.c.b16 %v1960, %v1959
      %v1973 = vpack.c.b16 %v1962, %v1961
      %v1974 = vpack.c.b16 %v1964, %v1963
      %v1975 = vpack.c.b16 %v1966, %v1965
      %v1976 = vpack.c.b16 %v1968, %v1967
      %v1993 = vunpack.c.l.b16 %v468
      %v1994 = vunpack.c.l.b16 %v469
      %v1995 = vunpack.c.l.b16 %v470
      %v1996 = vunpack.c.l.b16 %v471
      %v1997 = vunpack.c.l.b16 %v472
      %v1998 = vunpack.c.l.b16 %v473
      %v1999 = vunpack.c.l.b16 %v474
      %v2000 = vunpack.c.l.b16 %v475
      %v2001 = vunpack.c.l.b16 %v476
      %v2002 = vunpack.c.l.b16 %v477
      %v2003 = vunpack.c.l.b16 %v478
      %v2004 = vunpack.c.l.b16 %v479
      %v2005 = vunpack.c.l.b16 %v480
      %v2006 = vunpack.c.l.b16 %v481
      %v2007 = vunpack.c.l.b16 %v482
      %v2008 = vunpack.c.l.b16 %v483
      %v2009 = vpack.c.b16 %v1994, %v1993
      %v2010 = vpack.c.b16 %v1996, %v1995
      %v2011 = vpack.c.b16 %v1998, %v1997
      %v2012 = vpack.c.b16 %v2000, %v1999
      %v2013 = vpack.c.b16 %v2002, %v2001
      %v2014 = vpack.c.b16 %v2004, %v2003
      %v2015 = vpack.c.b16 %v2006, %v2005
      %v2016 = vpack.c.b16 %v2008, %v2007
      %vm2017 = vcmask 261120
      %v2019 = vsel %vm2017, %v1969, 0
      %v2022 = vsel %vm2017, %v1970, 0
      %v2025 = vsel %vm2017, %v1971, 0
      %v2028 = vsel %vm2017, %v1972, 0
      %v2031 = vsel %vm2017, %v1973, 0
      %v2034 = vsel %vm2017, %v1974, 0
      %v2037 = vsel %vm2017, %v1975, 0
      %v2040 = vsel %vm2017, %v1976, 0
      %v2043 = vsel %vm2017, %v2009, 0
      %v2046 = vsel %vm2017, %v2010, 0
      %v2049 = vsel %vm2017, %v2011, 0
      %v2052 = vsel %vm2017, %v2012, 0
      %v2055 = vsel %vm2017, %v2013, 0
      %v2058 = vsel %vm2017, %v2014, 0
      %v2061 = vsel %vm2017, %v2015, 0
      %v2064 = vsel %vm2017, %v2016, 0
      %2066 = vmatpush.bf16.xpose.msra.mxu0 %v2064
      %2067 = vmatpush.bf16.xpose.msra.mxu0 %v2061
      %2068 = vmatpush.bf16.xpose.msra.mxu0 %v2058
      %2069 = vmatpush.bf16.xpose.msra.mxu0 %v2055
      %2070 = vmatpush.bf16.xpose.msra.mxu0 %v2052
      %2071 = vmatpush.bf16.xpose.msra.mxu0 %v2049
      %2072 = vmatpush.bf16.xpose.msra.mxu0 %v2046
      %2073 = vmatpush.bf16.xpose.msra.mxu0 %v2043
      %2074 = vmatmul.bf16.gmra.mxu0 %v2019
      %v2075 = vpop.f32.mrf.mxu0
      %v2076 = vadd.f32 %v1935, %v2075
      %v2077 = vpop.f32.mrf.mxu0
      %v2078 = vadd.f32 %v1935, %v2077
      %2079 = vmatmul.bf16.gmra.mxu0 %v2022
      %v2080 = vpop.f32.mrf.mxu0
      %v2081 = vadd.f32 %v1935, %v2080
      %v2082 = vpop.f32.mrf.mxu0
      %v2083 = vadd.f32 %v1935, %v2082
      %2084 = vmatmul.bf16.gmra.mxu0 %v2025
      %v2085 = vpop.f32.mrf.mxu0
      %v2086 = vadd.f32 %v1935, %v2085
      %v2087 = vpop.f32.mrf.mxu0
      %v2088 = vadd.f32 %v1935, %v2087
      %2089 = vmatmul.bf16.gmra.mxu0 %v2028
      %v2090 = vpop.f32.mrf.mxu0
      %v2091 = vadd.f32 %v1935, %v2090
      %v2092 = vpop.f32.mrf.mxu0
      %v2093 = vadd.f32 %v1935, %v2092
      %2094 = vmatmul.bf16.gmra.mxu0 %v2031
      %v2095 = vpop.f32.mrf.mxu0
      %v2096 = vadd.f32 %v1935, %v2095
      %v2097 = vpop.f32.mrf.mxu0
      %v2098 = vadd.f32 %v1935, %v2097
      %2099 = vmatmul.bf16.gmra.mxu0 %v2034
      %v2100 = vpop.f32.mrf.mxu0
      %v2101 = vadd.f32 %v1935, %v2100
      %v2102 = vpop.f32.mrf.mxu0
      %v2103 = vadd.f32 %v1935, %v2102
      %2104 = vmatmul.bf16.gmra.mxu0 %v2037
      %v2105 = vpop.f32.mrf.mxu0
      %v2106 = vadd.f32 %v1935, %v2105
      %v2107 = vpop.f32.mrf.mxu0
      %v2108 = vadd.f32 %v1935, %v2107
      %2109 = vmatmul.bf16.gmra.mxu0 %v2040
      %v2110 = vpop.f32.mrf.mxu0
      %v2111 = vadd.f32 %v1935, %v2110
      %v2112 = vpop.f32.mrf.mxu0
      %v2113 = vadd.f32 %v1935, %v2112
      %2114 = vdwg.mxu0
      %2115 = vmax.xlane.f32.xlu0 %v2076
      %v2116 = vpop.xlane.xlu0 %2115
      %2117 = vmax.xlane.f32.xlu0 %v2078
      %v2118 = vpop.xlane.xlu0 %2117
      %2119 = vmax.xlane.f32.xlu0 %v2081
      %v2120 = vpop.xlane.xlu0 %2119
      %2121 = vmax.xlane.f32.xlu0 %v2083
      %v2122 = vpop.xlane.xlu0 %2121
      %2123 = vmax.xlane.f32.xlu0 %v2086
      %v2124 = vpop.xlane.xlu0 %2123
      %2125 = vmax.xlane.f32.xlu0 %v2088
      %v2126 = vpop.xlane.xlu0 %2125
      %2127 = vmax.xlane.f32.xlu0 %v2091
      %v2128 = vpop.xlane.xlu0 %2127
      %2129 = vmax.xlane.f32.xlu0 %v2093
      %v2130 = vpop.xlane.xlu0 %2129
      %2131 = vmax.xlane.f32.xlu0 %v2096
      %v2132 = vpop.xlane.xlu0 %2131
      %2133 = vmax.xlane.f32.xlu0 %v2098
      %v2134 = vpop.xlane.xlu0 %2133
      %2135 = vmax.xlane.f32.xlu0 %v2101
      %v2136 = vpop.xlane.xlu0 %2135
      %2137 = vmax.xlane.f32.xlu0 %v2103
      %v2138 = vpop.xlane.xlu0 %2137
      %2139 = vmax.xlane.f32.xlu0 %v2106
      %v2140 = vpop.xlane.xlu0 %2139
      %2141 = vmax.xlane.f32.xlu0 %v2108
      %v2142 = vpop.xlane.xlu0 %2141
      %2143 = vmax.xlane.f32.xlu0 %v2111
      %v2144 = vpop.xlane.xlu0 %2143
      %2145 = vmax.xlane.f32.xlu0 %v2113
      %v2146 = vpop.xlane.xlu0 %2145
      %v2147 = vsub.f32 %v2076, %v2116
      %v2148 = vsub.f32 %v2078, %v2118
      %v2149 = vsub.f32 %v2081, %v2120
      %v2150 = vsub.f32 %v2083, %v2122
      %v2151 = vsub.f32 %v2086, %v2124
      %v2152 = vsub.f32 %v2088, %v2126
      %v2153 = vsub.f32 %v2091, %v2128
      %v2154 = vsub.f32 %v2093, %v2130
      %v2155 = vsub.f32 %v2096, %v2132
      %v2156 = vsub.f32 %v2098, %v2134
      %v2157 = vsub.f32 %v2101, %v2136
      %v2158 = vsub.f32 %v2103, %v2138
      %v2159 = vsub.f32 %v2106, %v2140
      %v2160 = vsub.f32 %v2108, %v2142
      %v2161 = vsub.f32 %v2111, %v2144
      %v2162 = vsub.f32 %v2113, %v2146
      %v2163 = vmul.f32 %v2147, 1.442695
      %v2164 = vpow.pop %v2163
      %v2165 = vmul.f32 %v2148, 1.442695
      %v2166 = vpow.pop %v2165
      %v2167 = vmul.f32 %v2149, 1.442695
      %v2168 = vpow.pop %v2167
      %v2169 = vmul.f32 %v2150, 1.442695
      %v2170 = vpow.pop %v2169
      %v2171 = vmul.f32 %v2151, 1.442695
      %v2172 = vpow.pop %v2171
      %v2173 = vmul.f32 %v2152, 1.442695
      %v2174 = vpow.pop %v2173
      %v2175 = vmul.f32 %v2153, 1.442695
      %v2176 = vpow.pop %v2175
      %v2177 = vmul.f32 %v2154, 1.442695
      %v2178 = vpow.pop %v2177
      %v2179 = vmul.f32 %v2155, 1.442695
      %v2180 = vpow.pop %v2179
      %v2181 = vmul.f32 %v2156, 1.442695
      %v2182 = vpow.pop %v2181
      %v2183 = vmul.f32 %v2157, 1.442695
      %v2184 = vpow.pop %v2183
      %v2185 = vmul.f32 %v2158, 1.442695
      %v2186 = vpow.pop %v2185
      %v2187 = vmul.f32 %v2159, 1.442695
      %v2188 = vpow.pop %v2187
      %v2189 = vmul.f32 %v2160, 1.442695
      %v2190 = vpow.pop %v2189
      %v2191 = vmul.f32 %v2161, 1.442695
      %v2192 = vpow.pop %v2191
      %v2193 = vmul.f32 %v2162, 1.442695
      %v2194 = vpow.pop %v2193
      %2195 = vadd.xlane.f32.xlu0 %v2164
      %v2196 = vpop.xlane.xlu0 %2195
      %2197 = vadd.xlane.f32.xlu0 %v2166
      %v2198 = vpop.xlane.xlu0 %2197
      %2199 = vadd.xlane.f32.xlu0 %v2168
      %v2200 = vpop.xlane.xlu0 %2199
      %2201 = vadd.xlane.f32.xlu0 %v2170
      %v2202 = vpop.xlane.xlu0 %2201
      %2203 = vadd.xlane.f32.xlu0 %v2172
      %v2204 = vpop.xlane.xlu0 %2203
      %2205 = vadd.xlane.f32.xlu0 %v2174
      %v2206 = vpop.xlane.xlu0 %2205
      %2207 = vadd.xlane.f32.xlu0 %v2176
      %v2208 = vpop.xlane.xlu0 %2207
      %2209 = vadd.xlane.f32.xlu0 %v2178
      %v2210 = vpop.xlane.xlu0 %2209
      %2211 = vadd.xlane.f32.xlu0 %v2180
      %v2212 = vpop.xlane.xlu0 %2211
      %2213 = vadd.xlane.f32.xlu0 %v2182
      %v2214 = vpop.xlane.xlu0 %2213
      %2215 = vadd.xlane.f32.xlu0 %v2184
      %v2216 = vpop.xlane.xlu0 %2215
      %2217 = vadd.xlane.f32.xlu0 %v2186
      %v2218 = vpop.xlane.xlu0 %2217
      %2219 = vadd.xlane.f32.xlu0 %v2188
      %v2220 = vpop.xlane.xlu0 %2219
      %2221 = vadd.xlane.f32.xlu0 %v2190
      %v2222 = vpop.xlane.xlu0 %2221
      %2223 = vadd.xlane.f32.xlu0 %v2192
      %v2224 = vpop.xlane.xlu0 %2223
      %2225 = vadd.xlane.f32.xlu0 %v2194
      %v2226 = vpop.xlane.xlu0 %2225
      %v2227 = vpack.c.bf16 %v2166, %v2164
      %v2228 = vpack.c.bf16 %v2170, %v2168
      %v2229 = vpack.c.bf16 %v2174, %v2172
      %v2230 = vpack.c.bf16 %v2178, %v2176
      %v2231 = vpack.c.bf16 %v2182, %v2180
      %v2232 = vpack.c.bf16 %v2186, %v2184
      %v2233 = vpack.c.bf16 %v2190, %v2188
      %v2234 = vpack.c.bf16 %v2194, %v2192
      %v2251 = vunpack.c.l.b16 %v486
      %v2252 = vunpack.c.l.b16 %v487
      %v2253 = vunpack.c.l.b16 %v488
      %v2254 = vunpack.c.l.b16 %v489
      %v2255 = vunpack.c.l.b16 %v490
      %v2256 = vunpack.c.l.b16 %v491
      %v2257 = vunpack.c.l.b16 %v492
      %v2258 = vunpack.c.l.b16 %v493
      %v2259 = vunpack.c.l.b16 %v494
      %v2260 = vunpack.c.l.b16 %v495
      %v2261 = vunpack.c.l.b16 %v496
      %v2262 = vunpack.c.l.b16 %v497
      %v2263 = vunpack.c.l.b16 %v498
      %v2264 = vunpack.c.l.b16 %v499
      %v2265 = vunpack.c.l.b16 %v500
      %v2266 = vunpack.c.l.b16 %v501
      %v2267 = vpack.c.b16 %v2252, %v2251
      %v2268 = vpack.c.b16 %v2254, %v2253
      %v2269 = vpack.c.b16 %v2256, %v2255
      %v2270 = vpack.c.b16 %v2258, %v2257
      %v2271 = vpack.c.b16 %v2260, %v2259
      %v2272 = vpack.c.b16 %v2262, %v2261
      %v2273 = vpack.c.b16 %v2264, %v2263
      %v2274 = vpack.c.b16 %v2266, %v2265
      %2283 = vmatpush.bf16.msra.mxu0 %v2274
      %2284 = vmatpush.bf16.msra.mxu0 %v2273
      %2285 = vmatpush.bf16.msra.mxu0 %v2272
      %2286 = vmatpush.bf16.msra.mxu0 %v2271
      %2287 = vmatpush.bf16.msra.mxu0 %v2270
      %2288 = vmatpush.bf16.msra.mxu0 %v2269
      %2289 = vmatpush.bf16.msra.mxu0 %v2268
      %2290 = vmatpush.bf16.msra.mxu0 %v2267
      %2291 = vmatmul.bf16.gmra.mxu0 %v2227
      %v2292 = vpop.f32.mrf.mxu0
      %v2293 = vadd.f32 0.0, %v2292
      %v2294 = vpop.f32.mrf.mxu0
      %v2295 = vadd.f32 0.0, %v2294
      %2296 = vmatmul.bf16.gmra.mxu0 %v2228
      %v2297 = vpop.f32.mrf.mxu0
      %v2298 = vadd.f32 0.0, %v2297
      %v2299 = vpop.f32.mrf.mxu0
      %v2300 = vadd.f32 0.0, %v2299
      %2301 = vmatmul.bf16.gmra.mxu0 %v2229
      %v2302 = vpop.f32.mrf.mxu0
      %v2303 = vadd.f32 0.0, %v2302
      %v2304 = vpop.f32.mrf.mxu0
      %v2305 = vadd.f32 0.0, %v2304
      %2306 = vmatmul.bf16.gmra.mxu0 %v2230
      %v2307 = vpop.f32.mrf.mxu0
      %v2308 = vadd.f32 0.0, %v2307
      %v2309 = vpop.f32.mrf.mxu0
      %v2310 = vadd.f32 0.0, %v2309
      %2311 = vmatmul.bf16.gmra.mxu0 %v2231
      %v2312 = vpop.f32.mrf.mxu0
      %v2313 = vadd.f32 0.0, %v2312
      %v2314 = vpop.f32.mrf.mxu0
      %v2315 = vadd.f32 0.0, %v2314
      %2316 = vmatmul.bf16.gmra.mxu0 %v2232
      %v2317 = vpop.f32.mrf.mxu0
      %v2318 = vadd.f32 0.0, %v2317
      %v2319 = vpop.f32.mrf.mxu0
      %v2320 = vadd.f32 0.0, %v2319
      %2321 = vmatmul.bf16.gmra.mxu0 %v2233
      %v2322 = vpop.f32.mrf.mxu0
      %v2323 = vadd.f32 0.0, %v2322
      %v2324 = vpop.f32.mrf.mxu0
      %v2325 = vadd.f32 0.0, %v2324
      %2326 = vmatmul.bf16.gmra.mxu0 %v2234
      %v2327 = vpop.f32.mrf.mxu0
      %v2328 = vadd.f32 0.0, %v2327
      %v2329 = vpop.f32.mrf.mxu0
      %v2330 = vadd.f32 0.0, %v2329
      %2331 = vdwg.mxu0
      %v2332 = vrcp.pop %v2196
      %v2333 = vrcp.pop %v2198
      %v2334 = vrcp.pop %v2200
      %v2335 = vrcp.pop %v2202
      %v2336 = vrcp.pop %v2204
      %v2337 = vrcp.pop %v2206
      %v2338 = vrcp.pop %v2208
      %v2339 = vrcp.pop %v2210
      %v2340 = vrcp.pop %v2212
      %v2341 = vrcp.pop %v2214
      %v2342 = vrcp.pop %v2216
      %v2343 = vrcp.pop %v2218
      %v2344 = vrcp.pop %v2220
      %v2345 = vrcp.pop %v2222
      %v2346 = vrcp.pop %v2224
      %v2347 = vrcp.pop %v2226
      %v2348 = vmul.f32 %v2293, %v2332
      %v2349 = vmul.f32 %v2295, %v2333
      %v2350 = vmul.f32 %v2298, %v2334
      %v2351 = vmul.f32 %v2300, %v2335
      %v2352 = vmul.f32 %v2303, %v2336
      %v2353 = vmul.f32 %v2305, %v2337
      %v2354 = vmul.f32 %v2308, %v2338
      %v2355 = vmul.f32 %v2310, %v2339
      %v2356 = vmul.f32 %v2313, %v2340
      %v2357 = vmul.f32 %v2315, %v2341
      %v2358 = vmul.f32 %v2318, %v2342
      %v2359 = vmul.f32 %v2320, %v2343
      %v2360 = vmul.f32 %v2323, %v2344
      %v2361 = vmul.f32 %v2325, %v2345
      %v2362 = vmul.f32 %v2328, %v2346
      %v2363 = vmul.f32 %v2330, %v2347
      %2364 = vrot.lane.b32.xlu0 %v1969, 96
      %v2365 = vpop.permute.xlu0 %2364
      %2366 = vrot.lane.b32.xlu0 %v1970, 96
      %v2367 = vpop.permute.xlu0 %2366
      %2368 = vrot.lane.b32.xlu0 %v1971, 96
      %v2369 = vpop.permute.xlu0 %2368
      %2370 = vrot.lane.b32.xlu0 %v1972, 96
      %v2371 = vpop.permute.xlu0 %2370
      %2372 = vrot.lane.b32.xlu0 %v1973, 96
      %v2373 = vpop.permute.xlu0 %2372
      %2374 = vrot.lane.b32.xlu0 %v1974, 96
      %v2375 = vpop.permute.xlu0 %2374
      %2376 = vrot.lane.b32.xlu0 %v1975, 96
      %v2377 = vpop.permute.xlu0 %2376
      %2378 = vrot.lane.b32.xlu0 %v1976, 96
      %v2379 = vpop.permute.xlu0 %2378
      %2380 = vrot.lane.b32.xlu0 %v2009, 96
      %v2381 = vpop.permute.xlu0 %2380
      %2382 = vrot.lane.b32.xlu0 %v2010, 96
      %v2383 = vpop.permute.xlu0 %2382
      %2384 = vrot.lane.b32.xlu0 %v2011, 96
      %v2385 = vpop.permute.xlu0 %2384
      %2386 = vrot.lane.b32.xlu0 %v2012, 96
      %v2387 = vpop.permute.xlu0 %2386
      %2388 = vrot.lane.b32.xlu0 %v2013, 96
      %v2389 = vpop.permute.xlu0 %2388
      %2390 = vrot.lane.b32.xlu0 %v2014, 96
      %v2391 = vpop.permute.xlu0 %2390
      %2392 = vrot.lane.b32.xlu0 %v2015, 96
      %v2393 = vpop.permute.xlu0 %2392
      %2394 = vrot.lane.b32.xlu0 %v2016, 96
      %v2395 = vpop.permute.xlu0 %2394
      %v2397 = vsel %vm2017, %v2365, 0
      %v2400 = vsel %vm2017, %v2367, 0
      %v2403 = vsel %vm2017, %v2369, 0
      %v2406 = vsel %vm2017, %v2371, 0
      %v2409 = vsel %vm2017, %v2373, 0
      %v2412 = vsel %vm2017, %v2375, 0
      %v2415 = vsel %vm2017, %v2377, 0
      %v2418 = vsel %vm2017, %v2379, 0
      %v2421 = vsel %vm2017, %v2381, 0
      %v2424 = vsel %vm2017, %v2383, 0
      %v2427 = vsel %vm2017, %v2385, 0
      %v2430 = vsel %vm2017, %v2387, 0
      %v2433 = vsel %vm2017, %v2389, 0
      %v2436 = vsel %vm2017, %v2391, 0
      %v2439 = vsel %vm2017, %v2393, 0
      %v2442 = vsel %vm2017, %v2395, 0
      %2444 = vmatpush.bf16.xpose.msra.mxu0 %v2442
      %2445 = vmatpush.bf16.xpose.msra.mxu0 %v2439
      %2446 = vmatpush.bf16.xpose.msra.mxu0 %v2436
      %2447 = vmatpush.bf16.xpose.msra.mxu0 %v2433
      %2448 = vmatpush.bf16.xpose.msra.mxu0 %v2430
      %2449 = vmatpush.bf16.xpose.msra.mxu0 %v2427
      %2450 = vmatpush.bf16.xpose.msra.mxu0 %v2424
      %2451 = vmatpush.bf16.xpose.msra.mxu0 %v2421
      %2452 = vmatmul.bf16.gmra.mxu0 %v2397
      %v2453 = vpop.f32.mrf.mxu0
      %v2454 = vadd.f32 %v1935, %v2453
      %v2455 = vpop.f32.mrf.mxu0
      %v2456 = vadd.f32 %v1935, %v2455
      %2457 = vmatmul.bf16.gmra.mxu0 %v2400
      %v2458 = vpop.f32.mrf.mxu0
      %v2459 = vadd.f32 %v1935, %v2458
      %v2460 = vpop.f32.mrf.mxu0
      %v2461 = vadd.f32 %v1935, %v2460
      %2462 = vmatmul.bf16.gmra.mxu0 %v2403
      %v2463 = vpop.f32.mrf.mxu0
      %v2464 = vadd.f32 %v1935, %v2463
      %v2465 = vpop.f32.mrf.mxu0
      %v2466 = vadd.f32 %v1935, %v2465
      %2467 = vmatmul.bf16.gmra.mxu0 %v2406
      %v2468 = vpop.f32.mrf.mxu0
      %v2469 = vadd.f32 %v1935, %v2468
      %v2470 = vpop.f32.mrf.mxu0
      %v2471 = vadd.f32 %v1935, %v2470
      %2472 = vmatmul.bf16.gmra.mxu0 %v2409
      %v2473 = vpop.f32.mrf.mxu0
      %v2474 = vadd.f32 %v1935, %v2473
      %v2475 = vpop.f32.mrf.mxu0
      %v2476 = vadd.f32 %v1935, %v2475
      %2477 = vmatmul.bf16.gmra.mxu0 %v2412
      %v2478 = vpop.f32.mrf.mxu0
      %v2479 = vadd.f32 %v1935, %v2478
      %v2480 = vpop.f32.mrf.mxu0
      %v2481 = vadd.f32 %v1935, %v2480
      %2482 = vmatmul.bf16.gmra.mxu0 %v2415
      %v2483 = vpop.f32.mrf.mxu0
      %v2484 = vadd.f32 %v1935, %v2483
      %v2485 = vpop.f32.mrf.mxu0
      %v2486 = vadd.f32 %v1935, %v2485
      %2487 = vmatmul.bf16.gmra.mxu0 %v2418
      %v2488 = vpop.f32.mrf.mxu0
      %v2489 = vadd.f32 %v1935, %v2488
      %v2490 = vpop.f32.mrf.mxu0
      %v2491 = vadd.f32 %v1935, %v2490
      %2492 = vdwg.mxu0
      %2493 = vmax.xlane.f32.xlu0 %v2454
      %v2494 = vpop.xlane.xlu0 %2493
      %2495 = vmax.xlane.f32.xlu0 %v2456
      %v2496 = vpop.xlane.xlu0 %2495
      %2497 = vmax.xlane.f32.xlu0 %v2459
      %v2498 = vpop.xlane.xlu0 %2497
      %2499 = vmax.xlane.f32.xlu0 %v2461
      %v2500 = vpop.xlane.xlu0 %2499
      %2501 = vmax.xlane.f32.xlu0 %v2464
      %v2502 = vpop.xlane.xlu0 %2501
      %2503 = vmax.xlane.f32.xlu0 %v2466
      %v2504 = vpop.xlane.xlu0 %2503
      %2505 = vmax.xlane.f32.xlu0 %v2469
      %v2506 = vpop.xlane.xlu0 %2505
      %2507 = vmax.xlane.f32.xlu0 %v2471
      %v2508 = vpop.xlane.xlu0 %2507
      %2509 = vmax.xlane.f32.xlu0 %v2474
      %v2510 = vpop.xlane.xlu0 %2509
      %2511 = vmax.xlane.f32.xlu0 %v2476
      %v2512 = vpop.xlane.xlu0 %2511
      %2513 = vmax.xlane.f32.xlu0 %v2479
      %v2514 = vpop.xlane.xlu0 %2513
      %2515 = vmax.xlane.f32.xlu0 %v2481
      %v2516 = vpop.xlane.xlu0 %2515
      %2517 = vmax.xlane.f32.xlu0 %v2484
      %v2518 = vpop.xlane.xlu0 %2517
      %2519 = vmax.xlane.f32.xlu0 %v2486
      %v2520 = vpop.xlane.xlu0 %2519
      %2521 = vmax.xlane.f32.xlu0 %v2489
      %v2522 = vpop.xlane.xlu0 %2521
      %2523 = vmax.xlane.f32.xlu0 %v2491
      %v2524 = vpop.xlane.xlu0 %2523
      %v2525 = vsub.f32 %v2454, %v2494
      %v2526 = vsub.f32 %v2456, %v2496
      %v2527 = vsub.f32 %v2459, %v2498
      %v2528 = vsub.f32 %v2461, %v2500
      %v2529 = vsub.f32 %v2464, %v2502
      %v2530 = vsub.f32 %v2466, %v2504
      %v2531 = vsub.f32 %v2469, %v2506
      %v2532 = vsub.f32 %v2471, %v2508
      %v2533 = vsub.f32 %v2474, %v2510
      %v2534 = vsub.f32 %v2476, %v2512
      %v2535 = vsub.f32 %v2479, %v2514
      %v2536 = vsub.f32 %v2481, %v2516
      %v2537 = vsub.f32 %v2484, %v2518
      %v2538 = vsub.f32 %v2486, %v2520
      %v2539 = vsub.f32 %v2489, %v2522
      %v2540 = vsub.f32 %v2491, %v2524
      %v2541 = vmul.f32 %v2525, 1.442695
      %v2542 = vpow.pop %v2541
      %v2543 = vmul.f32 %v2526, 1.442695
      %v2544 = vpow.pop %v2543
      %v2545 = vmul.f32 %v2527, 1.442695
      %v2546 = vpow.pop %v2545
      %v2547 = vmul.f32 %v2528, 1.442695
      %v2548 = vpow.pop %v2547
      %v2549 = vmul.f32 %v2529, 1.442695
      %v2550 = vpow.pop %v2549
      %v2551 = vmul.f32 %v2530, 1.442695
      %v2552 = vpow.pop %v2551
      %v2553 = vmul.f32 %v2531, 1.442695
      %v2554 = vpow.pop %v2553
      %v2555 = vmul.f32 %v2532, 1.442695
      %v2556 = vpow.pop %v2555
      %v2557 = vmul.f32 %v2533, 1.442695
      %v2558 = vpow.pop %v2557
      %v2559 = vmul.f32 %v2534, 1.442695
      %v2560 = vpow.pop %v2559
      %v2561 = vmul.f32 %v2535, 1.442695
      %v2562 = vpow.pop %v2561
      %v2563 = vmul.f32 %v2536, 1.442695
      %v2564 = vpow.pop %v2563
      %v2565 = vmul.f32 %v2537, 1.442695
      %v2566 = vpow.pop %v2565
      %v2567 = vmul.f32 %v2538, 1.442695
      %v2568 = vpow.pop %v2567
      %v2569 = vmul.f32 %v2539, 1.442695
      %v2570 = vpow.pop %v2569
      %v2571 = vmul.f32 %v2540, 1.442695
      %v2572 = vpow.pop %v2571
      %2573 = vadd.xlane.f32.xlu0 %v2542
      %v2574 = vpop.xlane.xlu0 %2573
      %2575 = vadd.xlane.f32.xlu0 %v2544
      %v2576 = vpop.xlane.xlu0 %2575
      %2577 = vadd.xlane.f32.xlu0 %v2546
      %v2578 = vpop.xlane.xlu0 %2577
      %2579 = vadd.xlane.f32.xlu0 %v2548
      %v2580 = vpop.xlane.xlu0 %2579
      %2581 = vadd.xlane.f32.xlu0 %v2550
      %v2582 = vpop.xlane.xlu0 %2581
      %2583 = vadd.xlane.f32.xlu0 %v2552
      %v2584 = vpop.xlane.xlu0 %2583
      %2585 = vadd.xlane.f32.xlu0 %v2554
      %v2586 = vpop.xlane.xlu0 %2585
      %2587 = vadd.xlane.f32.xlu0 %v2556
      %v2588 = vpop.xlane.xlu0 %2587
      %2589 = vadd.xlane.f32.xlu0 %v2558
      %v2590 = vpop.xlane.xlu0 %2589
      %2591 = vadd.xlane.f32.xlu0 %v2560
      %v2592 = vpop.xlane.xlu0 %2591
      %2593 = vadd.xlane.f32.xlu0 %v2562
      %v2594 = vpop.xlane.xlu0 %2593
      %2595 = vadd.xlane.f32.xlu0 %v2564
      %v2596 = vpop.xlane.xlu0 %2595
      %2597 = vadd.xlane.f32.xlu0 %v2566
      %v2598 = vpop.xlane.xlu0 %2597
      %2599 = vadd.xlane.f32.xlu0 %v2568
      %v2600 = vpop.xlane.xlu0 %2599
      %2601 = vadd.xlane.f32.xlu0 %v2570
      %v2602 = vpop.xlane.xlu0 %2601
      %2603 = vadd.xlane.f32.xlu0 %v2572
      %v2604 = vpop.xlane.xlu0 %2603
      %v2605 = vpack.c.bf16 %v2544, %v2542
      %v2606 = vpack.c.bf16 %v2548, %v2546
      %v2607 = vpack.c.bf16 %v2552, %v2550
      %v2608 = vpack.c.bf16 %v2556, %v2554
      %v2609 = vpack.c.bf16 %v2560, %v2558
      %v2610 = vpack.c.bf16 %v2564, %v2562
      %v2611 = vpack.c.bf16 %v2568, %v2566
      %v2612 = vpack.c.bf16 %v2572, %v2570
      %2613 = vrot.lane.b32.xlu0 %v2267, 96
      %v2614 = vpop.permute.xlu0 %2613
      %2615 = vrot.lane.b32.xlu0 %v2268, 96
      %v2616 = vpop.permute.xlu0 %2615
      %2617 = vrot.lane.b32.xlu0 %v2269, 96
      %v2618 = vpop.permute.xlu0 %2617
      %2619 = vrot.lane.b32.xlu0 %v2270, 96
      %v2620 = vpop.permute.xlu0 %2619
      %2621 = vrot.lane.b32.xlu0 %v2271, 96
      %v2622 = vpop.permute.xlu0 %2621
      %2623 = vrot.lane.b32.xlu0 %v2272, 96
      %v2624 = vpop.permute.xlu0 %2623
      %2625 = vrot.lane.b32.xlu0 %v2273, 96
      %v2626 = vpop.permute.xlu0 %2625
      %2627 = vrot.lane.b32.xlu0 %v2274, 96
      %v2628 = vpop.permute.xlu0 %2627
      %2637 = vmatpush.bf16.msra.mxu0 %v2628
      %2638 = vmatpush.bf16.msra.mxu0 %v2626
      %2639 = vmatpush.bf16.msra.mxu0 %v2624
      %2640 = vmatpush.bf16.msra.mxu0 %v2622
      %2641 = vmatpush.bf16.msra.mxu0 %v2620
      %2642 = vmatpush.bf16.msra.mxu0 %v2618
      %2643 = vmatpush.bf16.msra.mxu0 %v2616
      %2644 = vmatpush.bf16.msra.mxu0 %v2614
      %2645 = vmatmul.bf16.gmra.mxu0 %v2605
      %v2646 = vpop.f32.mrf.mxu0
      %v2647 = vadd.f32 0.0, %v2646
      %v2648 = vpop.f32.mrf.mxu0
      %v2649 = vadd.f32 0.0, %v2648
      %2650 = vmatmul.bf16.gmra.mxu0 %v2606
      %v2651 = vpop.f32.mrf.mxu0
      %v2652 = vadd.f32 0.0, %v2651
      %v2653 = vpop.f32.mrf.mxu0
      %v2654 = vadd.f32 0.0, %v2653
      %2655 = vmatmul.bf16.gmra.mxu0 %v2607
      %v2656 = vpop.f32.mrf.mxu0
      %v2657 = vadd.f32 0.0, %v2656
      %v2658 = vpop.f32.mrf.mxu0
      %v2659 = vadd.f32 0.0, %v2658
      %2660 = vmatmul.bf16.gmra.mxu0 %v2608
      %v2661 = vpop.f32.mrf.mxu0
      %v2662 = vadd.f32 0.0, %v2661
      %v2663 = vpop.f32.mrf.mxu0
      %v2664 = vadd.f32 0.0, %v2663
      %2665 = vmatmul.bf16.gmra.mxu0 %v2609
      %v2666 = vpop.f32.mrf.mxu0
      %v2667 = vadd.f32 0.0, %v2666
      %v2668 = vpop.f32.mrf.mxu0
      %v2669 = vadd.f32 0.0, %v2668
      %2670 = vmatmul.bf16.gmra.mxu0 %v2610
      %v2671 = vpop.f32.mrf.mxu0
      %v2672 = vadd.f32 0.0, %v2671
      %v2673 = vpop.f32.mrf.mxu0
      %v2674 = vadd.f32 0.0, %v2673
      %2675 = vmatmul.bf16.gmra.mxu0 %v2611
      %v2676 = vpop.f32.mrf.mxu0
      %v2677 = vadd.f32 0.0, %v2676
      %v2678 = vpop.f32.mrf.mxu0
      %v2679 = vadd.f32 0.0, %v2678
      %2680 = vmatmul.bf16.gmra.mxu0 %v2612
      %v2681 = vpop.f32.mrf.mxu0
      %v2682 = vadd.f32 0.0, %v2681
      %v2683 = vpop.f32.mrf.mxu0
      %v2684 = vadd.f32 0.0, %v2683
      %2685 = vdwg.mxu0
      %v2686 = vrcp.pop %v2574
      %v2687 = vrcp.pop %v2576
      %v2688 = vrcp.pop %v2578
      %v2689 = vrcp.pop %v2580
      %v2690 = vrcp.pop %v2582
      %v2691 = vrcp.pop %v2584
      %v2692 = vrcp.pop %v2586
      %v2693 = vrcp.pop %v2588
      %v2694 = vrcp.pop %v2590
      %v2695 = vrcp.pop %v2592
      %v2696 = vrcp.pop %v2594
      %v2697 = vrcp.pop %v2596
      %v2698 = vrcp.pop %v2598
      %v2699 = vrcp.pop %v2600
      %v2700 = vrcp.pop %v2602
      %v2701 = vrcp.pop %v2604
      %v2702 = vmul.f32 %v2647, %v2686
      %v2703 = vmul.f32 %v2649, %v2687
      %v2704 = vmul.f32 %v2652, %v2688
      %v2705 = vmul.f32 %v2654, %v2689
      %v2706 = vmul.f32 %v2657, %v2690
      %v2707 = vmul.f32 %v2659, %v2691
      %v2708 = vmul.f32 %v2662, %v2692
      %v2709 = vmul.f32 %v2664, %v2693
      %v2710 = vmul.f32 %v2667, %v2694
      %v2711 = vmul.f32 %v2669, %v2695
      %v2712 = vmul.f32 %v2672, %v2696
      %v2713 = vmul.f32 %v2674, %v2697
      %v2714 = vmul.f32 %v2677, %v2698
      %v2715 = vmul.f32 %v2679, %v2699
      %v2716 = vmul.f32 %v2682, %v2700
      %v2717 = vmul.f32 %v2684, %v2701
      %2718 = vrot.lane.b32.xlu0 %v1969, 64
      %v2719 = vpop.permute.xlu0 %2718
      %2720 = vrot.lane.b32.xlu0 %v1970, 64
      %v2721 = vpop.permute.xlu0 %2720
      %2722 = vrot.lane.b32.xlu0 %v1971, 64
      %v2723 = vpop.permute.xlu0 %2722
      %2724 = vrot.lane.b32.xlu0 %v1972, 64
      %v2725 = vpop.permute.xlu0 %2724
      %2726 = vrot.lane.b32.xlu0 %v1973, 64
      %v2727 = vpop.permute.xlu0 %2726
      %2728 = vrot.lane.b32.xlu0 %v1974, 64
      %v2729 = vpop.permute.xlu0 %2728
      %2730 = vrot.lane.b32.xlu0 %v1975, 64
      %v2731 = vpop.permute.xlu0 %2730
      %2732 = vrot.lane.b32.xlu0 %v1976, 64
      %v2733 = vpop.permute.xlu0 %2732
      %2734 = vrot.lane.b32.xlu0 %v2009, 64
      %v2735 = vpop.permute.xlu0 %2734
      %2736 = vrot.lane.b32.xlu0 %v2010, 64
      %v2737 = vpop.permute.xlu0 %2736
      %2738 = vrot.lane.b32.xlu0 %v2011, 64
      %v2739 = vpop.permute.xlu0 %2738
      %2740 = vrot.lane.b32.xlu0 %v2012, 64
      %v2741 = vpop.permute.xlu0 %2740
      %2742 = vrot.lane.b32.xlu0 %v2013, 64
      %v2743 = vpop.permute.xlu0 %2742
      %2744 = vrot.lane.b32.xlu0 %v2014, 64
      %v2745 = vpop.permute.xlu0 %2744
      %2746 = vrot.lane.b32.xlu0 %v2015, 64
      %v2747 = vpop.permute.xlu0 %2746
      %2748 = vrot.lane.b32.xlu0 %v2016, 64
      %v2749 = vpop.permute.xlu0 %2748
      %v2751 = vsel %vm2017, %v2719, 0
      %v2754 = vsel %vm2017, %v2721, 0
      %v2757 = vsel %vm2017, %v2723, 0
      %v2760 = vsel %vm2017, %v2725, 0
      %v2763 = vsel %vm2017, %v2727, 0
      %v2766 = vsel %vm2017, %v2729, 0
      %v2769 = vsel %vm2017, %v2731, 0
      %v2772 = vsel %vm2017, %v2733, 0
      %v2775 = vsel %vm2017, %v2735, 0
      %v2778 = vsel %vm2017, %v2737, 0
      %v2781 = vsel %vm2017, %v2739, 0
      %v2784 = vsel %vm2017, %v2741, 0
      %v2787 = vsel %vm2017, %v2743, 0
      %v2790 = vsel %vm2017, %v2745, 0
      %v2793 = vsel %vm2017, %v2747, 0
      %v2796 = vsel %vm2017, %v2749, 0
      %2798 = vmatpush.bf16.xpose.msra.mxu0 %v2796
      %2799 = vmatpush.bf16.xpose.msra.mxu0 %v2793
      %2800 = vmatpush.bf16.xpose.msra.mxu0 %v2790
      %2801 = vmatpush.bf16.xpose.msra.mxu0 %v2787
      %2802 = vmatpush.bf16.xpose.msra.mxu0 %v2784
      %2803 = vmatpush.bf16.xpose.msra.mxu0 %v2781
      %2804 = vmatpush.bf16.xpose.msra.mxu0 %v2778
      %2805 = vmatpush.bf16.xpose.msra.mxu0 %v2775
      %2806 = vmatmul.bf16.gmra.mxu0 %v2751
      %v2807 = vpop.f32.mrf.mxu0
      %v2808 = vadd.f32 %v1935, %v2807
      %v2809 = vpop.f32.mrf.mxu0
      %v2810 = vadd.f32 %v1935, %v2809
      %2811 = vmatmul.bf16.gmra.mxu0 %v2754
      %v2812 = vpop.f32.mrf.mxu0
      %v2813 = vadd.f32 %v1935, %v2812
      %v2814 = vpop.f32.mrf.mxu0
      %v2815 = vadd.f32 %v1935, %v2814
      %2816 = vmatmul.bf16.gmra.mxu0 %v2757
      %v2817 = vpop.f32.mrf.mxu0
      %v2818 = vadd.f32 %v1935, %v2817
      %v2819 = vpop.f32.mrf.mxu0
      %v2820 = vadd.f32 %v1935, %v2819
      %2821 = vmatmul.bf16.gmra.mxu0 %v2760
      %v2822 = vpop.f32.mrf.mxu0
      %v2823 = vadd.f32 %v1935, %v2822
      %v2824 = vpop.f32.mrf.mxu0
      %v2825 = vadd.f32 %v1935, %v2824
      %2826 = vmatmul.bf16.gmra.mxu0 %v2763
      %v2827 = vpop.f32.mrf.mxu0
      %v2828 = vadd.f32 %v1935, %v2827
      %v2829 = vpop.f32.mrf.mxu0
      %v2830 = vadd.f32 %v1935, %v2829
      %2831 = vmatmul.bf16.gmra.mxu0 %v2766
      %v2832 = vpop.f32.mrf.mxu0
      %v2833 = vadd.f32 %v1935, %v2832
      %v2834 = vpop.f32.mrf.mxu0
      %v2835 = vadd.f32 %v1935, %v2834
      %2836 = vmatmul.bf16.gmra.mxu0 %v2769
      %v2837 = vpop.f32.mrf.mxu0
      %v2838 = vadd.f32 %v1935, %v2837
      %v2839 = vpop.f32.mrf.mxu0
      %v2840 = vadd.f32 %v1935, %v2839
      %2841 = vmatmul.bf16.gmra.mxu0 %v2772
      %v2842 = vpop.f32.mrf.mxu0
      %v2843 = vadd.f32 %v1935, %v2842
      %v2844 = vpop.f32.mrf.mxu0
      %v2845 = vadd.f32 %v1935, %v2844
      %2846 = vdwg.mxu0
      %2847 = vmax.xlane.f32.xlu0 %v2808
      %v2848 = vpop.xlane.xlu0 %2847
      %2849 = vmax.xlane.f32.xlu0 %v2810
      %v2850 = vpop.xlane.xlu0 %2849
      %2851 = vmax.xlane.f32.xlu0 %v2813
      %v2852 = vpop.xlane.xlu0 %2851
      %2853 = vmax.xlane.f32.xlu0 %v2815
      %v2854 = vpop.xlane.xlu0 %2853
      %2855 = vmax.xlane.f32.xlu0 %v2818
      %v2856 = vpop.xlane.xlu0 %2855
      %2857 = vmax.xlane.f32.xlu0 %v2820
      %v2858 = vpop.xlane.xlu0 %2857
      %2859 = vmax.xlane.f32.xlu0 %v2823
      %v2860 = vpop.xlane.xlu0 %2859
      %2861 = vmax.xlane.f32.xlu0 %v2825
      %v2862 = vpop.xlane.xlu0 %2861
      %2863 = vmax.xlane.f32.xlu0 %v2828
      %v2864 = vpop.xlane.xlu0 %2863
      %2865 = vmax.xlane.f32.xlu0 %v2830
      %v2866 = vpop.xlane.xlu0 %2865
      %2867 = vmax.xlane.f32.xlu0 %v2833
      %v2868 = vpop.xlane.xlu0 %2867
      %2869 = vmax.xlane.f32.xlu0 %v2835
      %v2870 = vpop.xlane.xlu0 %2869
      %2871 = vmax.xlane.f32.xlu0 %v2838
      %v2872 = vpop.xlane.xlu0 %2871
      %2873 = vmax.xlane.f32.xlu0 %v2840
      %v2874 = vpop.xlane.xlu0 %2873
      %2875 = vmax.xlane.f32.xlu0 %v2843
      %v2876 = vpop.xlane.xlu0 %2875
      %2877 = vmax.xlane.f32.xlu0 %v2845
      %v2878 = vpop.xlane.xlu0 %2877
      %v2879 = vsub.f32 %v2808, %v2848
      %v2880 = vsub.f32 %v2810, %v2850
      %v2881 = vsub.f32 %v2813, %v2852
      %v2882 = vsub.f32 %v2815, %v2854
      %v2883 = vsub.f32 %v2818, %v2856
      %v2884 = vsub.f32 %v2820, %v2858
      %v2885 = vsub.f32 %v2823, %v2860
      %v2886 = vsub.f32 %v2825, %v2862
      %v2887 = vsub.f32 %v2828, %v2864
      %v2888 = vsub.f32 %v2830, %v2866
      %v2889 = vsub.f32 %v2833, %v2868
      %v2890 = vsub.f32 %v2835, %v2870
      %v2891 = vsub.f32 %v2838, %v2872
      %v2892 = vsub.f32 %v2840, %v2874
      %v2893 = vsub.f32 %v2843, %v2876
      %v2894 = vsub.f32 %v2845, %v2878
      %v2895 = vmul.f32 %v2879, 1.442695
      %v2896 = vpow.pop %v2895
      %v2897 = vmul.f32 %v2880, 1.442695
      %v2898 = vpow.pop %v2897
      %v2899 = vmul.f32 %v2881, 1.442695
      %v2900 = vpow.pop %v2899
      %v2901 = vmul.f32 %v2882, 1.442695
      %v2902 = vpow.pop %v2901
      %v2903 = vmul.f32 %v2883, 1.442695
      %v2904 = vpow.pop %v2903
      %v2905 = vmul.f32 %v2884, 1.442695
      %v2906 = vpow.pop %v2905
      %v2907 = vmul.f32 %v2885, 1.442695
      %v2908 = vpow.pop %v2907
      %v2909 = vmul.f32 %v2886, 1.442695
      %v2910 = vpow.pop %v2909
      %v2911 = vmul.f32 %v2887, 1.442695
      %v2912 = vpow.pop %v2911
      %v2913 = vmul.f32 %v2888, 1.442695
      %v2914 = vpow.pop %v2913
      %v2915 = vmul.f32 %v2889, 1.442695
      %v2916 = vpow.pop %v2915
      %v2917 = vmul.f32 %v2890, 1.442695
      %v2918 = vpow.pop %v2917
      %v2919 = vmul.f32 %v2891, 1.442695
      %v2920 = vpow.pop %v2919
      %v2921 = vmul.f32 %v2892, 1.442695
      %v2922 = vpow.pop %v2921
      %v2923 = vmul.f32 %v2893, 1.442695
      %v2924 = vpow.pop %v2923
      %v2925 = vmul.f32 %v2894, 1.442695
      %v2926 = vpow.pop %v2925
      %2927 = vadd.xlane.f32.xlu0 %v2896
      %v2928 = vpop.xlane.xlu0 %2927
      %2929 = vadd.xlane.f32.xlu0 %v2898
      %v2930 = vpop.xlane.xlu0 %2929
      %2931 = vadd.xlane.f32.xlu0 %v2900
      %v2932 = vpop.xlane.xlu0 %2931
      %2933 = vadd.xlane.f32.xlu0 %v2902
      %v2934 = vpop.xlane.xlu0 %2933
      %2935 = vadd.xlane.f32.xlu0 %v2904
      %v2936 = vpop.xlane.xlu0 %2935
      %2937 = vadd.xlane.f32.xlu0 %v2906
      %v2938 = vpop.xlane.xlu0 %2937
      %2939 = vadd.xlane.f32.xlu0 %v2908
      %v2940 = vpop.xlane.xlu0 %2939
      %2941 = vadd.xlane.f32.xlu0 %v2910
      %v2942 = vpop.xlane.xlu0 %2941
      %2943 = vadd.xlane.f32.xlu0 %v2912
      %v2944 = vpop.xlane.xlu0 %2943
      %2945 = vadd.xlane.f32.xlu0 %v2914
      %v2946 = vpop.xlane.xlu0 %2945
      %2947 = vadd.xlane.f32.xlu0 %v2916
      %v2948 = vpop.xlane.xlu0 %2947
      %2949 = vadd.xlane.f32.xlu0 %v2918
      %v2950 = vpop.xlane.xlu0 %2949
      %2951 = vadd.xlane.f32.xlu0 %v2920
      %v2952 = vpop.xlane.xlu0 %2951
      %2953 = vadd.xlane.f32.xlu0 %v2922
      %v2954 = vpop.xlane.xlu0 %2953
      %2955 = vadd.xlane.f32.xlu0 %v2924
      %v2956 = vpop.xlane.xlu0 %2955
      %2957 = vadd.xlane.f32.xlu0 %v2926
      %v2958 = vpop.xlane.xlu0 %2957
      %v2959 = vpack.c.bf16 %v2898, %v2896
      %v2960 = vpack.c.bf16 %v2902, %v2900
      %v2961 = vpack.c.bf16 %v2906, %v2904
      %v2962 = vpack.c.bf16 %v2910, %v2908
      %v2963 = vpack.c.bf16 %v2914, %v2912
      %v2964 = vpack.c.bf16 %v2918, %v2916
      %v2965 = vpack.c.bf16 %v2922, %v2920
      %v2966 = vpack.c.bf16 %v2926, %v2924
      %2967 = vrot.lane.b32.xlu0 %v2267, 64
      %v2968 = vpop.permute.xlu0 %2967
      %2969 = vrot.lane.b32.xlu0 %v2268, 64
      %v2970 = vpop.permute.xlu0 %2969
      %2971 = vrot.lane.b32.xlu0 %v2269, 64
      %v2972 = vpop.permute.xlu0 %2971
      %2973 = vrot.lane.b32.xlu0 %v2270, 64
      %v2974 = vpop.permute.xlu0 %2973
      %2975 = vrot.lane.b32.xlu0 %v2271, 64
      %v2976 = vpop.permute.xlu0 %2975
      %2977 = vrot.lane.b32.xlu0 %v2272, 64
      %v2978 = vpop.permute.xlu0 %2977
      %2979 = vrot.lane.b32.xlu0 %v2273, 64
      %v2980 = vpop.permute.xlu0 %2979
      %2981 = vrot.lane.b32.xlu0 %v2274, 64
      %v2982 = vpop.permute.xlu0 %2981
      %2991 = vmatpush.bf16.msra.mxu0 %v2982
      %2992 = vmatpush.bf16.msra.mxu0 %v2980
      %2993 = vmatpush.bf16.msra.mxu0 %v2978
      %2994 = vmatpush.bf16.msra.mxu0 %v2976
      %2995 = vmatpush.bf16.msra.mxu0 %v2974
      %2996 = vmatpush.bf16.msra.mxu0 %v2972
      %2997 = vmatpush.bf16.msra.mxu0 %v2970
      %2998 = vmatpush.bf16.msra.mxu0 %v2968
      %2999 = vmatmul.bf16.gmra.mxu0 %v2959
      %v3000 = vpop.f32.mrf.mxu0
      %v3001 = vadd.f32 0.0, %v3000
      %v3002 = vpop.f32.mrf.mxu0
      %v3003 = vadd.f32 0.0, %v3002
      %3004 = vmatmul.bf16.gmra.mxu0 %v2960
      %v3005 = vpop.f32.mrf.mxu0
      %v3006 = vadd.f32 0.0, %v3005
      %v3007 = vpop.f32.mrf.mxu0
      %v3008 = vadd.f32 0.0, %v3007
      %3009 = vmatmul.bf16.gmra.mxu0 %v2961
      %v3010 = vpop.f32.mrf.mxu0
      %v3011 = vadd.f32 0.0, %v3010
      %v3012 = vpop.f32.mrf.mxu0
      %v3013 = vadd.f32 0.0, %v3012
      %3014 = vmatmul.bf16.gmra.mxu0 %v2962
      %v3015 = vpop.f32.mrf.mxu0
      %v3016 = vadd.f32 0.0, %v3015
      %v3017 = vpop.f32.mrf.mxu0
      %v3018 = vadd.f32 0.0, %v3017
      %3019 = vmatmul.bf16.gmra.mxu0 %v2963
      %v3020 = vpop.f32.mrf.mxu0
      %v3021 = vadd.f32 0.0, %v3020
      %v3022 = vpop.f32.mrf.mxu0
      %v3023 = vadd.f32 0.0, %v3022
      %3024 = vmatmul.bf16.gmra.mxu0 %v2964
      %v3025 = vpop.f32.mrf.mxu0
      %v3026 = vadd.f32 0.0, %v3025
      %v3027 = vpop.f32.mrf.mxu0
      %v3028 = vadd.f32 0.0, %v3027
      %3029 = vmatmul.bf16.gmra.mxu0 %v2965
      %v3030 = vpop.f32.mrf.mxu0
      %v3031 = vadd.f32 0.0, %v3030
      %v3032 = vpop.f32.mrf.mxu0
      %v3033 = vadd.f32 0.0, %v3032
      %3034 = vmatmul.bf16.gmra.mxu0 %v2966
      %v3035 = vpop.f32.mrf.mxu0
      %v3036 = vadd.f32 0.0, %v3035
      %v3037 = vpop.f32.mrf.mxu0
      %v3038 = vadd.f32 0.0, %v3037
      %3039 = vdwg.mxu0
      %v3040 = vrcp.pop %v2928
      %v3041 = vrcp.pop %v2930
      %v3042 = vrcp.pop %v2932
      %v3043 = vrcp.pop %v2934
      %v3044 = vrcp.pop %v2936
      %v3045 = vrcp.pop %v2938
      %v3046 = vrcp.pop %v2940
      %v3047 = vrcp.pop %v2942
      %v3048 = vrcp.pop %v2944
      %v3049 = vrcp.pop %v2946
      %v3050 = vrcp.pop %v2948
      %v3051 = vrcp.pop %v2950
      %v3052 = vrcp.pop %v2952
      %v3053 = vrcp.pop %v2954
      %v3054 = vrcp.pop %v2956
      %v3055 = vrcp.pop %v2958
      %v3056 = vmul.f32 %v3001, %v3040
      %v3057 = vmul.f32 %v3003, %v3041
      %v3058 = vmul.f32 %v3006, %v3042
      %v3059 = vmul.f32 %v3008, %v3043
      %v3060 = vmul.f32 %v3011, %v3044
      %v3061 = vmul.f32 %v3013, %v3045
      %v3062 = vmul.f32 %v3016, %v3046
      %v3063 = vmul.f32 %v3018, %v3047
      %v3064 = vmul.f32 %v3021, %v3048
      %v3065 = vmul.f32 %v3023, %v3049
      %v3066 = vmul.f32 %v3026, %v3050
      %v3067 = vmul.f32 %v3028, %v3051
      %v3068 = vmul.f32 %v3031, %v3052
      %v3069 = vmul.f32 %v3033, %v3053
      %v3070 = vmul.f32 %v3036, %v3054
      %v3071 = vmul.f32 %v3038, %v3055
      %3072 = vrot.lane.b32.xlu0 %v1969, 32
      %v3073 = vpop.permute.xlu0 %3072
      %3074 = vrot.lane.b32.xlu0 %v1970, 32
      %v3075 = vpop.permute.xlu0 %3074
      %3076 = vrot.lane.b32.xlu0 %v1971, 32
      %v3077 = vpop.permute.xlu0 %3076
      %3078 = vrot.lane.b32.xlu0 %v1972, 32
      %v3079 = vpop.permute.xlu0 %3078
      %3080 = vrot.lane.b32.xlu0 %v1973, 32
      %v3081 = vpop.permute.xlu0 %3080
      %3082 = vrot.lane.b32.xlu0 %v1974, 32
      %v3083 = vpop.permute.xlu0 %3082
      %3084 = vrot.lane.b32.xlu0 %v1975, 32
      %v3085 = vpop.permute.xlu0 %3084
      %3086 = vrot.lane.b32.xlu0 %v1976, 32
      %v3087 = vpop.permute.xlu0 %3086
      %3088 = vrot.lane.b32.xlu0 %v2009, 32
      %v3089 = vpop.permute.xlu0 %3088
      %3090 = vrot.lane.b32.xlu0 %v2010, 32
      %v3091 = vpop.permute.xlu0 %3090
      %3092 = vrot.lane.b32.xlu0 %v2011, 32
      %v3093 = vpop.permute.xlu0 %3092
      %3094 = vrot.lane.b32.xlu0 %v2012, 32
      %v3095 = vpop.permute.xlu0 %3094
      %3096 = vrot.lane.b32.xlu0 %v2013, 32
      %v3097 = vpop.permute.xlu0 %3096
      %3098 = vrot.lane.b32.xlu0 %v2014, 32
      %v3099 = vpop.permute.xlu0 %3098
      %3100 = vrot.lane.b32.xlu0 %v2015, 32
      %v3101 = vpop.permute.xlu0 %3100
      %3102 = vrot.lane.b32.xlu0 %v2016, 32
      %v3103 = vpop.permute.xlu0 %3102
      %v3105 = vsel %vm2017, %v3073, 0
      %v3108 = vsel %vm2017, %v3075, 0
      %v3111 = vsel %vm2017, %v3077, 0
      %v3114 = vsel %vm2017, %v3079, 0
      %v3117 = vsel %vm2017, %v3081, 0
      %v3120 = vsel %vm2017, %v3083, 0
      %v3123 = vsel %vm2017, %v3085, 0
      %v3126 = vsel %vm2017, %v3087, 0
      %v3129 = vsel %vm2017, %v3089, 0
      %v3132 = vsel %vm2017, %v3091, 0
      %v3135 = vsel %vm2017, %v3093, 0
      %v3138 = vsel %vm2017, %v3095, 0
      %v3141 = vsel %vm2017, %v3097, 0
      %v3144 = vsel %vm2017, %v3099, 0
      %v3147 = vsel %vm2017, %v3101, 0
      %v3150 = vsel %vm2017, %v3103, 0
      %3152 = vmatpush.bf16.xpose.msra.mxu0 %v3150
      %3153 = vmatpush.bf16.xpose.msra.mxu0 %v3147
      %3154 = vmatpush.bf16.xpose.msra.mxu0 %v3144
      %3155 = vmatpush.bf16.xpose.msra.mxu0 %v3141
      %3156 = vmatpush.bf16.xpose.msra.mxu0 %v3138
      %3157 = vmatpush.bf16.xpose.msra.mxu0 %v3135
      %3158 = vmatpush.bf16.xpose.msra.mxu0 %v3132
      %3159 = vmatpush.bf16.xpose.msra.mxu0 %v3129
      %3160 = vmatmul.bf16.gmra.mxu0 %v3105
      %v3161 = vpop.f32.mrf.mxu0
      %v3162 = vadd.f32 %v1935, %v3161
      %v3163 = vpop.f32.mrf.mxu0
      %v3164 = vadd.f32 %v1935, %v3163
      %3165 = vmatmul.bf16.gmra.mxu0 %v3108
      %v3166 = vpop.f32.mrf.mxu0
      %v3167 = vadd.f32 %v1935, %v3166
      %v3168 = vpop.f32.mrf.mxu0
      %v3169 = vadd.f32 %v1935, %v3168
      %3170 = vmatmul.bf16.gmra.mxu0 %v3111
      %v3171 = vpop.f32.mrf.mxu0
      %v3172 = vadd.f32 %v1935, %v3171
      %v3173 = vpop.f32.mrf.mxu0
      %v3174 = vadd.f32 %v1935, %v3173
      %3175 = vmatmul.bf16.gmra.mxu0 %v3114
      %v3176 = vpop.f32.mrf.mxu0
      %v3177 = vadd.f32 %v1935, %v3176
      %v3178 = vpop.f32.mrf.mxu0
      %v3179 = vadd.f32 %v1935, %v3178
      %3180 = vmatmul.bf16.gmra.mxu0 %v3117
      %v3181 = vpop.f32.mrf.mxu0
      %v3182 = vadd.f32 %v1935, %v3181
      %v3183 = vpop.f32.mrf.mxu0
      %v3184 = vadd.f32 %v1935, %v3183
      %3185 = vmatmul.bf16.gmra.mxu0 %v3120
      %v3186 = vpop.f32.mrf.mxu0
      %v3187 = vadd.f32 %v1935, %v3186
      %v3188 = vpop.f32.mrf.mxu0
      %v3189 = vadd.f32 %v1935, %v3188
      %3190 = vmatmul.bf16.gmra.mxu0 %v3123
      %v3191 = vpop.f32.mrf.mxu0
      %v3192 = vadd.f32 %v1935, %v3191
      %v3193 = vpop.f32.mrf.mxu0
      %v3194 = vadd.f32 %v1935, %v3193
      %3195 = vmatmul.bf16.gmra.mxu0 %v3126
      %v3196 = vpop.f32.mrf.mxu0
      %v3197 = vadd.f32 %v1935, %v3196
      %v3198 = vpop.f32.mrf.mxu0
      %v3199 = vadd.f32 %v1935, %v3198
      %3200 = vdwg.mxu0
      %3201 = vmax.xlane.f32.xlu0 %v3162
      %v3202 = vpop.xlane.xlu0 %3201
      %3203 = vmax.xlane.f32.xlu0 %v3164
      %v3204 = vpop.xlane.xlu0 %3203
      %3205 = vmax.xlane.f32.xlu0 %v3167
      %v3206 = vpop.xlane.xlu0 %3205
      %3207 = vmax.xlane.f32.xlu0 %v3169
      %v3208 = vpop.xlane.xlu0 %3207
      %3209 = vmax.xlane.f32.xlu0 %v3172
      %v3210 = vpop.xlane.xlu0 %3209
      %3211 = vmax.xlane.f32.xlu0 %v3174
      %v3212 = vpop.xlane.xlu0 %3211
      %3213 = vmax.xlane.f32.xlu0 %v3177
      %v3214 = vpop.xlane.xlu0 %3213
      %3215 = vmax.xlane.f32.xlu0 %v3179
      %v3216 = vpop.xlane.xlu0 %3215
      %3217 = vmax.xlane.f32.xlu0 %v3182
      %v3218 = vpop.xlane.xlu0 %3217
      %3219 = vmax.xlane.f32.xlu0 %v3184
      %v3220 = vpop.xlane.xlu0 %3219
      %3221 = vmax.xlane.f32.xlu0 %v3187
      %v3222 = vpop.xlane.xlu0 %3221
      %3223 = vmax.xlane.f32.xlu0 %v3189
      %v3224 = vpop.xlane.xlu0 %3223
      %3225 = vmax.xlane.f32.xlu0 %v3192
      %v3226 = vpop.xlane.xlu0 %3225
      %3227 = vmax.xlane.f32.xlu0 %v3194
      %v3228 = vpop.xlane.xlu0 %3227
      %3229 = vmax.xlane.f32.xlu0 %v3197
      %v3230 = vpop.xlane.xlu0 %3229
      %3231 = vmax.xlane.f32.xlu0 %v3199
      %v3232 = vpop.xlane.xlu0 %3231
      %v3233 = vsub.f32 %v3162, %v3202
      %v3234 = vsub.f32 %v3164, %v3204
      %v3235 = vsub.f32 %v3167, %v3206
      %v3236 = vsub.f32 %v3169, %v3208
      %v3237 = vsub.f32 %v3172, %v3210
      %v3238 = vsub.f32 %v3174, %v3212
      %v3239 = vsub.f32 %v3177, %v3214
      %v3240 = vsub.f32 %v3179, %v3216
      %v3241 = vsub.f32 %v3182, %v3218
      %v3242 = vsub.f32 %v3184, %v3220
      %v3243 = vsub.f32 %v3187, %v3222
      %v3244 = vsub.f32 %v3189, %v3224
      %v3245 = vsub.f32 %v3192, %v3226
      %v3246 = vsub.f32 %v3194, %v3228
      %v3247 = vsub.f32 %v3197, %v3230
      %v3248 = vsub.f32 %v3199, %v3232
      %v3249 = vmul.f32 %v3233, 1.442695
      %v3250 = vpow.pop %v3249
      %v3251 = vmul.f32 %v3234, 1.442695
      %v3252 = vpow.pop %v3251
      %v3253 = vmul.f32 %v3235, 1.442695
      %v3254 = vpow.pop %v3253
      %v3255 = vmul.f32 %v3236, 1.442695
      %v3256 = vpow.pop %v3255
      %v3257 = vmul.f32 %v3237, 1.442695
      %v3258 = vpow.pop %v3257
      %v3259 = vmul.f32 %v3238, 1.442695
      %v3260 = vpow.pop %v3259
      %v3261 = vmul.f32 %v3239, 1.442695
      %v3262 = vpow.pop %v3261
      %v3263 = vmul.f32 %v3240, 1.442695
      %v3264 = vpow.pop %v3263
      %v3265 = vmul.f32 %v3241, 1.442695
      %v3266 = vpow.pop %v3265
      %v3267 = vmul.f32 %v3242, 1.442695
      %v3268 = vpow.pop %v3267
      %v3269 = vmul.f32 %v3243, 1.442695
      %v3270 = vpow.pop %v3269
      %v3271 = vmul.f32 %v3244, 1.442695
      %v3272 = vpow.pop %v3271
      %v3273 = vmul.f32 %v3245, 1.442695
      %v3274 = vpow.pop %v3273
      %v3275 = vmul.f32 %v3246, 1.442695
      %v3276 = vpow.pop %v3275
      %v3277 = vmul.f32 %v3247, 1.442695
      %v3278 = vpow.pop %v3277
      %v3279 = vmul.f32 %v3248, 1.442695
      %v3280 = vpow.pop %v3279
      %3281 = vadd.xlane.f32.xlu0 %v3250
      %v3282 = vpop.xlane.xlu0 %3281
      %3283 = vadd.xlane.f32.xlu0 %v3252
      %v3284 = vpop.xlane.xlu0 %3283
      %3285 = vadd.xlane.f32.xlu0 %v3254
      %v3286 = vpop.xlane.xlu0 %3285
      %3287 = vadd.xlane.f32.xlu0 %v3256
      %v3288 = vpop.xlane.xlu0 %3287
      %3289 = vadd.xlane.f32.xlu0 %v3258
      %v3290 = vpop.xlane.xlu0 %3289
      %3291 = vadd.xlane.f32.xlu0 %v3260
      %v3292 = vpop.xlane.xlu0 %3291
      %3293 = vadd.xlane.f32.xlu0 %v3262
      %v3294 = vpop.xlane.xlu0 %3293
      %3295 = vadd.xlane.f32.xlu0 %v3264
      %v3296 = vpop.xlane.xlu0 %3295
      %3297 = vadd.xlane.f32.xlu0 %v3266
      %v3298 = vpop.xlane.xlu0 %3297
      %3299 = vadd.xlane.f32.xlu0 %v3268
      %v3300 = vpop.xlane.xlu0 %3299
      %3301 = vadd.xlane.f32.xlu0 %v3270
      %v3302 = vpop.xlane.xlu0 %3301
      %3303 = vadd.xlane.f32.xlu0 %v3272
      %v3304 = vpop.xlane.xlu0 %3303
      %3305 = vadd.xlane.f32.xlu0 %v3274
      %v3306 = vpop.xlane.xlu0 %3305
      %3307 = vadd.xlane.f32.xlu0 %v3276
      %v3308 = vpop.xlane.xlu0 %3307
      %3309 = vadd.xlane.f32.xlu0 %v3278
      %v3310 = vpop.xlane.xlu0 %3309
      %3311 = vadd.xlane.f32.xlu0 %v3280
      %v3312 = vpop.xlane.xlu0 %3311
      %v3313 = vpack.c.bf16 %v3252, %v3250
      %v3314 = vpack.c.bf16 %v3256, %v3254
      %v3315 = vpack.c.bf16 %v3260, %v3258
      %v3316 = vpack.c.bf16 %v3264, %v3262
      %v3317 = vpack.c.bf16 %v3268, %v3266
      %v3318 = vpack.c.bf16 %v3272, %v3270
      %v3319 = vpack.c.bf16 %v3276, %v3274
      %v3320 = vpack.c.bf16 %v3280, %v3278
      %3321 = vrot.lane.b32.xlu0 %v2267, 32
      %v3322 = vpop.permute.xlu0 %3321
      %3323 = vrot.lane.b32.xlu0 %v2268, 32
      %v3324 = vpop.permute.xlu0 %3323
      %3325 = vrot.lane.b32.xlu0 %v2269, 32
      %v3326 = vpop.permute.xlu0 %3325
      %3327 = vrot.lane.b32.xlu0 %v2270, 32
      %v3328 = vpop.permute.xlu0 %3327
      %3329 = vrot.lane.b32.xlu0 %v2271, 32
      %v3330 = vpop.permute.xlu0 %3329
      %3331 = vrot.lane.b32.xlu0 %v2272, 32
      %v3332 = vpop.permute.xlu0 %3331
      %3333 = vrot.lane.b32.xlu0 %v2273, 32
      %v3334 = vpop.permute.xlu0 %3333
      %3335 = vrot.lane.b32.xlu0 %v2274, 32
      %v3336 = vpop.permute.xlu0 %3335
      %3345 = vmatpush.bf16.msra.mxu0 %v3336
      %3346 = vmatpush.bf16.msra.mxu0 %v3334
      %3347 = vmatpush.bf16.msra.mxu0 %v3332
      %3348 = vmatpush.bf16.msra.mxu0 %v3330
      %3349 = vmatpush.bf16.msra.mxu0 %v3328
      %3350 = vmatpush.bf16.msra.mxu0 %v3326
      %3351 = vmatpush.bf16.msra.mxu0 %v3324
      %3352 = vmatpush.bf16.msra.mxu0 %v3322
      %3353 = vmatmul.bf16.gmra.mxu0 %v3313
      %v3354 = vpop.f32.mrf.mxu0
      %v3355 = vadd.f32 0.0, %v3354
      %v3356 = vpop.f32.mrf.mxu0
      %v3357 = vadd.f32 0.0, %v3356
      %3358 = vmatmul.bf16.gmra.mxu0 %v3314
      %v3359 = vpop.f32.mrf.mxu0
      %v3360 = vadd.f32 0.0, %v3359
      %v3361 = vpop.f32.mrf.mxu0
      %v3362 = vadd.f32 0.0, %v3361
      %3363 = vmatmul.bf16.gmra.mxu0 %v3315
      %v3364 = vpop.f32.mrf.mxu0
      %v3365 = vadd.f32 0.0, %v3364
      %v3366 = vpop.f32.mrf.mxu0
      %v3367 = vadd.f32 0.0, %v3366
      %3368 = vmatmul.bf16.gmra.mxu0 %v3316
      %v3369 = vpop.f32.mrf.mxu0
      %v3370 = vadd.f32 0.0, %v3369
      %v3371 = vpop.f32.mrf.mxu0
      %v3372 = vadd.f32 0.0, %v3371
      %3373 = vmatmul.bf16.gmra.mxu0 %v3317
      %v3374 = vpop.f32.mrf.mxu0
      %v3375 = vadd.f32 0.0, %v3374
      %v3376 = vpop.f32.mrf.mxu0
      %v3377 = vadd.f32 0.0, %v3376
      %3378 = vmatmul.bf16.gmra.mxu0 %v3318
      %v3379 = vpop.f32.mrf.mxu0
      %v3380 = vadd.f32 0.0, %v3379
      %v3381 = vpop.f32.mrf.mxu0
      %v3382 = vadd.f32 0.0, %v3381
      %3383 = vmatmul.bf16.gmra.mxu0 %v3319
      %v3384 = vpop.f32.mrf.mxu0
      %v3385 = vadd.f32 0.0, %v3384
      %v3386 = vpop.f32.mrf.mxu0
      %v3387 = vadd.f32 0.0, %v3386
      %3388 = vmatmul.bf16.gmra.mxu0 %v3320
      %v3389 = vpop.f32.mrf.mxu0
      %v3390 = vadd.f32 0.0, %v3389
      %v3391 = vpop.f32.mrf.mxu0
      %v3392 = vadd.f32 0.0, %v3391
      %3393 = vdwg.mxu0
      %v3394 = vrcp.pop %v3282
      %v3395 = vrcp.pop %v3284
      %v3396 = vrcp.pop %v3286
      %v3397 = vrcp.pop %v3288
      %v3398 = vrcp.pop %v3290
      %v3399 = vrcp.pop %v3292
      %v3400 = vrcp.pop %v3294
      %v3401 = vrcp.pop %v3296
      %v3402 = vrcp.pop %v3298
      %v3403 = vrcp.pop %v3300
      %v3404 = vrcp.pop %v3302
      %v3405 = vrcp.pop %v3304
      %v3406 = vrcp.pop %v3306
      %v3407 = vrcp.pop %v3308
      %v3408 = vrcp.pop %v3310
      %v3409 = vrcp.pop %v3312
      %v3410 = vmul.f32 %v3355, %v3394
      %v3411 = vmul.f32 %v3357, %v3395
      %v3412 = vmul.f32 %v3360, %v3396
      %v3413 = vmul.f32 %v3362, %v3397
      %v3414 = vmul.f32 %v3365, %v3398
      %v3415 = vmul.f32 %v3367, %v3399
      %v3416 = vmul.f32 %v3370, %v3400
      %v3417 = vmul.f32 %v3372, %v3401
      %v3418 = vmul.f32 %v3375, %v3402
      %v3419 = vmul.f32 %v3377, %v3403
      %v3420 = vmul.f32 %v3380, %v3404
      %v3421 = vmul.f32 %v3382, %v3405
      %v3422 = vmul.f32 %v3385, %v3406
      %v3423 = vmul.f32 %v3387, %v3407
      %v3424 = vmul.f32 %v3390, %v3408
      %v3425 = vmul.f32 %v3392, %v3409
      %v3426 = vunpack.c.h.b16 %v1918
      %v3427 = vunpack.c.h.b16 %v1919
      %v3428 = vunpack.c.h.b16 %v1920
      %v3429 = vunpack.c.h.b16 %v1921
      %v3430 = vunpack.c.h.b16 %v1922
      %v3431 = vunpack.c.h.b16 %v1923
      %v3432 = vunpack.c.h.b16 %v1924
      %v3433 = vunpack.c.h.b16 %v1925
      %v3434 = vunpack.c.h.b16 %v1926
      %v3435 = vunpack.c.h.b16 %v1927
      %v3436 = vunpack.c.h.b16 %v1928
      %v3437 = vunpack.c.h.b16 %v1929
      %v3438 = vunpack.c.h.b16 %v1930
      %v3439 = vunpack.c.h.b16 %v1931
      %v3440 = vunpack.c.h.b16 %v1932
      %v3441 = vunpack.c.h.b16 %v1933
      %v3442 = vpack.c.b16 %v3427, %v3426
      %v3443 = vpack.c.b16 %v3429, %v3428
      %v3444 = vpack.c.b16 %v3431, %v3430
      %v3445 = vpack.c.b16 %v3433, %v3432
      %v3446 = vpack.c.b16 %v3435, %v3434
      %v3447 = vpack.c.b16 %v3437, %v3436
      %v3448 = vpack.c.b16 %v3439, %v3438
      %v3449 = vpack.c.b16 %v3441, %v3440
      %v3450 = vunpack.c.h.b16 %v468
      %v3451 = vunpack.c.h.b16 %v469
      %v3452 = vunpack.c.h.b16 %v470
      %v3453 = vunpack.c.h.b16 %v471
      %v3454 = vunpack.c.h.b16 %v472
      %v3455 = vunpack.c.h.b16 %v473
      %v3456 = vunpack.c.h.b16 %v474
      %v3457 = vunpack.c.h.b16 %v475
      %v3458 = vunpack.c.h.b16 %v476
      %v3459 = vunpack.c.h.b16 %v477
      %v3460 = vunpack.c.h.b16 %v478
      %v3461 = vunpack.c.h.b16 %v479
      %v3462 = vunpack.c.h.b16 %v480
      %v3463 = vunpack.c.h.b16 %v481
      %v3464 = vunpack.c.h.b16 %v482
      %v3465 = vunpack.c.h.b16 %v483
      %v3466 = vpack.c.b16 %v3451, %v3450
      %v3467 = vpack.c.b16 %v3453, %v3452
      %v3468 = vpack.c.b16 %v3455, %v3454
      %v3469 = vpack.c.b16 %v3457, %v3456
      %v3470 = vpack.c.b16 %v3459, %v3458
      %v3471 = vpack.c.b16 %v3461, %v3460
      %v3472 = vpack.c.b16 %v3463, %v3462
      %v3473 = vpack.c.b16 %v3465, %v3464
      %v3475 = vsel %vm2017, %v3442, 0
      %v3478 = vsel %vm2017, %v3443, 0
      %v3481 = vsel %vm2017, %v3444, 0
      %v3484 = vsel %vm2017, %v3445, 0
      %v3487 = vsel %vm2017, %v3446, 0
      %v3490 = vsel %vm2017, %v3447, 0
      %v3493 = vsel %vm2017, %v3448, 0
      %v3496 = vsel %vm2017, %v3449, 0
      %v3499 = vsel %vm2017, %v3466, 0
      %v3502 = vsel %vm2017, %v3467, 0
      %v3505 = vsel %vm2017, %v3468, 0
      %v3508 = vsel %vm2017, %v3469, 0
      %v3511 = vsel %vm2017, %v3470, 0
      %v3514 = vsel %vm2017, %v3471, 0
      %v3517 = vsel %vm2017, %v3472, 0
      %v3520 = vsel %vm2017, %v3473, 0
      %3522 = vmatpush.bf16.xpose.msra.mxu0 %v3520
      %3523 = vmatpush.bf16.xpose.msra.mxu0 %v3517
      %3524 = vmatpush.bf16.xpose.msra.mxu0 %v3514
      %3525 = vmatpush.bf16.xpose.msra.mxu0 %v3511
      %3526 = vmatpush.bf16.xpose.msra.mxu0 %v3508
      %3527 = vmatpush.bf16.xpose.msra.mxu0 %v3505
      %3528 = vmatpush.bf16.xpose.msra.mxu0 %v3502
      %3529 = vmatpush.bf16.xpose.msra.mxu0 %v3499
      %3530 = vmatmul.bf16.gmra.mxu0 %v3475
      %v3531 = vpop.f32.mrf.mxu0
      %v3532 = vadd.f32 %v1935, %v3531
      %v3533 = vpop.f32.mrf.mxu0
      %v3534 = vadd.f32 %v1935, %v3533
      %3535 = vmatmul.bf16.gmra.mxu0 %v3478
      %v3536 = vpop.f32.mrf.mxu0
      %v3537 = vadd.f32 %v1935, %v3536
      %v3538 = vpop.f32.mrf.mxu0
      %v3539 = vadd.f32 %v1935, %v3538
      %3540 = vmatmul.bf16.gmra.mxu0 %v3481
      %v3541 = vpop.f32.mrf.mxu0
      %v3542 = vadd.f32 %v1935, %v3541
      %v3543 = vpop.f32.mrf.mxu0
      %v3544 = vadd.f32 %v1935, %v3543
      %3545 = vmatmul.bf16.gmra.mxu0 %v3484
      %v3546 = vpop.f32.mrf.mxu0
      %v3547 = vadd.f32 %v1935, %v3546
      %v3548 = vpop.f32.mrf.mxu0
      %v3549 = vadd.f32 %v1935, %v3548
      %3550 = vmatmul.bf16.gmra.mxu0 %v3487
      %v3551 = vpop.f32.mrf.mxu0
      %v3552 = vadd.f32 %v1935, %v3551
      %v3553 = vpop.f32.mrf.mxu0
      %v3554 = vadd.f32 %v1935, %v3553
      %3555 = vmatmul.bf16.gmra.mxu0 %v3490
      %v3556 = vpop.f32.mrf.mxu0
      %v3557 = vadd.f32 %v1935, %v3556
      %v3558 = vpop.f32.mrf.mxu0
      %v3559 = vadd.f32 %v1935, %v3558
      %3560 = vmatmul.bf16.gmra.mxu0 %v3493
      %v3561 = vpop.f32.mrf.mxu0
      %v3562 = vadd.f32 %v1935, %v3561
      %v3563 = vpop.f32.mrf.mxu0
      %v3564 = vadd.f32 %v1935, %v3563
      %3565 = vmatmul.bf16.gmra.mxu0 %v3496
      %v3566 = vpop.f32.mrf.mxu0
      %v3567 = vadd.f32 %v1935, %v3566
      %v3568 = vpop.f32.mrf.mxu0
      %v3569 = vadd.f32 %v1935, %v3568
      %3570 = vdwg.mxu0
      %3571 = vmax.xlane.f32.xlu0 %v3532
      %v3572 = vpop.xlane.xlu0 %3571
      %3573 = vmax.xlane.f32.xlu0 %v3534
      %v3574 = vpop.xlane.xlu0 %3573
      %3575 = vmax.xlane.f32.xlu0 %v3537
      %v3576 = vpop.xlane.xlu0 %3575
      %3577 = vmax.xlane.f32.xlu0 %v3539
      %v3578 = vpop.xlane.xlu0 %3577
      %3579 = vmax.xlane.f32.xlu0 %v3542
      %v3580 = vpop.xlane.xlu0 %3579
      %3581 = vmax.xlane.f32.xlu0 %v3544
      %v3582 = vpop.xlane.xlu0 %3581
      %3583 = vmax.xlane.f32.xlu0 %v3547
      %v3584 = vpop.xlane.xlu0 %3583
      %3585 = vmax.xlane.f32.xlu0 %v3549
      %v3586 = vpop.xlane.xlu0 %3585
      %3587 = vmax.xlane.f32.xlu0 %v3552
      %v3588 = vpop.xlane.xlu0 %3587
      %3589 = vmax.xlane.f32.xlu0 %v3554
      %v3590 = vpop.xlane.xlu0 %3589
      %3591 = vmax.xlane.f32.xlu0 %v3557
      %v3592 = vpop.xlane.xlu0 %3591
      %3593 = vmax.xlane.f32.xlu0 %v3559
      %v3594 = vpop.xlane.xlu0 %3593
      %3595 = vmax.xlane.f32.xlu0 %v3562
      %v3596 = vpop.xlane.xlu0 %3595
      %3597 = vmax.xlane.f32.xlu0 %v3564
      %v3598 = vpop.xlane.xlu0 %3597
      %3599 = vmax.xlane.f32.xlu0 %v3567
      %v3600 = vpop.xlane.xlu0 %3599
      %3601 = vmax.xlane.f32.xlu0 %v3569
      %v3602 = vpop.xlane.xlu0 %3601
      %v3603 = vsub.f32 %v3532, %v3572
      %v3604 = vsub.f32 %v3534, %v3574
      %v3605 = vsub.f32 %v3537, %v3576
      %v3606 = vsub.f32 %v3539, %v3578
      %v3607 = vsub.f32 %v3542, %v3580
      %v3608 = vsub.f32 %v3544, %v3582
      %v3609 = vsub.f32 %v3547, %v3584
      %v3610 = vsub.f32 %v3549, %v3586
      %v3611 = vsub.f32 %v3552, %v3588
      %v3612 = vsub.f32 %v3554, %v3590
      %v3613 = vsub.f32 %v3557, %v3592
      %v3614 = vsub.f32 %v3559, %v3594
      %v3615 = vsub.f32 %v3562, %v3596
      %v3616 = vsub.f32 %v3564, %v3598
      %v3617 = vsub.f32 %v3567, %v3600
      %v3618 = vsub.f32 %v3569, %v3602
      %v3619 = vmul.f32 %v3603, 1.442695
      %v3620 = vpow.pop %v3619
      %v3621 = vmul.f32 %v3604, 1.442695
      %v3622 = vpow.pop %v3621
      %v3623 = vmul.f32 %v3605, 1.442695
      %v3624 = vpow.pop %v3623
      %v3625 = vmul.f32 %v3606, 1.442695
      %v3626 = vpow.pop %v3625
      %v3627 = vmul.f32 %v3607, 1.442695
      %v3628 = vpow.pop %v3627
      %v3629 = vmul.f32 %v3608, 1.442695
      %v3630 = vpow.pop %v3629
      %v3631 = vmul.f32 %v3609, 1.442695
      %v3632 = vpow.pop %v3631
      %v3633 = vmul.f32 %v3610, 1.442695
      %v3634 = vpow.pop %v3633
      %v3635 = vmul.f32 %v3611, 1.442695
      %v3636 = vpow.pop %v3635
      %v3637 = vmul.f32 %v3612, 1.442695
      %v3638 = vpow.pop %v3637
      %v3639 = vmul.f32 %v3613, 1.442695
      %v3640 = vpow.pop %v3639
      %v3641 = vmul.f32 %v3614, 1.442695
      %v3642 = vpow.pop %v3641
      %v3643 = vmul.f32 %v3615, 1.442695
      %v3644 = vpow.pop %v3643
      %v3645 = vmul.f32 %v3616, 1.442695
      %v3646 = vpow.pop %v3645
      %v3647 = vmul.f32 %v3617, 1.442695
      %v3648 = vpow.pop %v3647
      %v3649 = vmul.f32 %v3618, 1.442695
      %v3650 = vpow.pop %v3649
      %3651 = vadd.xlane.f32.xlu0 %v3620
      %v3652 = vpop.xlane.xlu0 %3651
      %3653 = vadd.xlane.f32.xlu0 %v3622
      %v3654 = vpop.xlane.xlu0 %3653
      %3655 = vadd.xlane.f32.xlu0 %v3624
      %v3656 = vpop.xlane.xlu0 %3655
      %3657 = vadd.xlane.f32.xlu0 %v3626
      %v3658 = vpop.xlane.xlu0 %3657
      %3659 = vadd.xlane.f32.xlu0 %v3628
      %v3660 = vpop.xlane.xlu0 %3659
      %3661 = vadd.xlane.f32.xlu0 %v3630
      %v3662 = vpop.xlane.xlu0 %3661
      %3663 = vadd.xlane.f32.xlu0 %v3632
      %v3664 = vpop.xlane.xlu0 %3663
      %3665 = vadd.xlane.f32.xlu0 %v3634
      %v3666 = vpop.xlane.xlu0 %3665
      %3667 = vadd.xlane.f32.xlu0 %v3636
      %v3668 = vpop.xlane.xlu0 %3667
      %3669 = vadd.xlane.f32.xlu0 %v3638
      %v3670 = vpop.xlane.xlu0 %3669
      %3671 = vadd.xlane.f32.xlu0 %v3640
      %v3672 = vpop.xlane.xlu0 %3671
      %3673 = vadd.xlane.f32.xlu0 %v3642
      %v3674 = vpop.xlane.xlu0 %3673
      %3675 = vadd.xlane.f32.xlu0 %v3644
      %v3676 = vpop.xlane.xlu0 %3675
      %3677 = vadd.xlane.f32.xlu0 %v3646
      %v3678 = vpop.xlane.xlu0 %3677
      %3679 = vadd.xlane.f32.xlu0 %v3648
      %v3680 = vpop.xlane.xlu0 %3679
      %3681 = vadd.xlane.f32.xlu0 %v3650
      %v3682 = vpop.xlane.xlu0 %3681
      %v3683 = vpack.c.bf16 %v3622, %v3620
      %v3684 = vpack.c.bf16 %v3626, %v3624
      %v3685 = vpack.c.bf16 %v3630, %v3628
      %v3686 = vpack.c.bf16 %v3634, %v3632
      %v3687 = vpack.c.bf16 %v3638, %v3636
      %v3688 = vpack.c.bf16 %v3642, %v3640
      %v3689 = vpack.c.bf16 %v3646, %v3644
      %v3690 = vpack.c.bf16 %v3650, %v3648
      %v3691 = vunpack.c.h.b16 %v486
      %v3692 = vunpack.c.h.b16 %v487
      %v3693 = vunpack.c.h.b16 %v488
      %v3694 = vunpack.c.h.b16 %v489
      %v3695 = vunpack.c.h.b16 %v490
      %v3696 = vunpack.c.h.b16 %v491
      %v3697 = vunpack.c.h.b16 %v492
      %v3698 = vunpack.c.h.b16 %v493
      %v3699 = vunpack.c.h.b16 %v494
      %v3700 = vunpack.c.h.b16 %v495
      %v3701 = vunpack.c.h.b16 %v496
      %v3702 = vunpack.c.h.b16 %v497
      %v3703 = vunpack.c.h.b16 %v498
      %v3704 = vunpack.c.h.b16 %v499
      %v3705 = vunpack.c.h.b16 %v500
      %v3706 = vunpack.c.h.b16 %v501
      %v3707 = vpack.c.b16 %v3692, %v3691
      %v3708 = vpack.c.b16 %v3694, %v3693
      %v3709 = vpack.c.b16 %v3696, %v3695
      %v3710 = vpack.c.b16 %v3698, %v3697
      %v3711 = vpack.c.b16 %v3700, %v3699
      %v3712 = vpack.c.b16 %v3702, %v3701
      %v3713 = vpack.c.b16 %v3704, %v3703
      %v3714 = vpack.c.b16 %v3706, %v3705
      %3723 = vmatpush.bf16.msra.mxu0 %v3714
      %3724 = vmatpush.bf16.msra.mxu0 %v3713
      %3725 = vmatpush.bf16.msra.mxu0 %v3712
      %3726 = vmatpush.bf16.msra.mxu0 %v3711
      %3727 = vmatpush.bf16.msra.mxu0 %v3710
      %3728 = vmatpush.bf16.msra.mxu0 %v3709
      %3729 = vmatpush.bf16.msra.mxu0 %v3708
      %3730 = vmatpush.bf16.msra.mxu0 %v3707
      %3731 = vmatmul.bf16.gmra.mxu0 %v3683
      %v3732 = vpop.f32.mrf.mxu0
      %v3733 = vadd.f32 0.0, %v3732
      %v3734 = vpop.f32.mrf.mxu0
      %v3735 = vadd.f32 0.0, %v3734
      %3736 = vmatmul.bf16.gmra.mxu0 %v3684
      %v3737 = vpop.f32.mrf.mxu0
      %v3738 = vadd.f32 0.0, %v3737
      %v3739 = vpop.f32.mrf.mxu0
      %v3740 = vadd.f32 0.0, %v3739
      %3741 = vmatmul.bf16.gmra.mxu0 %v3685
      %v3742 = vpop.f32.mrf.mxu0
      %v3743 = vadd.f32 0.0, %v3742
      %v3744 = vpop.f32.mrf.mxu0
      %v3745 = vadd.f32 0.0, %v3744
      %3746 = vmatmul.bf16.gmra.mxu0 %v3686
      %v3747 = vpop.f32.mrf.mxu0
      %v3748 = vadd.f32 0.0, %v3747
      %v3749 = vpop.f32.mrf.mxu0
      %v3750 = vadd.f32 0.0, %v3749
      %3751 = vmatmul.bf16.gmra.mxu0 %v3687
      %v3752 = vpop.f32.mrf.mxu0
      %v3753 = vadd.f32 0.0, %v3752
      %v3754 = vpop.f32.mrf.mxu0
      %v3755 = vadd.f32 0.0, %v3754
      %3756 = vmatmul.bf16.gmra.mxu0 %v3688
      %v3757 = vpop.f32.mrf.mxu0
      %v3758 = vadd.f32 0.0, %v3757
      %v3759 = vpop.f32.mrf.mxu0
      %v3760 = vadd.f32 0.0, %v3759
      %3761 = vmatmul.bf16.gmra.mxu0 %v3689
      %v3762 = vpop.f32.mrf.mxu0
      %v3763 = vadd.f32 0.0, %v3762
      %v3764 = vpop.f32.mrf.mxu0
      %v3765 = vadd.f32 0.0, %v3764
      %3766 = vmatmul.bf16.gmra.mxu0 %v3690
      %v3767 = vpop.f32.mrf.mxu0
      %v3768 = vadd.f32 0.0, %v3767
      %v3769 = vpop.f32.mrf.mxu0
      %v3770 = vadd.f32 0.0, %v3769
      %3771 = vdwg.mxu0
      %v3772 = vrcp.pop %v3652
      %v3773 = vrcp.pop %v3654
      %v3774 = vrcp.pop %v3656
      %v3775 = vrcp.pop %v3658
      %v3776 = vrcp.pop %v3660
      %v3777 = vrcp.pop %v3662
      %v3778 = vrcp.pop %v3664
      %v3779 = vrcp.pop %v3666
      %v3780 = vrcp.pop %v3668
      %v3781 = vrcp.pop %v3670
      %v3782 = vrcp.pop %v3672
      %v3783 = vrcp.pop %v3674
      %v3784 = vrcp.pop %v3676
      %v3785 = vrcp.pop %v3678
      %v3786 = vrcp.pop %v3680
      %v3787 = vrcp.pop %v3682
      %v3788 = vmul.f32 %v3733, %v3772
      %v3789 = vmul.f32 %v3735, %v3773
      %v3790 = vmul.f32 %v3738, %v3774
      %v3791 = vmul.f32 %v3740, %v3775
      %v3792 = vmul.f32 %v3743, %v3776
      %v3793 = vmul.f32 %v3745, %v3777
      %v3794 = vmul.f32 %v3748, %v3778
      %v3795 = vmul.f32 %v3750, %v3779
      %v3796 = vmul.f32 %v3753, %v3780
      %v3797 = vmul.f32 %v3755, %v3781
      %v3798 = vmul.f32 %v3758, %v3782
      %v3799 = vmul.f32 %v3760, %v3783
      %v3800 = vmul.f32 %v3763, %v3784
      %v3801 = vmul.f32 %v3765, %v3785
      %v3802 = vmul.f32 %v3768, %v3786
      %v3803 = vmul.f32 %v3770, %v3787
      %3804 = vrot.lane.b32.xlu0 %v3442, 96
      %v3805 = vpop.permute.xlu0 %3804
      %3806 = vrot.lane.b32.xlu0 %v3443, 96
      %v3807 = vpop.permute.xlu0 %3806
      %3808 = vrot.lane.b32.xlu0 %v3444, 96
      %v3809 = vpop.permute.xlu0 %3808
      %3810 = vrot.lane.b32.xlu0 %v3445, 96
      %v3811 = vpop.permute.xlu0 %3810
      %3812 = vrot.lane.b32.xlu0 %v3446, 96
      %v3813 = vpop.permute.xlu0 %3812
      %3814 = vrot.lane.b32.xlu0 %v3447, 96
      %v3815 = vpop.permute.xlu0 %3814
      %3816 = vrot.lane.b32.xlu0 %v3448, 96
      %v3817 = vpop.permute.xlu0 %3816
      %3818 = vrot.lane.b32.xlu0 %v3449, 96
      %v3819 = vpop.permute.xlu0 %3818
      %3820 = vrot.lane.b32.xlu0 %v3466, 96
      %v3821 = vpop.permute.xlu0 %3820
      %3822 = vrot.lane.b32.xlu0 %v3467, 96
      %v3823 = vpop.permute.xlu0 %3822
      %3824 = vrot.lane.b32.xlu0 %v3468, 96
      %v3825 = vpop.permute.xlu0 %3824
      %3826 = vrot.lane.b32.xlu0 %v3469, 96
      %v3827 = vpop.permute.xlu0 %3826
      %3828 = vrot.lane.b32.xlu0 %v3470, 96
      %v3829 = vpop.permute.xlu0 %3828
      %3830 = vrot.lane.b32.xlu0 %v3471, 96
      %v3831 = vpop.permute.xlu0 %3830
      %3832 = vrot.lane.b32.xlu0 %v3472, 96
      %v3833 = vpop.permute.xlu0 %3832
      %3834 = vrot.lane.b32.xlu0 %v3473, 96
      %v3835 = vpop.permute.xlu0 %3834
      %v3837 = vsel %vm2017, %v3805, 0
      %v3840 = vsel %vm2017, %v3807, 0
      %v3843 = vsel %vm2017, %v3809, 0
      %v3846 = vsel %vm2017, %v3811, 0
      %v3849 = vsel %vm2017, %v3813, 0
      %v3852 = vsel %vm2017, %v3815, 0
      %v3855 = vsel %vm2017, %v3817, 0
      %v3858 = vsel %vm2017, %v3819, 0
      %v3861 = vsel %vm2017, %v3821, 0
      %v3864 = vsel %vm2017, %v3823, 0
      %v3867 = vsel %vm2017, %v3825, 0
      %v3870 = vsel %vm2017, %v3827, 0
      %v3873 = vsel %vm2017, %v3829, 0
      %v3876 = vsel %vm2017, %v3831, 0
      %v3879 = vsel %vm2017, %v3833, 0
      %v3882 = vsel %vm2017, %v3835, 0
      %3884 = vmatpush.bf16.xpose.msra.mxu0 %v3882
      %3885 = vmatpush.bf16.xpose.msra.mxu0 %v3879
      %3886 = vmatpush.bf16.xpose.msra.mxu0 %v3876
      %3887 = vmatpush.bf16.xpose.msra.mxu0 %v3873
      %3888 = vmatpush.bf16.xpose.msra.mxu0 %v3870
      %3889 = vmatpush.bf16.xpose.msra.mxu0 %v3867
      %3890 = vmatpush.bf16.xpose.msra.mxu0 %v3864
      %3891 = vmatpush.bf16.xpose.msra.mxu0 %v3861
      %3892 = vmatmul.bf16.gmra.mxu0 %v3837
      %v3893 = vpop.f32.mrf.mxu0
      %v3894 = vadd.f32 %v1935, %v3893
      %v3895 = vpop.f32.mrf.mxu0
      %v3896 = vadd.f32 %v1935, %v3895
      %3897 = vmatmul.bf16.gmra.mxu0 %v3840
      %v3898 = vpop.f32.mrf.mxu0
      %v3899 = vadd.f32 %v1935, %v3898
      %v3900 = vpop.f32.mrf.mxu0
      %v3901 = vadd.f32 %v1935, %v3900
      %3902 = vmatmul.bf16.gmra.mxu0 %v3843
      %v3903 = vpop.f32.mrf.mxu0
      %v3904 = vadd.f32 %v1935, %v3903
      %v3905 = vpop.f32.mrf.mxu0
      %v3906 = vadd.f32 %v1935, %v3905
      %3907 = vmatmul.bf16.gmra.mxu0 %v3846
      %v3908 = vpop.f32.mrf.mxu0
      %v3909 = vadd.f32 %v1935, %v3908
      %v3910 = vpop.f32.mrf.mxu0
      %v3911 = vadd.f32 %v1935, %v3910
      %3912 = vmatmul.bf16.gmra.mxu0 %v3849
      %v3913 = vpop.f32.mrf.mxu0
      %v3914 = vadd.f32 %v1935, %v3913
      %v3915 = vpop.f32.mrf.mxu0
      %v3916 = vadd.f32 %v1935, %v3915
      %3917 = vmatmul.bf16.gmra.mxu0 %v3852
      %v3918 = vpop.f32.mrf.mxu0
      %v3919 = vadd.f32 %v1935, %v3918
      %v3920 = vpop.f32.mrf.mxu0
      %v3921 = vadd.f32 %v1935, %v3920
      %3922 = vmatmul.bf16.gmra.mxu0 %v3855
      %v3923 = vpop.f32.mrf.mxu0
      %v3924 = vadd.f32 %v1935, %v3923
      %v3925 = vpop.f32.mrf.mxu0
      %v3926 = vadd.f32 %v1935, %v3925
      %3927 = vmatmul.bf16.gmra.mxu0 %v3858
      %v3928 = vpop.f32.mrf.mxu0
      %v3929 = vadd.f32 %v1935, %v3928
      %v3930 = vpop.f32.mrf.mxu0
      %v3931 = vadd.f32 %v1935, %v3930
      %3932 = vdwg.mxu0
      %3933 = vmax.xlane.f32.xlu0 %v3894
      %v3934 = vpop.xlane.xlu0 %3933
      %3935 = vmax.xlane.f32.xlu0 %v3896
      %v3936 = vpop.xlane.xlu0 %3935
      %3937 = vmax.xlane.f32.xlu0 %v3899
      %v3938 = vpop.xlane.xlu0 %3937
      %3939 = vmax.xlane.f32.xlu0 %v3901
      %v3940 = vpop.xlane.xlu0 %3939
      %3941 = vmax.xlane.f32.xlu0 %v3904
      %v3942 = vpop.xlane.xlu0 %3941
      %3943 = vmax.xlane.f32.xlu0 %v3906
      %v3944 = vpop.xlane.xlu0 %3943
      %3945 = vmax.xlane.f32.xlu0 %v3909
      %v3946 = vpop.xlane.xlu0 %3945
      %3947 = vmax.xlane.f32.xlu0 %v3911
      %v3948 = vpop.xlane.xlu0 %3947
      %3949 = vmax.xlane.f32.xlu0 %v3914
      %v3950 = vpop.xlane.xlu0 %3949
      %3951 = vmax.xlane.f32.xlu0 %v3916
      %v3952 = vpop.xlane.xlu0 %3951
      %3953 = vmax.xlane.f32.xlu0 %v3919
      %v3954 = vpop.xlane.xlu0 %3953
      %3955 = vmax.xlane.f32.xlu0 %v3921
      %v3956 = vpop.xlane.xlu0 %3955
      %3957 = vmax.xlane.f32.xlu0 %v3924
      %v3958 = vpop.xlane.xlu0 %3957
      %3959 = vmax.xlane.f32.xlu0 %v3926
      %v3960 = vpop.xlane.xlu0 %3959
      %3961 = vmax.xlane.f32.xlu0 %v3929
      %v3962 = vpop.xlane.xlu0 %3961
      %3963 = vmax.xlane.f32.xlu0 %v3931
      %v3964 = vpop.xlane.xlu0 %3963
      %v3965 = vsub.f32 %v3894, %v3934
      %v3966 = vsub.f32 %v3896, %v3936
      %v3967 = vsub.f32 %v3899, %v3938
      %v3968 = vsub.f32 %v3901, %v3940
      %v3969 = vsub.f32 %v3904, %v3942
      %v3970 = vsub.f32 %v3906, %v3944
      %v3971 = vsub.f32 %v3909, %v3946
      %v3972 = vsub.f32 %v3911, %v3948
      %v3973 = vsub.f32 %v3914, %v3950
      %v3974 = vsub.f32 %v3916, %v3952
      %v3975 = vsub.f32 %v3919, %v3954
      %v3976 = vsub.f32 %v3921, %v3956
      %v3977 = vsub.f32 %v3924, %v3958
      %v3978 = vsub.f32 %v3926, %v3960
      %v3979 = vsub.f32 %v3929, %v3962
      %v3980 = vsub.f32 %v3931, %v3964
      %v3981 = vmul.f32 %v3965, 1.442695
      %v3982 = vpow.pop %v3981
      %v3983 = vmul.f32 %v3966, 1.442695
      %v3984 = vpow.pop %v3983
      %v3985 = vmul.f32 %v3967, 1.442695
      %v3986 = vpow.pop %v3985
      %v3987 = vmul.f32 %v3968, 1.442695
      %v3988 = vpow.pop %v3987
      %v3989 = vmul.f32 %v3969, 1.442695
      %v3990 = vpow.pop %v3989
      %v3991 = vmul.f32 %v3970, 1.442695
      %v3992 = vpow.pop %v3991
      %v3993 = vmul.f32 %v3971, 1.442695
      %v3994 = vpow.pop %v3993
      %v3995 = vmul.f32 %v3972, 1.442695
      %v3996 = vpow.pop %v3995
      %v3997 = vmul.f32 %v3973, 1.442695
      %v3998 = vpow.pop %v3997
      %v3999 = vmul.f32 %v3974, 1.442695
      %v4000 = vpow.pop %v3999
      %v4001 = vmul.f32 %v3975, 1.442695
      %v4002 = vpow.pop %v4001
      %v4003 = vmul.f32 %v3976, 1.442695
      %v4004 = vpow.pop %v4003
      %v4005 = vmul.f32 %v3977, 1.442695
      %v4006 = vpow.pop %v4005
      %v4007 = vmul.f32 %v3978, 1.442695
      %v4008 = vpow.pop %v4007
      %v4009 = vmul.f32 %v3979, 1.442695
      %v4010 = vpow.pop %v4009
      %v4011 = vmul.f32 %v3980, 1.442695
      %v4012 = vpow.pop %v4011
      %4013 = vadd.xlane.f32.xlu0 %v3982
      %v4014 = vpop.xlane.xlu0 %4013
      %4015 = vadd.xlane.f32.xlu0 %v3984
      %v4016 = vpop.xlane.xlu0 %4015
      %4017 = vadd.xlane.f32.xlu0 %v3986
      %v4018 = vpop.xlane.xlu0 %4017
      %4019 = vadd.xlane.f32.xlu0 %v3988
      %v4020 = vpop.xlane.xlu0 %4019
      %4021 = vadd.xlane.f32.xlu0 %v3990
      %v4022 = vpop.xlane.xlu0 %4021
      %4023 = vadd.xlane.f32.xlu0 %v3992
      %v4024 = vpop.xlane.xlu0 %4023
      %4025 = vadd.xlane.f32.xlu0 %v3994
      %v4026 = vpop.xlane.xlu0 %4025
      %4027 = vadd.xlane.f32.xlu0 %v3996
      %v4028 = vpop.xlane.xlu0 %4027
      %4029 = vadd.xlane.f32.xlu0 %v3998
      %v4030 = vpop.xlane.xlu0 %4029
      %4031 = vadd.xlane.f32.xlu0 %v4000
      %v4032 = vpop.xlane.xlu0 %4031
      %4033 = vadd.xlane.f32.xlu0 %v4002
      %v4034 = vpop.xlane.xlu0 %4033
      %4035 = vadd.xlane.f32.xlu0 %v4004
      %v4036 = vpop.xlane.xlu0 %4035
      %4037 = vadd.xlane.f32.xlu0 %v4006
      %v4038 = vpop.xlane.xlu0 %4037
      %4039 = vadd.xlane.f32.xlu0 %v4008
      %v4040 = vpop.xlane.xlu0 %4039
      %4041 = vadd.xlane.f32.xlu0 %v4010
      %v4042 = vpop.xlane.xlu0 %4041
      %4043 = vadd.xlane.f32.xlu0 %v4012
      %v4044 = vpop.xlane.xlu0 %4043
      %v4045 = vpack.c.bf16 %v3984, %v3982
      %v4046 = vpack.c.bf16 %v3988, %v3986
      %v4047 = vpack.c.bf16 %v3992, %v3990
      %v4048 = vpack.c.bf16 %v3996, %v3994
      %v4049 = vpack.c.bf16 %v4000, %v3998
      %v4050 = vpack.c.bf16 %v4004, %v4002
      %v4051 = vpack.c.bf16 %v4008, %v4006
      %v4052 = vpack.c.bf16 %v4012, %v4010
      %4053 = vrot.lane.b32.xlu0 %v3707, 96
      %v4054 = vpop.permute.xlu0 %4053
      %4055 = vrot.lane.b32.xlu0 %v3708, 96
      %v4056 = vpop.permute.xlu0 %4055
      %4057 = vrot.lane.b32.xlu0 %v3709, 96
      %v4058 = vpop.permute.xlu0 %4057
      %4059 = vrot.lane.b32.xlu0 %v3710, 96
      %v4060 = vpop.permute.xlu0 %4059
      %4061 = vrot.lane.b32.xlu0 %v3711, 96
      %v4062 = vpop.permute.xlu0 %4061
      %4063 = vrot.lane.b32.xlu0 %v3712, 96
      %v4064 = vpop.permute.xlu0 %4063
      %4065 = vrot.lane.b32.xlu0 %v3713, 96
      %v4066 = vpop.permute.xlu0 %4065
      %4067 = vrot.lane.b32.xlu0 %v3714, 96
      %v4068 = vpop.permute.xlu0 %4067
      %4077 = vmatpush.bf16.msra.mxu0 %v4068
      %4078 = vmatpush.bf16.msra.mxu0 %v4066
      %4079 = vmatpush.bf16.msra.mxu0 %v4064
      %4080 = vmatpush.bf16.msra.mxu0 %v4062
      %4081 = vmatpush.bf16.msra.mxu0 %v4060
      %4082 = vmatpush.bf16.msra.mxu0 %v4058
      %4083 = vmatpush.bf16.msra.mxu0 %v4056
      %4084 = vmatpush.bf16.msra.mxu0 %v4054
      %4085 = vmatmul.bf16.gmra.mxu0 %v4045
      %v4086 = vpop.f32.mrf.mxu0
      %v4087 = vadd.f32 0.0, %v4086
      %v4088 = vpop.f32.mrf.mxu0
      %v4089 = vadd.f32 0.0, %v4088
      %4090 = vmatmul.bf16.gmra.mxu0 %v4046
      %v4091 = vpop.f32.mrf.mxu0
      %v4092 = vadd.f32 0.0, %v4091
      %v4093 = vpop.f32.mrf.mxu0
      %v4094 = vadd.f32 0.0, %v4093
      %4095 = vmatmul.bf16.gmra.mxu0 %v4047
      %v4096 = vpop.f32.mrf.mxu0
      %v4097 = vadd.f32 0.0, %v4096
      %v4098 = vpop.f32.mrf.mxu0
      %v4099 = vadd.f32 0.0, %v4098
      %4100 = vmatmul.bf16.gmra.mxu0 %v4048
      %v4101 = vpop.f32.mrf.mxu0
      %v4102 = vadd.f32 0.0, %v4101
      %v4103 = vpop.f32.mrf.mxu0
      %v4104 = vadd.f32 0.0, %v4103
      %4105 = vmatmul.bf16.gmra.mxu0 %v4049
      %v4106 = vpop.f32.mrf.mxu0
      %v4107 = vadd.f32 0.0, %v4106
      %v4108 = vpop.f32.mrf.mxu0
      %v4109 = vadd.f32 0.0, %v4108
      %4110 = vmatmul.bf16.gmra.mxu0 %v4050
      %v4111 = vpop.f32.mrf.mxu0
      %v4112 = vadd.f32 0.0, %v4111
      %v4113 = vpop.f32.mrf.mxu0
      %v4114 = vadd.f32 0.0, %v4113
      %4115 = vmatmul.bf16.gmra.mxu0 %v4051
      %v4116 = vpop.f32.mrf.mxu0
      %v4117 = vadd.f32 0.0, %v4116
      %v4118 = vpop.f32.mrf.mxu0
      %v4119 = vadd.f32 0.0, %v4118
      %4120 = vmatmul.bf16.gmra.mxu0 %v4052
      %v4121 = vpop.f32.mrf.mxu0
      %v4122 = vadd.f32 0.0, %v4121
      %v4123 = vpop.f32.mrf.mxu0
      %v4124 = vadd.f32 0.0, %v4123
      %4125 = vdwg.mxu0
      %v4126 = vrcp.pop %v4014
      %v4127 = vrcp.pop %v4016
      %v4128 = vrcp.pop %v4018
      %v4129 = vrcp.pop %v4020
      %v4130 = vrcp.pop %v4022
      %v4131 = vrcp.pop %v4024
      %v4132 = vrcp.pop %v4026
      %v4133 = vrcp.pop %v4028
      %v4134 = vrcp.pop %v4030
      %v4135 = vrcp.pop %v4032
      %v4136 = vrcp.pop %v4034
      %v4137 = vrcp.pop %v4036
      %v4138 = vrcp.pop %v4038
      %v4139 = vrcp.pop %v4040
      %v4140 = vrcp.pop %v4042
      %v4141 = vrcp.pop %v4044
      %v4142 = vmul.f32 %v4087, %v4126
      %v4143 = vmul.f32 %v4089, %v4127
      %v4144 = vmul.f32 %v4092, %v4128
      %v4145 = vmul.f32 %v4094, %v4129
      %v4146 = vmul.f32 %v4097, %v4130
      %v4147 = vmul.f32 %v4099, %v4131
      %v4148 = vmul.f32 %v4102, %v4132
      %v4149 = vmul.f32 %v4104, %v4133
      %v4150 = vmul.f32 %v4107, %v4134
      %v4151 = vmul.f32 %v4109, %v4135
      %v4152 = vmul.f32 %v4112, %v4136
      %v4153 = vmul.f32 %v4114, %v4137
      %v4154 = vmul.f32 %v4117, %v4138
      %v4155 = vmul.f32 %v4119, %v4139
      %v4156 = vmul.f32 %v4122, %v4140
      %v4157 = vmul.f32 %v4124, %v4141
      %4158 = vrot.lane.b32.xlu0 %v3442, 64
      %v4159 = vpop.permute.xlu0 %4158
      %4160 = vrot.lane.b32.xlu0 %v3443, 64
      %v4161 = vpop.permute.xlu0 %4160
      %4162 = vrot.lane.b32.xlu0 %v3444, 64
      %v4163 = vpop.permute.xlu0 %4162
      %4164 = vrot.lane.b32.xlu0 %v3445, 64
      %v4165 = vpop.permute.xlu0 %4164
      %4166 = vrot.lane.b32.xlu0 %v3446, 64
      %v4167 = vpop.permute.xlu0 %4166
      %4168 = vrot.lane.b32.xlu0 %v3447, 64
      %v4169 = vpop.permute.xlu0 %4168
      %4170 = vrot.lane.b32.xlu0 %v3448, 64
      %v4171 = vpop.permute.xlu0 %4170
      %4172 = vrot.lane.b32.xlu0 %v3449, 64
      %v4173 = vpop.permute.xlu0 %4172
      %4174 = vrot.lane.b32.xlu0 %v3466, 64
      %v4175 = vpop.permute.xlu0 %4174
      %4176 = vrot.lane.b32.xlu0 %v3467, 64
      %v4177 = vpop.permute.xlu0 %4176
      %4178 = vrot.lane.b32.xlu0 %v3468, 64
      %v4179 = vpop.permute.xlu0 %4178
      %4180 = vrot.lane.b32.xlu0 %v3469, 64
      %v4181 = vpop.permute.xlu0 %4180
      %4182 = vrot.lane.b32.xlu0 %v3470, 64
      %v4183 = vpop.permute.xlu0 %4182
      %4184 = vrot.lane.b32.xlu0 %v3471, 64
      %v4185 = vpop.permute.xlu0 %4184
      %4186 = vrot.lane.b32.xlu0 %v3472, 64
      %v4187 = vpop.permute.xlu0 %4186
      %4188 = vrot.lane.b32.xlu0 %v3473, 64
      %v4189 = vpop.permute.xlu0 %4188
      %v4191 = vsel %vm2017, %v4159, 0
      %v4194 = vsel %vm2017, %v4161, 0
      %v4197 = vsel %vm2017, %v4163, 0
      %v4200 = vsel %vm2017, %v4165, 0
      %v4203 = vsel %vm2017, %v4167, 0
      %v4206 = vsel %vm2017, %v4169, 0
      %v4209 = vsel %vm2017, %v4171, 0
      %v4212 = vsel %vm2017, %v4173, 0
      %v4215 = vsel %vm2017, %v4175, 0
      %v4218 = vsel %vm2017, %v4177, 0
      %v4221 = vsel %vm2017, %v4179, 0
      %v4224 = vsel %vm2017, %v4181, 0
      %v4227 = vsel %vm2017, %v4183, 0
      %v4230 = vsel %vm2017, %v4185, 0
      %v4233 = vsel %vm2017, %v4187, 0
      %v4236 = vsel %vm2017, %v4189, 0
      %4238 = vmatpush.bf16.xpose.msra.mxu0 %v4236
      %4239 = vmatpush.bf16.xpose.msra.mxu0 %v4233
      %4240 = vmatpush.bf16.xpose.msra.mxu0 %v4230
      %4241 = vmatpush.bf16.xpose.msra.mxu0 %v4227
      %4242 = vmatpush.bf16.xpose.msra.mxu0 %v4224
      %4243 = vmatpush.bf16.xpose.msra.mxu0 %v4221
      %4244 = vmatpush.bf16.xpose.msra.mxu0 %v4218
      %4245 = vmatpush.bf16.xpose.msra.mxu0 %v4215
      %4246 = vmatmul.bf16.gmra.mxu0 %v4191
      %v4247 = vpop.f32.mrf.mxu0
      %v4248 = vadd.f32 %v1935, %v4247
      %v4249 = vpop.f32.mrf.mxu0
      %v4250 = vadd.f32 %v1935, %v4249
      %4251 = vmatmul.bf16.gmra.mxu0 %v4194
      %v4252 = vpop.f32.mrf.mxu0
      %v4253 = vadd.f32 %v1935, %v4252
      %v4254 = vpop.f32.mrf.mxu0
      %v4255 = vadd.f32 %v1935, %v4254
      %4256 = vmatmul.bf16.gmra.mxu0 %v4197
      %v4257 = vpop.f32.mrf.mxu0
      %v4258 = vadd.f32 %v1935, %v4257
      %v4259 = vpop.f32.mrf.mxu0
      %v4260 = vadd.f32 %v1935, %v4259
      %4261 = vmatmul.bf16.gmra.mxu0 %v4200
      %v4262 = vpop.f32.mrf.mxu0
      %v4263 = vadd.f32 %v1935, %v4262
      %v4264 = vpop.f32.mrf.mxu0
      %v4265 = vadd.f32 %v1935, %v4264
      %4266 = vmatmul.bf16.gmra.mxu0 %v4203
      %v4267 = vpop.f32.mrf.mxu0
      %v4268 = vadd.f32 %v1935, %v4267
      %v4269 = vpop.f32.mrf.mxu0
      %v4270 = vadd.f32 %v1935, %v4269
      %4271 = vmatmul.bf16.gmra.mxu0 %v4206
      %v4272 = vpop.f32.mrf.mxu0
      %v4273 = vadd.f32 %v1935, %v4272
      %v4274 = vpop.f32.mrf.mxu0
      %v4275 = vadd.f32 %v1935, %v4274
      %4276 = vmatmul.bf16.gmra.mxu0 %v4209
      %v4277 = vpop.f32.mrf.mxu0
      %v4278 = vadd.f32 %v1935, %v4277
      %v4279 = vpop.f32.mrf.mxu0
      %v4280 = vadd.f32 %v1935, %v4279
      %4281 = vmatmul.bf16.gmra.mxu0 %v4212
      %v4282 = vpop.f32.mrf.mxu0
      %v4283 = vadd.f32 %v1935, %v4282
      %v4284 = vpop.f32.mrf.mxu0
      %v4285 = vadd.f32 %v1935, %v4284
      %4286 = vdwg.mxu0
      %4287 = vmax.xlane.f32.xlu0 %v4248
      %v4288 = vpop.xlane.xlu0 %4287
      %4289 = vmax.xlane.f32.xlu0 %v4250
      %v4290 = vpop.xlane.xlu0 %4289
      %4291 = vmax.xlane.f32.xlu0 %v4253
      %v4292 = vpop.xlane.xlu0 %4291
      %4293 = vmax.xlane.f32.xlu0 %v4255
      %v4294 = vpop.xlane.xlu0 %4293
      %4295 = vmax.xlane.f32.xlu0 %v4258
      %v4296 = vpop.xlane.xlu0 %4295
      %4297 = vmax.xlane.f32.xlu0 %v4260
      %v4298 = vpop.xlane.xlu0 %4297
      %4299 = vmax.xlane.f32.xlu0 %v4263
      %v4300 = vpop.xlane.xlu0 %4299
      %4301 = vmax.xlane.f32.xlu0 %v4265
      %v4302 = vpop.xlane.xlu0 %4301
      %4303 = vmax.xlane.f32.xlu0 %v4268
      %v4304 = vpop.xlane.xlu0 %4303
      %4305 = vmax.xlane.f32.xlu0 %v4270
      %v4306 = vpop.xlane.xlu0 %4305
      %4307 = vmax.xlane.f32.xlu0 %v4273
      %v4308 = vpop.xlane.xlu0 %4307
      %4309 = vmax.xlane.f32.xlu0 %v4275
      %v4310 = vpop.xlane.xlu0 %4309
      %4311 = vmax.xlane.f32.xlu0 %v4278
      %v4312 = vpop.xlane.xlu0 %4311
      %4313 = vmax.xlane.f32.xlu0 %v4280
      %v4314 = vpop.xlane.xlu0 %4313
      %4315 = vmax.xlane.f32.xlu0 %v4283
      %v4316 = vpop.xlane.xlu0 %4315
      %4317 = vmax.xlane.f32.xlu0 %v4285
      %v4318 = vpop.xlane.xlu0 %4317
      %v4319 = vsub.f32 %v4248, %v4288
      %v4320 = vsub.f32 %v4250, %v4290
      %v4321 = vsub.f32 %v4253, %v4292
      %v4322 = vsub.f32 %v4255, %v4294
      %v4323 = vsub.f32 %v4258, %v4296
      %v4324 = vsub.f32 %v4260, %v4298
      %v4325 = vsub.f32 %v4263, %v4300
      %v4326 = vsub.f32 %v4265, %v4302
      %v4327 = vsub.f32 %v4268, %v4304
      %v4328 = vsub.f32 %v4270, %v4306
      %v4329 = vsub.f32 %v4273, %v4308
      %v4330 = vsub.f32 %v4275, %v4310
      %v4331 = vsub.f32 %v4278, %v4312
      %v4332 = vsub.f32 %v4280, %v4314
      %v4333 = vsub.f32 %v4283, %v4316
      %v4334 = vsub.f32 %v4285, %v4318
      %v4335 = vmul.f32 %v4319, 1.442695
      %v4336 = vpow.pop %v4335
      %v4337 = vmul.f32 %v4320, 1.442695
      %v4338 = vpow.pop %v4337
      %v4339 = vmul.f32 %v4321, 1.442695
      %v4340 = vpow.pop %v4339
      %v4341 = vmul.f32 %v4322, 1.442695
      %v4342 = vpow.pop %v4341
      %v4343 = vmul.f32 %v4323, 1.442695
      %v4344 = vpow.pop %v4343
      %v4345 = vmul.f32 %v4324, 1.442695
      %v4346 = vpow.pop %v4345
      %v4347 = vmul.f32 %v4325, 1.442695
      %v4348 = vpow.pop %v4347
      %v4349 = vmul.f32 %v4326, 1.442695
      %v4350 = vpow.pop %v4349
      %v4351 = vmul.f32 %v4327, 1.442695
      %v4352 = vpow.pop %v4351
      %v4353 = vmul.f32 %v4328, 1.442695
      %v4354 = vpow.pop %v4353
      %v4355 = vmul.f32 %v4329, 1.442695
      %v4356 = vpow.pop %v4355
      %v4357 = vmul.f32 %v4330, 1.442695
      %v4358 = vpow.pop %v4357
      %v4359 = vmul.f32 %v4331, 1.442695
      %v4360 = vpow.pop %v4359
      %v4361 = vmul.f32 %v4332, 1.442695
      %v4362 = vpow.pop %v4361
      %v4363 = vmul.f32 %v4333, 1.442695
      %v4364 = vpow.pop %v4363
      %v4365 = vmul.f32 %v4334, 1.442695
      %v4366 = vpow.pop %v4365
      %4367 = vadd.xlane.f32.xlu0 %v4336
      %v4368 = vpop.xlane.xlu0 %4367
      %4369 = vadd.xlane.f32.xlu0 %v4338
      %v4370 = vpop.xlane.xlu0 %4369
      %4371 = vadd.xlane.f32.xlu0 %v4340
      %v4372 = vpop.xlane.xlu0 %4371
      %4373 = vadd.xlane.f32.xlu0 %v4342
      %v4374 = vpop.xlane.xlu0 %4373
      %4375 = vadd.xlane.f32.xlu0 %v4344
      %v4376 = vpop.xlane.xlu0 %4375
      %4377 = vadd.xlane.f32.xlu0 %v4346
      %v4378 = vpop.xlane.xlu0 %4377
      %4379 = vadd.xlane.f32.xlu0 %v4348
      %v4380 = vpop.xlane.xlu0 %4379
      %4381 = vadd.xlane.f32.xlu0 %v4350
      %v4382 = vpop.xlane.xlu0 %4381
      %4383 = vadd.xlane.f32.xlu0 %v4352
      %v4384 = vpop.xlane.xlu0 %4383
      %4385 = vadd.xlane.f32.xlu0 %v4354
      %v4386 = vpop.xlane.xlu0 %4385
      %4387 = vadd.xlane.f32.xlu0 %v4356
      %v4388 = vpop.xlane.xlu0 %4387
      %4389 = vadd.xlane.f32.xlu0 %v4358
      %v4390 = vpop.xlane.xlu0 %4389
      %4391 = vadd.xlane.f32.xlu0 %v4360
      %v4392 = vpop.xlane.xlu0 %4391
      %4393 = vadd.xlane.f32.xlu0 %v4362
      %v4394 = vpop.xlane.xlu0 %4393
      %4395 = vadd.xlane.f32.xlu0 %v4364
      %v4396 = vpop.xlane.xlu0 %4395
      %4397 = vadd.xlane.f32.xlu0 %v4366
      %v4398 = vpop.xlane.xlu0 %4397
      %v4399 = vpack.c.bf16 %v4338, %v4336
      %v4400 = vpack.c.bf16 %v4342, %v4340
      %v4401 = vpack.c.bf16 %v4346, %v4344
      %v4402 = vpack.c.bf16 %v4350, %v4348
      %v4403 = vpack.c.bf16 %v4354, %v4352
      %v4404 = vpack.c.bf16 %v4358, %v4356
      %v4405 = vpack.c.bf16 %v4362, %v4360
      %v4406 = vpack.c.bf16 %v4366, %v4364
      %4407 = vrot.lane.b32.xlu0 %v3707, 64
      %v4408 = vpop.permute.xlu0 %4407
      %4409 = vrot.lane.b32.xlu0 %v3708, 64
      %v4410 = vpop.permute.xlu0 %4409
      %4411 = vrot.lane.b32.xlu0 %v3709, 64
      %v4412 = vpop.permute.xlu0 %4411
      %4413 = vrot.lane.b32.xlu0 %v3710, 64
      %v4414 = vpop.permute.xlu0 %4413
      %4415 = vrot.lane.b32.xlu0 %v3711, 64
      %v4416 = vpop.permute.xlu0 %4415
      %4417 = vrot.lane.b32.xlu0 %v3712, 64
      %v4418 = vpop.permute.xlu0 %4417
      %4419 = vrot.lane.b32.xlu0 %v3713, 64
      %v4420 = vpop.permute.xlu0 %4419
      %4421 = vrot.lane.b32.xlu0 %v3714, 64
      %v4422 = vpop.permute.xlu0 %4421
      %4431 = vmatpush.bf16.msra.mxu0 %v4422
      %4432 = vmatpush.bf16.msra.mxu0 %v4420
      %4433 = vmatpush.bf16.msra.mxu0 %v4418
      %4434 = vmatpush.bf16.msra.mxu0 %v4416
      %4435 = vmatpush.bf16.msra.mxu0 %v4414
      %4436 = vmatpush.bf16.msra.mxu0 %v4412
      %4437 = vmatpush.bf16.msra.mxu0 %v4410
      %4438 = vmatpush.bf16.msra.mxu0 %v4408
      %4439 = vmatmul.bf16.gmra.mxu0 %v4399
      %v4440 = vpop.f32.mrf.mxu0
      %v4441 = vadd.f32 0.0, %v4440
      %v4442 = vpop.f32.mrf.mxu0
      %v4443 = vadd.f32 0.0, %v4442
      %4444 = vmatmul.bf16.gmra.mxu0 %v4400
      %v4445 = vpop.f32.mrf.mxu0
      %v4446 = vadd.f32 0.0, %v4445
      %v4447 = vpop.f32.mrf.mxu0
      %v4448 = vadd.f32 0.0, %v4447
      %4449 = vmatmul.bf16.gmra.mxu0 %v4401
      %v4450 = vpop.f32.mrf.mxu0
      %v4451 = vadd.f32 0.0, %v4450
      %v4452 = vpop.f32.mrf.mxu0
      %v4453 = vadd.f32 0.0, %v4452
      %4454 = vmatmul.bf16.gmra.mxu0 %v4402
      %v4455 = vpop.f32.mrf.mxu0
      %v4456 = vadd.f32 0.0, %v4455
      %v4457 = vpop.f32.mrf.mxu0
      %v4458 = vadd.f32 0.0, %v4457
      %4459 = vmatmul.bf16.gmra.mxu0 %v4403
      %v4460 = vpop.f32.mrf.mxu0
      %v4461 = vadd.f32 0.0, %v4460
      %v4462 = vpop.f32.mrf.mxu0
      %v4463 = vadd.f32 0.0, %v4462
      %4464 = vmatmul.bf16.gmra.mxu0 %v4404
      %v4465 = vpop.f32.mrf.mxu0
      %v4466 = vadd.f32 0.0, %v4465
      %v4467 = vpop.f32.mrf.mxu0
      %v4468 = vadd.f32 0.0, %v4467
      %4469 = vmatmul.bf16.gmra.mxu0 %v4405
      %v4470 = vpop.f32.mrf.mxu0
      %v4471 = vadd.f32 0.0, %v4470
      %v4472 = vpop.f32.mrf.mxu0
      %v4473 = vadd.f32 0.0, %v4472
      %4474 = vmatmul.bf16.gmra.mxu0 %v4406
      %v4475 = vpop.f32.mrf.mxu0
      %v4476 = vadd.f32 0.0, %v4475
      %v4477 = vpop.f32.mrf.mxu0
      %v4478 = vadd.f32 0.0, %v4477
      %4479 = vdwg.mxu0
      %v4480 = vrcp.pop %v4368
      %v4481 = vrcp.pop %v4370
      %v4482 = vrcp.pop %v4372
      %v4483 = vrcp.pop %v4374
      %v4484 = vrcp.pop %v4376
      %v4485 = vrcp.pop %v4378
      %v4486 = vrcp.pop %v4380
      %v4487 = vrcp.pop %v4382
      %v4488 = vrcp.pop %v4384
      %v4489 = vrcp.pop %v4386
      %v4490 = vrcp.pop %v4388
      %v4491 = vrcp.pop %v4390
      %v4492 = vrcp.pop %v4392
      %v4493 = vrcp.pop %v4394
      %v4494 = vrcp.pop %v4396
      %v4495 = vrcp.pop %v4398
      %v4496 = vmul.f32 %v4441, %v4480
      %v4497 = vmul.f32 %v4443, %v4481
      %v4498 = vmul.f32 %v4446, %v4482
      %v4499 = vmul.f32 %v4448, %v4483
      %v4500 = vmul.f32 %v4451, %v4484
      %v4501 = vmul.f32 %v4453, %v4485
      %v4502 = vmul.f32 %v4456, %v4486
      %v4503 = vmul.f32 %v4458, %v4487
      %v4504 = vmul.f32 %v4461, %v4488
      %v4505 = vmul.f32 %v4463, %v4489
      %v4506 = vmul.f32 %v4466, %v4490
      %v4507 = vmul.f32 %v4468, %v4491
      %v4508 = vmul.f32 %v4471, %v4492
      %v4509 = vmul.f32 %v4473, %v4493
      %v4510 = vmul.f32 %v4476, %v4494
      %v4511 = vmul.f32 %v4478, %v4495
      %4512 = vrot.lane.b32.xlu0 %v3442, 32
      %v4513 = vpop.permute.xlu0 %4512
      %4514 = vrot.lane.b32.xlu0 %v3443, 32
      %v4515 = vpop.permute.xlu0 %4514
      %4516 = vrot.lane.b32.xlu0 %v3444, 32
      %v4517 = vpop.permute.xlu0 %4516
      %4518 = vrot.lane.b32.xlu0 %v3445, 32
      %v4519 = vpop.permute.xlu0 %4518
      %4520 = vrot.lane.b32.xlu0 %v3446, 32
      %v4521 = vpop.permute.xlu0 %4520
      %4522 = vrot.lane.b32.xlu0 %v3447, 32
      %v4523 = vpop.permute.xlu0 %4522
      %4524 = vrot.lane.b32.xlu0 %v3448, 32
      %v4525 = vpop.permute.xlu0 %4524
      %4526 = vrot.lane.b32.xlu0 %v3449, 32
      %v4527 = vpop.permute.xlu0 %4526
      %4528 = vrot.lane.b32.xlu0 %v3466, 32
      %v4529 = vpop.permute.xlu0 %4528
      %4530 = vrot.lane.b32.xlu0 %v3467, 32
      %v4531 = vpop.permute.xlu0 %4530
      %4532 = vrot.lane.b32.xlu0 %v3468, 32
      %v4533 = vpop.permute.xlu0 %4532
      %4534 = vrot.lane.b32.xlu0 %v3469, 32
      %v4535 = vpop.permute.xlu0 %4534
      %4536 = vrot.lane.b32.xlu0 %v3470, 32
      %v4537 = vpop.permute.xlu0 %4536
      %4538 = vrot.lane.b32.xlu0 %v3471, 32
      %v4539 = vpop.permute.xlu0 %4538
      %4540 = vrot.lane.b32.xlu0 %v3472, 32
      %v4541 = vpop.permute.xlu0 %4540
      %4542 = vrot.lane.b32.xlu0 %v3473, 32
      %v4543 = vpop.permute.xlu0 %4542
      %v4545 = vsel %vm2017, %v4513, 0
      %v4548 = vsel %vm2017, %v4515, 0
      %v4551 = vsel %vm2017, %v4517, 0
      %v4554 = vsel %vm2017, %v4519, 0
      %v4557 = vsel %vm2017, %v4521, 0
      %v4560 = vsel %vm2017, %v4523, 0
      %v4563 = vsel %vm2017, %v4525, 0
      %v4566 = vsel %vm2017, %v4527, 0
      %v4569 = vsel %vm2017, %v4529, 0
      %v4572 = vsel %vm2017, %v4531, 0
      %v4575 = vsel %vm2017, %v4533, 0
      %v4578 = vsel %vm2017, %v4535, 0
      %v4581 = vsel %vm2017, %v4537, 0
      %v4584 = vsel %vm2017, %v4539, 0
      %v4587 = vsel %vm2017, %v4541, 0
      %v4590 = vsel %vm2017, %v4543, 0
      %4592 = vmatpush.bf16.xpose.msra.mxu0 %v4590
      %4593 = vmatpush.bf16.xpose.msra.mxu0 %v4587
      %4594 = vmatpush.bf16.xpose.msra.mxu0 %v4584
      %4595 = vmatpush.bf16.xpose.msra.mxu0 %v4581
      %4596 = vmatpush.bf16.xpose.msra.mxu0 %v4578
      %4597 = vmatpush.bf16.xpose.msra.mxu0 %v4575
      %4598 = vmatpush.bf16.xpose.msra.mxu0 %v4572
      %4599 = vmatpush.bf16.xpose.msra.mxu0 %v4569
      %4600 = vmatmul.bf16.gmra.mxu0 %v4545
      %v4601 = vpop.f32.mrf.mxu0
      %v4602 = vadd.f32 %v1935, %v4601
      %v4603 = vpop.f32.mrf.mxu0
      %v4604 = vadd.f32 %v1935, %v4603
      %4605 = vmatmul.bf16.gmra.mxu0 %v4548
      %v4606 = vpop.f32.mrf.mxu0
      %v4607 = vadd.f32 %v1935, %v4606
      %v4608 = vpop.f32.mrf.mxu0
      %v4609 = vadd.f32 %v1935, %v4608
      %4610 = vmatmul.bf16.gmra.mxu0 %v4551
      %v4611 = vpop.f32.mrf.mxu0
      %v4612 = vadd.f32 %v1935, %v4611
      %v4613 = vpop.f32.mrf.mxu0
      %v4614 = vadd.f32 %v1935, %v4613
      %4615 = vmatmul.bf16.gmra.mxu0 %v4554
      %v4616 = vpop.f32.mrf.mxu0
      %v4617 = vadd.f32 %v1935, %v4616
      %v4618 = vpop.f32.mrf.mxu0
      %v4619 = vadd.f32 %v1935, %v4618
      %4620 = vmatmul.bf16.gmra.mxu0 %v4557
      %v4621 = vpop.f32.mrf.mxu0
      %v4622 = vadd.f32 %v1935, %v4621
      %v4623 = vpop.f32.mrf.mxu0
      %v4624 = vadd.f32 %v1935, %v4623
      %4625 = vmatmul.bf16.gmra.mxu0 %v4560
      %v4626 = vpop.f32.mrf.mxu0
      %v4627 = vadd.f32 %v1935, %v4626
      %v4628 = vpop.f32.mrf.mxu0
      %v4629 = vadd.f32 %v1935, %v4628
      %4630 = vmatmul.bf16.gmra.mxu0 %v4563
      %v4631 = vpop.f32.mrf.mxu0
      %v4632 = vadd.f32 %v1935, %v4631
      %v4633 = vpop.f32.mrf.mxu0
      %v4634 = vadd.f32 %v1935, %v4633
      %4635 = vmatmul.bf16.gmra.mxu0 %v4566
      %v4636 = vpop.f32.mrf.mxu0
      %v4637 = vadd.f32 %v1935, %v4636
      %v4638 = vpop.f32.mrf.mxu0
      %v4639 = vadd.f32 %v1935, %v4638
      %4640 = vdwg.mxu0
      %4641 = vmax.xlane.f32.xlu0 %v4602
      %v4642 = vpop.xlane.xlu0 %4641
      %4643 = vmax.xlane.f32.xlu0 %v4604
      %v4644 = vpop.xlane.xlu0 %4643
      %4645 = vmax.xlane.f32.xlu0 %v4607
      %v4646 = vpop.xlane.xlu0 %4645
      %4647 = vmax.xlane.f32.xlu0 %v4609
      %v4648 = vpop.xlane.xlu0 %4647
      %4649 = vmax.xlane.f32.xlu0 %v4612
      %v4650 = vpop.xlane.xlu0 %4649
      %4651 = vmax.xlane.f32.xlu0 %v4614
      %v4652 = vpop.xlane.xlu0 %4651
      %4653 = vmax.xlane.f32.xlu0 %v4617
      %v4654 = vpop.xlane.xlu0 %4653
      %4655 = vmax.xlane.f32.xlu0 %v4619
      %v4656 = vpop.xlane.xlu0 %4655
      %4657 = vmax.xlane.f32.xlu0 %v4622
      %v4658 = vpop.xlane.xlu0 %4657
      %4659 = vmax.xlane.f32.xlu0 %v4624
      %v4660 = vpop.xlane.xlu0 %4659
      %4661 = vmax.xlane.f32.xlu0 %v4627
      %v4662 = vpop.xlane.xlu0 %4661
      %4663 = vmax.xlane.f32.xlu0 %v4629
      %v4664 = vpop.xlane.xlu0 %4663
      %4665 = vmax.xlane.f32.xlu0 %v4632
      %v4666 = vpop.xlane.xlu0 %4665
      %4667 = vmax.xlane.f32.xlu0 %v4634
      %v4668 = vpop.xlane.xlu0 %4667
      %4669 = vmax.xlane.f32.xlu0 %v4637
      %v4670 = vpop.xlane.xlu0 %4669
      %4671 = vmax.xlane.f32.xlu0 %v4639
      %v4672 = vpop.xlane.xlu0 %4671
      %v4673 = vsub.f32 %v4602, %v4642
      %v4674 = vsub.f32 %v4604, %v4644
      %v4675 = vsub.f32 %v4607, %v4646
      %v4676 = vsub.f32 %v4609, %v4648
      %v4677 = vsub.f32 %v4612, %v4650
      %v4678 = vsub.f32 %v4614, %v4652
      %v4679 = vsub.f32 %v4617, %v4654
      %v4680 = vsub.f32 %v4619, %v4656
      %v4681 = vsub.f32 %v4622, %v4658
      %v4682 = vsub.f32 %v4624, %v4660
      %v4683 = vsub.f32 %v4627, %v4662
      %v4684 = vsub.f32 %v4629, %v4664
      %v4685 = vsub.f32 %v4632, %v4666
      %v4686 = vsub.f32 %v4634, %v4668
      %v4687 = vsub.f32 %v4637, %v4670
      %v4688 = vsub.f32 %v4639, %v4672
      %v4689 = vmul.f32 %v4673, 1.442695
      %v4690 = vpow.pop %v4689
      %v4691 = vmul.f32 %v4674, 1.442695
      %v4692 = vpow.pop %v4691
      %v4693 = vmul.f32 %v4675, 1.442695
      %v4694 = vpow.pop %v4693
      %v4695 = vmul.f32 %v4676, 1.442695
      %v4696 = vpow.pop %v4695
      %v4697 = vmul.f32 %v4677, 1.442695
      %v4698 = vpow.pop %v4697
      %v4699 = vmul.f32 %v4678, 1.442695
      %v4700 = vpow.pop %v4699
      %v4701 = vmul.f32 %v4679, 1.442695
      %v4702 = vpow.pop %v4701
      %v4703 = vmul.f32 %v4680, 1.442695
      %v4704 = vpow.pop %v4703
      %v4705 = vmul.f32 %v4681, 1.442695
      %v4706 = vpow.pop %v4705
      %v4707 = vmul.f32 %v4682, 1.442695
      %v4708 = vpow.pop %v4707
      %v4709 = vmul.f32 %v4683, 1.442695
      %v4710 = vpow.pop %v4709
      %v4711 = vmul.f32 %v4684, 1.442695
      %v4712 = vpow.pop %v4711
      %v4713 = vmul.f32 %v4685, 1.442695
      %v4714 = vpow.pop %v4713
      %v4715 = vmul.f32 %v4686, 1.442695
      %v4716 = vpow.pop %v4715
      %v4717 = vmul.f32 %v4687, 1.442695
      %v4718 = vpow.pop %v4717
      %v4719 = vmul.f32 %v4688, 1.442695
      %v4720 = vpow.pop %v4719
      %4721 = vadd.xlane.f32.xlu0 %v4690
      %v4722 = vpop.xlane.xlu0 %4721
      %4723 = vadd.xlane.f32.xlu0 %v4692
      %v4724 = vpop.xlane.xlu0 %4723
      %4725 = vadd.xlane.f32.xlu0 %v4694
      %v4726 = vpop.xlane.xlu0 %4725
      %4727 = vadd.xlane.f32.xlu0 %v4696
      %v4728 = vpop.xlane.xlu0 %4727
      %4729 = vadd.xlane.f32.xlu0 %v4698
      %v4730 = vpop.xlane.xlu0 %4729
      %4731 = vadd.xlane.f32.xlu0 %v4700
      %v4732 = vpop.xlane.xlu0 %4731
      %4733 = vadd.xlane.f32.xlu0 %v4702
      %v4734 = vpop.xlane.xlu0 %4733
      %4735 = vadd.xlane.f32.xlu0 %v4704
      %v4736 = vpop.xlane.xlu0 %4735
      %4737 = vadd.xlane.f32.xlu0 %v4706
      %v4738 = vpop.xlane.xlu0 %4737
      %4739 = vadd.xlane.f32.xlu0 %v4708
      %v4740 = vpop.xlane.xlu0 %4739
      %4741 = vadd.xlane.f32.xlu0 %v4710
      %v4742 = vpop.xlane.xlu0 %4741
      %4743 = vadd.xlane.f32.xlu0 %v4712
      %v4744 = vpop.xlane.xlu0 %4743
      %4745 = vadd.xlane.f32.xlu0 %v4714
      %v4746 = vpop.xlane.xlu0 %4745
      %4747 = vadd.xlane.f32.xlu0 %v4716
      %v4748 = vpop.xlane.xlu0 %4747
      %4749 = vadd.xlane.f32.xlu0 %v4718
      %v4750 = vpop.xlane.xlu0 %4749
      %4751 = vadd.xlane.f32.xlu0 %v4720
      %v4752 = vpop.xlane.xlu0 %4751
      %v4753 = vpack.c.bf16 %v4692, %v4690
      %v4754 = vpack.c.bf16 %v4696, %v4694
      %v4755 = vpack.c.bf16 %v4700, %v4698
      %v4756 = vpack.c.bf16 %v4704, %v4702
      %v4757 = vpack.c.bf16 %v4708, %v4706
      %v4758 = vpack.c.bf16 %v4712, %v4710
      %v4759 = vpack.c.bf16 %v4716, %v4714
      %v4760 = vpack.c.bf16 %v4720, %v4718
      %4761 = vrot.lane.b32.xlu0 %v3707, 32
      %v4762 = vpop.permute.xlu0 %4761
      %4763 = vrot.lane.b32.xlu0 %v3708, 32
      %v4764 = vpop.permute.xlu0 %4763
      %4765 = vrot.lane.b32.xlu0 %v3709, 32
      %v4766 = vpop.permute.xlu0 %4765
      %4767 = vrot.lane.b32.xlu0 %v3710, 32
      %v4768 = vpop.permute.xlu0 %4767
      %4769 = vrot.lane.b32.xlu0 %v3711, 32
      %v4770 = vpop.permute.xlu0 %4769
      %4771 = vrot.lane.b32.xlu0 %v3712, 32
      %v4772 = vpop.permute.xlu0 %4771
      %4773 = vrot.lane.b32.xlu0 %v3713, 32
      %v4774 = vpop.permute.xlu0 %4773
      %4775 = vrot.lane.b32.xlu0 %v3714, 32
      %v4776 = vpop.permute.xlu0 %4775
      %4785 = vmatpush.bf16.msra.mxu0 %v4776
      %4786 = vmatpush.bf16.msra.mxu0 %v4774
      %4787 = vmatpush.bf16.msra.mxu0 %v4772
      %4788 = vmatpush.bf16.msra.mxu0 %v4770
      %4789 = vmatpush.bf16.msra.mxu0 %v4768
      %4790 = vmatpush.bf16.msra.mxu0 %v4766
      %4791 = vmatpush.bf16.msra.mxu0 %v4764
      %4792 = vmatpush.bf16.msra.mxu0 %v4762
      %4793 = vmatmul.bf16.gmra.mxu0 %v4753
      %v4794 = vpop.f32.mrf.mxu0
      %v4795 = vadd.f32 0.0, %v4794
      %v4796 = vpop.f32.mrf.mxu0
      %v4797 = vadd.f32 0.0, %v4796
      %4798 = vmatmul.bf16.gmra.mxu0 %v4754
      %v4799 = vpop.f32.mrf.mxu0
      %v4800 = vadd.f32 0.0, %v4799
      %v4801 = vpop.f32.mrf.mxu0
      %v4802 = vadd.f32 0.0, %v4801
      %4803 = vmatmul.bf16.gmra.mxu0 %v4755
      %v4804 = vpop.f32.mrf.mxu0
      %v4805 = vadd.f32 0.0, %v4804
      %v4806 = vpop.f32.mrf.mxu0
      %v4807 = vadd.f32 0.0, %v4806
      %4808 = vmatmul.bf16.gmra.mxu0 %v4756
      %v4809 = vpop.f32.mrf.mxu0
      %v4810 = vadd.f32 0.0, %v4809
      %v4811 = vpop.f32.mrf.mxu0
      %v4812 = vadd.f32 0.0, %v4811
      %4813 = vmatmul.bf16.gmra.mxu0 %v4757
      %v4814 = vpop.f32.mrf.mxu0
      %v4815 = vadd.f32 0.0, %v4814
      %v4816 = vpop.f32.mrf.mxu0
      %v4817 = vadd.f32 0.0, %v4816
      %4818 = vmatmul.bf16.gmra.mxu0 %v4758
      %v4819 = vpop.f32.mrf.mxu0
      %v4820 = vadd.f32 0.0, %v4819
      %v4821 = vpop.f32.mrf.mxu0
      %v4822 = vadd.f32 0.0, %v4821
      %4823 = vmatmul.bf16.gmra.mxu0 %v4759
      %v4824 = vpop.f32.mrf.mxu0
      %v4825 = vadd.f32 0.0, %v4824
      %v4826 = vpop.f32.mrf.mxu0
      %v4827 = vadd.f32 0.0, %v4826
      %4828 = vmatmul.bf16.gmra.mxu0 %v4760
      %v4829 = vpop.f32.mrf.mxu0
      %v4830 = vadd.f32 0.0, %v4829
      %v4831 = vpop.f32.mrf.mxu0
      %v4832 = vadd.f32 0.0, %v4831
      %4833 = vdwg.mxu0
      %v4834 = vrcp.pop %v4722
      %v4835 = vrcp.pop %v4724
      %v4836 = vrcp.pop %v4726
      %v4837 = vrcp.pop %v4728
      %v4838 = vrcp.pop %v4730
      %v4839 = vrcp.pop %v4732
      %v4840 = vrcp.pop %v4734
      %v4841 = vrcp.pop %v4736
      %v4842 = vrcp.pop %v4738
      %v4843 = vrcp.pop %v4740
      %v4844 = vrcp.pop %v4742
      %v4845 = vrcp.pop %v4744
      %v4846 = vrcp.pop %v4746
      %v4847 = vrcp.pop %v4748
      %v4848 = vrcp.pop %v4750
      %v4849 = vrcp.pop %v4752
      %v4850 = vmul.f32 %v4795, %v4834
      %v4851 = vmul.f32 %v4797, %v4835
      %v4852 = vmul.f32 %v4800, %v4836
      %v4853 = vmul.f32 %v4802, %v4837
      %v4854 = vmul.f32 %v4805, %v4838
      %v4855 = vmul.f32 %v4807, %v4839
      %v4856 = vmul.f32 %v4810, %v4840
      %v4857 = vmul.f32 %v4812, %v4841
      %v4858 = vmul.f32 %v4815, %v4842
      %v4859 = vmul.f32 %v4817, %v4843
      %v4860 = vmul.f32 %v4820, %v4844
      %v4861 = vmul.f32 %v4822, %v4845
      %v4862 = vmul.f32 %v4825, %v4846
      %v4863 = vmul.f32 %v4827, %v4847
      %v4864 = vmul.f32 %v4830, %v4848
      %v4865 = vmul.f32 %v4832, %v4849
      %4882 = vrot.lane.b32.xlu0 %v2702, 32
      %v4883 = vpop.permute.xlu0 %4882
      %4884 = vrot.lane.b32.xlu0 %v2703, 32
      %v4885 = vpop.permute.xlu0 %4884
      %4886 = vrot.lane.b32.xlu0 %v2704, 32
      %v4887 = vpop.permute.xlu0 %4886
      %4888 = vrot.lane.b32.xlu0 %v2705, 32
      %v4889 = vpop.permute.xlu0 %4888
      %4890 = vrot.lane.b32.xlu0 %v2706, 32
      %v4891 = vpop.permute.xlu0 %4890
      %4892 = vrot.lane.b32.xlu0 %v2707, 32
      %v4893 = vpop.permute.xlu0 %4892
      %4894 = vrot.lane.b32.xlu0 %v2708, 32
      %v4895 = vpop.permute.xlu0 %4894
      %4896 = vrot.lane.b32.xlu0 %v2709, 32
      %v4897 = vpop.permute.xlu0 %4896
      %4898 = vrot.lane.b32.xlu0 %v2710, 32
      %v4899 = vpop.permute.xlu0 %4898
      %4900 = vrot.lane.b32.xlu0 %v2711, 32
      %v4901 = vpop.permute.xlu0 %4900
      %4902 = vrot.lane.b32.xlu0 %v2712, 32
      %v4903 = vpop.permute.xlu0 %4902
      %4904 = vrot.lane.b32.xlu0 %v2713, 32
      %v4905 = vpop.permute.xlu0 %4904
      %4906 = vrot.lane.b32.xlu0 %v2714, 32
      %v4907 = vpop.permute.xlu0 %4906
      %4908 = vrot.lane.b32.xlu0 %v2715, 32
      %v4909 = vpop.permute.xlu0 %4908
      %4910 = vrot.lane.b32.xlu0 %v2716, 32
      %v4911 = vpop.permute.xlu0 %4910
      %4912 = vrot.lane.b32.xlu0 %v2717, 32
      %v4913 = vpop.permute.xlu0 %4912
      %4946 = vrot.lane.b32.xlu0 %v3056, 64
      %v4947 = vpop.permute.xlu0 %4946
      %4948 = vrot.lane.b32.xlu0 %v3057, 64
      %v4949 = vpop.permute.xlu0 %4948
      %4950 = vrot.lane.b32.xlu0 %v3058, 64
      %v4951 = vpop.permute.xlu0 %4950
      %4952 = vrot.lane.b32.xlu0 %v3059, 64
      %v4953 = vpop.permute.xlu0 %4952
      %4954 = vrot.lane.b32.xlu0 %v3060, 64
      %v4955 = vpop.permute.xlu0 %4954
      %4956 = vrot.lane.b32.xlu0 %v3061, 64
      %v4957 = vpop.permute.xlu0 %4956
      %4958 = vrot.lane.b32.xlu0 %v3062, 64
      %v4959 = vpop.permute.xlu0 %4958
      %4960 = vrot.lane.b32.xlu0 %v3063, 64
      %v4961 = vpop.permute.xlu0 %4960
      %4962 = vrot.lane.b32.xlu0 %v3064, 64
      %v4963 = vpop.permute.xlu0 %4962
      %4964 = vrot.lane.b32.xlu0 %v3065, 64
      %v4965 = vpop.permute.xlu0 %4964
      %4966 = vrot.lane.b32.xlu0 %v3066, 64
      %v4967 = vpop.permute.xlu0 %4966
      %4968 = vrot.lane.b32.xlu0 %v3067, 64
      %v4969 = vpop.permute.xlu0 %4968
      %4970 = vrot.lane.b32.xlu0 %v3068, 64
      %v4971 = vpop.permute.xlu0 %4970
      %4972 = vrot.lane.b32.xlu0 %v3069, 64
      %v4973 = vpop.permute.xlu0 %4972
      %4974 = vrot.lane.b32.xlu0 %v3070, 64
      %v4975 = vpop.permute.xlu0 %4974
      %4976 = vrot.lane.b32.xlu0 %v3071, 64
      %v4977 = vpop.permute.xlu0 %4976
      %5010 = vrot.lane.b32.xlu0 %v3410, 96
      %v5011 = vpop.permute.xlu0 %5010
      %5012 = vrot.lane.b32.xlu0 %v3411, 96
      %v5013 = vpop.permute.xlu0 %5012
      %5014 = vrot.lane.b32.xlu0 %v3412, 96
      %v5015 = vpop.permute.xlu0 %5014
      %5016 = vrot.lane.b32.xlu0 %v3413, 96
      %v5017 = vpop.permute.xlu0 %5016
      %5018 = vrot.lane.b32.xlu0 %v3414, 96
      %v5019 = vpop.permute.xlu0 %5018
      %5020 = vrot.lane.b32.xlu0 %v3415, 96
      %v5021 = vpop.permute.xlu0 %5020
      %5022 = vrot.lane.b32.xlu0 %v3416, 96
      %v5023 = vpop.permute.xlu0 %5022
      %5024 = vrot.lane.b32.xlu0 %v3417, 96
      %v5025 = vpop.permute.xlu0 %5024
      %5026 = vrot.lane.b32.xlu0 %v3418, 96
      %v5027 = vpop.permute.xlu0 %5026
      %5028 = vrot.lane.b32.xlu0 %v3419, 96
      %v5029 = vpop.permute.xlu0 %5028
      %5030 = vrot.lane.b32.xlu0 %v3420, 96
      %v5031 = vpop.permute.xlu0 %5030
      %5032 = vrot.lane.b32.xlu0 %v3421, 96
      %v5033 = vpop.permute.xlu0 %5032
      %5034 = vrot.lane.b32.xlu0 %v3422, 96
      %v5035 = vpop.permute.xlu0 %5034
      %5036 = vrot.lane.b32.xlu0 %v3423, 96
      %v5037 = vpop.permute.xlu0 %5036
      %5038 = vrot.lane.b32.xlu0 %v3424, 96
      %v5039 = vpop.permute.xlu0 %5038
      %5040 = vrot.lane.b32.xlu0 %v3425, 96
      %v5041 = vpop.permute.xlu0 %5040
      %5074 = vrot.lane.b32.xlu0 %v4142, 32
      %v5075 = vpop.permute.xlu0 %5074
      %5076 = vrot.lane.b32.xlu0 %v4143, 32
      %v5077 = vpop.permute.xlu0 %5076
      %5078 = vrot.lane.b32.xlu0 %v4144, 32
      %v5079 = vpop.permute.xlu0 %5078
      %5080 = vrot.lane.b32.xlu0 %v4145, 32
      %v5081 = vpop.permute.xlu0 %5080
      %5082 = vrot.lane.b32.xlu0 %v4146, 32
      %v5083 = vpop.permute.xlu0 %5082
      %5084 = vrot.lane.b32.xlu0 %v4147, 32
      %v5085 = vpop.permute.xlu0 %5084
      %5086 = vrot.lane.b32.xlu0 %v4148, 32
      %v5087 = vpop.permute.xlu0 %5086
      %5088 = vrot.lane.b32.xlu0 %v4149, 32
      %v5089 = vpop.permute.xlu0 %5088
      %5090 = vrot.lane.b32.xlu0 %v4150, 32
      %v5091 = vpop.permute.xlu0 %5090
      %5092 = vrot.lane.b32.xlu0 %v4151, 32
      %v5093 = vpop.permute.xlu0 %5092
      %5094 = vrot.lane.b32.xlu0 %v4152, 32
      %v5095 = vpop.permute.xlu0 %5094
      %5096 = vrot.lane.b32.xlu0 %v4153, 32
      %v5097 = vpop.permute.xlu0 %5096
      %5098 = vrot.lane.b32.xlu0 %v4154, 32
      %v5099 = vpop.permute.xlu0 %5098
      %5100 = vrot.lane.b32.xlu0 %v4155, 32
      %v5101 = vpop.permute.xlu0 %5100
      %5102 = vrot.lane.b32.xlu0 %v4156, 32
      %v5103 = vpop.permute.xlu0 %5102
      %5104 = vrot.lane.b32.xlu0 %v4157, 32
      %v5105 = vpop.permute.xlu0 %5104
      %5138 = vrot.lane.b32.xlu0 %v4496, 64
      %v5139 = vpop.permute.xlu0 %5138
      %5140 = vrot.lane.b32.xlu0 %v4497, 64
      %v5141 = vpop.permute.xlu0 %5140
      %5142 = vrot.lane.b32.xlu0 %v4498, 64
      %v5143 = vpop.permute.xlu0 %5142
      %5144 = vrot.lane.b32.xlu0 %v4499, 64
      %v5145 = vpop.permute.xlu0 %5144
      %5146 = vrot.lane.b32.xlu0 %v4500, 64
      %v5147 = vpop.permute.xlu0 %5146
      %5148 = vrot.lane.b32.xlu0 %v4501, 64
      %v5149 = vpop.permute.xlu0 %5148
      %5150 = vrot.lane.b32.xlu0 %v4502, 64
      %v5151 = vpop.permute.xlu0 %5150
      %5152 = vrot.lane.b32.xlu0 %v4503, 64
      %v5153 = vpop.permute.xlu0 %5152
      %5154 = vrot.lane.b32.xlu0 %v4504, 64
      %v5155 = vpop.permute.xlu0 %5154
      %5156 = vrot.lane.b32.xlu0 %v4505, 64
      %v5157 = vpop.permute.xlu0 %5156
      %5158 = vrot.lane.b32.xlu0 %v4506, 64
      %v5159 = vpop.permute.xlu0 %5158
      %5160 = vrot.lane.b32.xlu0 %v4507, 64
      %v5161 = vpop.permute.xlu0 %5160
      %5162 = vrot.lane.b32.xlu0 %v4508, 64
      %v5163 = vpop.permute.xlu0 %5162
      %5164 = vrot.lane.b32.xlu0 %v4509, 64
      %v5165 = vpop.permute.xlu0 %5164
      %5166 = vrot.lane.b32.xlu0 %v4510, 64
      %v5167 = vpop.permute.xlu0 %5166
      %5168 = vrot.lane.b32.xlu0 %v4511, 64
      %v5169 = vpop.permute.xlu0 %5168
      %5202 = vrot.lane.b32.xlu0 %v4850, 96
      %v5203 = vpop.permute.xlu0 %5202
      %5204 = vrot.lane.b32.xlu0 %v4851, 96
      %v5205 = vpop.permute.xlu0 %5204
      %5206 = vrot.lane.b32.xlu0 %v4852, 96
      %v5207 = vpop.permute.xlu0 %5206
      %5208 = vrot.lane.b32.xlu0 %v4853, 96
      %v5209 = vpop.permute.xlu0 %5208
      %5210 = vrot.lane.b32.xlu0 %v4854, 96
      %v5211 = vpop.permute.xlu0 %5210
      %5212 = vrot.lane.b32.xlu0 %v4855, 96
      %v5213 = vpop.permute.xlu0 %5212
      %5214 = vrot.lane.b32.xlu0 %v4856, 96
      %v5215 = vpop.permute.xlu0 %5214
      %5216 = vrot.lane.b32.xlu0 %v4857, 96
      %v5217 = vpop.permute.xlu0 %5216
      %5218 = vrot.lane.b32.xlu0 %v4858, 96
      %v5219 = vpop.permute.xlu0 %5218
      %5220 = vrot.lane.b32.xlu0 %v4859, 96
      %v5221 = vpop.permute.xlu0 %5220
      %5222 = vrot.lane.b32.xlu0 %v4860, 96
      %v5223 = vpop.permute.xlu0 %5222
      %5224 = vrot.lane.b32.xlu0 %v4861, 96
      %v5225 = vpop.permute.xlu0 %5224
      %5226 = vrot.lane.b32.xlu0 %v4862, 96
      %v5227 = vpop.permute.xlu0 %5226
      %5228 = vrot.lane.b32.xlu0 %v4863, 96
      %v5229 = vpop.permute.xlu0 %5228
      %5230 = vrot.lane.b32.xlu0 %v4864, 96
      %v5231 = vpop.permute.xlu0 %5230
      %5232 = vrot.lane.b32.xlu0 %v4865, 96
      %v5233 = vpop.permute.xlu0 %5232
      %v5250 = vsel %vm2017, %v2348, %v4883
      %v5251 = vsel %vm2017, %v2349, %v4885
      %v5252 = vsel %vm2017, %v2350, %v4887
      %v5253 = vsel %vm2017, %v2351, %v4889
      %v5254 = vsel %vm2017, %v2352, %v4891
      %v5255 = vsel %vm2017, %v2353, %v4893
      %v5256 = vsel %vm2017, %v2354, %v4895
      %v5257 = vsel %vm2017, %v2355, %v4897
      %v5258 = vsel %vm2017, %v2356, %v4899
      %v5259 = vsel %vm2017, %v2357, %v4901
      %v5260 = vsel %vm2017, %v2358, %v4903
      %v5261 = vsel %vm2017, %v2359, %v4905
      %v5262 = vsel %vm2017, %v2360, %v4907
      %v5263 = vsel %vm2017, %v2361, %v4909
      %v5264 = vsel %vm2017, %v2362, %v4911
      %v5265 = vsel %vm2017, %v2363, %v4913
      %vm5266 = vcmask 523264
      %v5267 = vsel %vm5266, %v5250, %v4947
      %v5268 = vsel %vm5266, %v5251, %v4949
      %v5269 = vsel %vm5266, %v5252, %v4951
      %v5270 = vsel %vm5266, %v5253, %v4953
      %v5271 = vsel %vm5266, %v5254, %v4955
      %v5272 = vsel %vm5266, %v5255, %v4957
      %v5273 = vsel %vm5266, %v5256, %v4959
      %v5274 = vsel %vm5266, %v5257, %v4961
      %v5275 = vsel %vm5266, %v5258, %v4963
      %v5276 = vsel %vm5266, %v5259, %v4965
      %v5277 = vsel %vm5266, %v5260, %v4967
      %v5278 = vsel %vm5266, %v5261, %v4969
      %v5279 = vsel %vm5266, %v5262, %v4971
      %v5280 = vsel %vm5266, %v5263, %v4973
      %v5281 = vsel %vm5266, %v5264, %v4975
      %v5282 = vsel %vm5266, %v5265, %v4977
      %vm5283 = vcmask 785408
      %v5284 = vsel %vm5283, %v5267, %v5011
      %v5285 = vsel %vm5283, %v5268, %v5013
      %v5286 = vsel %vm5283, %v5269, %v5015
      %v5287 = vsel %vm5283, %v5270, %v5017
      %v5288 = vsel %vm5283, %v5271, %v5019
      %v5289 = vsel %vm5283, %v5272, %v5021
      %v5290 = vsel %vm5283, %v5273, %v5023
      %v5291 = vsel %vm5283, %v5274, %v5025
      %v5292 = vsel %vm5283, %v5275, %v5027
      %v5293 = vsel %vm5283, %v5276, %v5029
      %v5294 = vsel %vm5283, %v5277, %v5031
      %v5295 = vsel %vm5283, %v5278, %v5033
      %v5296 = vsel %vm5283, %v5279, %v5035
      %v5297 = vsel %vm5283, %v5280, %v5037
      %v5298 = vsel %vm5283, %v5281, %v5039
      %v5299 = vsel %vm5283, %v5282, %v5041
      %v5300 = vsel %vm2017, %v3788, %v5075
      %v5301 = vsel %vm2017, %v3789, %v5077
      %v5302 = vsel %vm2017, %v3790, %v5079
      %v5303 = vsel %vm2017, %v3791, %v5081
      %v5304 = vsel %vm2017, %v3792, %v5083
      %v5305 = vsel %vm2017, %v3793, %v5085
      %v5306 = vsel %vm2017, %v3794, %v5087
      %v5307 = vsel %vm2017, %v3795, %v5089
      %v5308 = vsel %vm2017, %v3796, %v5091
      %v5309 = vsel %vm2017, %v3797, %v5093
      %v5310 = vsel %vm2017, %v3798, %v5095
      %v5311 = vsel %vm2017, %v3799, %v5097
      %v5312 = vsel %vm2017, %v3800, %v5099
      %v5313 = vsel %vm2017, %v3801, %v5101
      %v5314 = vsel %vm2017, %v3802, %v5103
      %v5315 = vsel %vm2017, %v3803, %v5105
      %v5316 = vsel %vm5266, %v5300, %v5139
      %v5317 = vsel %vm5266, %v5301, %v5141
      %v5318 = vsel %vm5266, %v5302, %v5143
      %v5319 = vsel %vm5266, %v5303, %v5145
      %v5320 = vsel %vm5266, %v5304, %v5147
      %v5321 = vsel %vm5266, %v5305, %v5149
      %v5322 = vsel %vm5266, %v5306, %v5151
      %v5323 = vsel %vm5266, %v5307, %v5153
      %v5324 = vsel %vm5266, %v5308, %v5155
      %v5325 = vsel %vm5266, %v5309, %v5157
      %v5326 = vsel %vm5266, %v5310, %v5159
      %v5327 = vsel %vm5266, %v5311, %v5161
      %v5328 = vsel %vm5266, %v5312, %v5163
      %v5329 = vsel %vm5266, %v5313, %v5165
      %v5330 = vsel %vm5266, %v5314, %v5167
      %v5331 = vsel %vm5266, %v5315, %v5169
      %v5332 = vsel %vm5283, %v5316, %v5203
      %v5333 = vsel %vm5283, %v5317, %v5205
      %v5334 = vsel %vm5283, %v5318, %v5207
      %v5335 = vsel %vm5283, %v5319, %v5209
      %v5336 = vsel %vm5283, %v5320, %v5211
      %v5337 = vsel %vm5283, %v5321, %v5213
      %v5338 = vsel %vm5283, %v5322, %v5215
      %v5339 = vsel %vm5283, %v5323, %v5217
      %v5340 = vsel %vm5283, %v5324, %v5219
      %v5341 = vsel %vm5283, %v5325, %v5221
      %v5342 = vsel %vm5283, %v5326, %v5223
      %v5343 = vsel %vm5283, %v5327, %v5225
      %v5344 = vsel %vm5283, %v5328, %v5227
      %v5345 = vsel %vm5283, %v5329, %v5229
      %v5346 = vsel %vm5283, %v5330, %v5231
      %v5347 = vsel %vm5283, %v5331, %v5233
      %v5348 = vpack.c.bf16 %v5285, %v5284
      %v5349 = vpack.c.bf16 %v5333, %v5332
      %v5350 = vpack.c.bf16 %v5287, %v5286
      %v5351 = vpack.c.bf16 %v5335, %v5334
      %v5352 = vpack.c.bf16 %v5289, %v5288
      %v5353 = vpack.c.bf16 %v5337, %v5336
      %v5354 = vpack.c.bf16 %v5291, %v5290
      %v5355 = vpack.c.bf16 %v5339, %v5338
      %v5356 = vpack.c.bf16 %v5293, %v5292
      %v5357 = vpack.c.bf16 %v5341, %v5340
      %v5358 = vpack.c.bf16 %v5295, %v5294
      %v5359 = vpack.c.bf16 %v5343, %v5342
      %v5360 = vpack.c.bf16 %v5297, %v5296
      %v5361 = vpack.c.bf16 %v5345, %v5344
      %v5362 = vpack.c.bf16 %v5299, %v5298
      %v5363 = vpack.c.bf16 %v5347, %v5346
      %v5364 = vld [vmem:[#allocation2] sm:$0xff]
      %v5365 = vld [vmem:[#allocation2 + $0x8] sm:$0xff]
      %v5366 = vld [vmem:[#allocation2 + $0x10] sm:$0xff]
      %v5367 = vld [vmem:[#allocation2 + $0x18] sm:$0xff]
      %v5368 = vld [vmem:[#allocation2 + $0x20] sm:$0xff]
      %v5369 = vld [vmem:[#allocation2 + $0x28] sm:$0xff]
      %v5370 = vld [vmem:[#allocation2 + $0x30] sm:$0xff]
      %v5371 = vld [vmem:[#allocation2 + $0x38] sm:$0xff]
      %v5372 = vld [vmem:[#allocation2 + $0x40] sm:$0xff]
      %v5373 = vld [vmem:[#allocation2 + $0x48] sm:$0xff]
      %v5374 = vld [vmem:[#allocation2 + $0x50] sm:$0xff]
      %v5375 = vld [vmem:[#allocation2 + $0x58] sm:$0xff]
      %v5376 = vld [vmem:[#allocation2 + $0x60] sm:$0xff]
      %v5377 = vld [vmem:[#allocation2 + $0x68] sm:$0xff]
      %v5378 = vld [vmem:[#allocation2 + $0x70] sm:$0xff]
      %v5379 = vld [vmem:[#allocation2 + $0x78] sm:$0xff]
      %s5380 = smul.addr %s465, 4
      %s5381 = scalar_lea.vmem %s6, %s5380
      %v5382 = vld [vmem:[%s5381] sm:$0xf]
      %v5383 = vld [vmem:[%s5381 + $0x4] sm:$0xf]
      %v5384 = vld [vmem:[%s5381 + $0x8] sm:$0xf]
      %v5385 = vld [vmem:[%s5381 + $0xc] sm:$0xf]
      %v5386 = vld [vmem:[%s5381 + $0x10] sm:$0xf]
      %v5387 = vld [vmem:[%s5381 + $0x14] sm:$0xf]
      %v5388 = vld [vmem:[%s5381 + $0x18] sm:$0xf]
      %v5389 = vld [vmem:[%s5381 + $0x1c] sm:$0xf]
      %v5390 = vld [vmem:[%s5381 + $0x20] sm:$0xf]
      %v5391 = vld [vmem:[%s5381 + $0x24] sm:$0xf]
      %v5392 = vld [vmem:[%s5381 + $0x28] sm:$0xf]
      %v5393 = vld [vmem:[%s5381 + $0x2c] sm:$0xf]
      %v5394 = vld [vmem:[%s5381 + $0x30] sm:$0xf]
      %v5395 = vld [vmem:[%s5381 + $0x34] sm:$0xf]
      %v5396 = vld [vmem:[%s5381 + $0x38] sm:$0xf]
      %v5397 = vld [vmem:[%s5381 + $0x3c] sm:$0xf]
      %v5398 = vld [vmem:[%s5381 + $0x40] sm:$0xf]
      %v5399 = vld [vmem:[%s5381 + $0x44] sm:$0xf]
      %v5400 = vld [vmem:[%s5381 + $0x48] sm:$0xf]
      %v5401 = vld [vmem:[%s5381 + $0x4c] sm:$0xf]
      %v5402 = vld [vmem:[%s5381 + $0x50] sm:$0xf]
      %v5403 = vld [vmem:[%s5381 + $0x54] sm:$0xf]
      %v5404 = vld [vmem:[%s5381 + $0x58] sm:$0xf]
      %v5405 = vld [vmem:[%s5381 + $0x5c] sm:$0xf]
      %v5406 = vld [vmem:[%s5381 + $0x60] sm:$0xf]
      %v5407 = vld [vmem:[%s5381 + $0x64] sm:$0xf]
      %v5408 = vld [vmem:[%s5381 + $0x68] sm:$0xf]
      %v5409 = vld [vmem:[%s5381 + $0x6c] sm:$0xf]
      %v5410 = vld [vmem:[%s5381 + $0x70] sm:$0xf]
      %v5411 = vld [vmem:[%s5381 + $0x74] sm:$0xf]
      %v5412 = vld [vmem:[%s5381 + $0x78] sm:$0xf]
      %v5413 = vld [vmem:[%s5381 + $0x7c] sm:$0xf]
      %v5446 = vunpack.c.l.b16 %v5382
      %v5447 = vunpack.c.l.b16 %v5383
      %v5448 = vunpack.c.l.b16 %v5384
      %v5449 = vunpack.c.l.b16 %v5385
      %v5450 = vunpack.c.l.b16 %v5386
      %v5451 = vunpack.c.l.b16 %v5387
      %v5452 = vunpack.c.l.b16 %v5388
      %v5453 = vunpack.c.l.b16 %v5389
      %v5454 = vunpack.c.l.b16 %v5390
      %v5455 = vunpack.c.l.b16 %v5391
      %v5456 = vunpack.c.l.b16 %v5392
      %v5457 = vunpack.c.l.b16 %v5393
      %v5458 = vunpack.c.l.b16 %v5394
      %v5459 = vunpack.c.l.b16 %v5395
      %v5460 = vunpack.c.l.b16 %v5396
      %v5461 = vunpack.c.l.b16 %v5397
      %v5462 = vunpack.c.l.b16 %v5398
      %v5463 = vunpack.c.l.b16 %v5399
      %v5464 = vunpack.c.l.b16 %v5400
      %v5465 = vunpack.c.l.b16 %v5401
      %v5466 = vunpack.c.l.b16 %v5402
      %v5467 = vunpack.c.l.b16 %v5403
      %v5468 = vunpack.c.l.b16 %v5404
      %v5469 = vunpack.c.l.b16 %v5405
      %v5470 = vunpack.c.l.b16 %v5406
      %v5471 = vunpack.c.l.b16 %v5407
      %v5472 = vunpack.c.l.b16 %v5408
      %v5473 = vunpack.c.l.b16 %v5409
      %v5474 = vunpack.c.l.b16 %v5410
      %v5475 = vunpack.c.l.b16 %v5411
      %v5476 = vunpack.c.l.b16 %v5412
      %v5477 = vunpack.c.l.b16 %v5413
      %v5478 = vpack.c.b16 %v5447, %v5446
      %v5479 = vpack.c.b16 %v5449, %v5448
      %v5480 = vpack.c.b16 %v5451, %v5450
      %v5481 = vpack.c.b16 %v5453, %v5452
      %v5482 = vpack.c.b16 %v5455, %v5454
      %v5483 = vpack.c.b16 %v5457, %v5456
      %v5484 = vpack.c.b16 %v5459, %v5458
      %v5485 = vpack.c.b16 %v5461, %v5460
      %v5486 = vpack.c.b16 %v5463, %v5462
      %v5487 = vpack.c.b16 %v5465, %v5464
      %v5488 = vpack.c.b16 %v5467, %v5466
      %v5489 = vpack.c.b16 %v5469, %v5468
      %v5490 = vpack.c.b16 %v5471, %v5470
      %v5491 = vpack.c.b16 %v5473, %v5472
      %v5492 = vpack.c.b16 %v5475, %v5474
      %v5493 = vpack.c.b16 %v5477, %v5476
      %5510 = vmatpush.bf16.msra.mxu0 %v5485
      %5511 = vmatpush.bf16.msra.mxu0 %v5484
      %5512 = vmatpush.bf16.msra.mxu0 %v5483
      %5513 = vmatpush.bf16.msra.mxu0 %v5482
      %5514 = vmatpush.bf16.msra.mxu0 %v5481
      %5515 = vmatpush.bf16.msra.mxu0 %v5480
      %5516 = vmatpush.bf16.msra.mxu0 %v5479
      %5517 = vmatpush.bf16.msra.mxu0 %v5478
      %5518 = vmatmul.bf16.gmra.mxu0 %v5348
      %v5519 = vpop.f32.mrf.mxu0
      %v5520 = vadd.f32 0.0, %v5519
      %v5521 = vpop.f32.mrf.mxu0
      %v5522 = vadd.f32 0.0, %v5521
      %5523 = vmatmul.bf16.gmra.mxu0 %v5350
      %v5524 = vpop.f32.mrf.mxu0
      %v5525 = vadd.f32 0.0, %v5524
      %v5526 = vpop.f32.mrf.mxu0
      %v5527 = vadd.f32 0.0, %v5526
      %5528 = vmatmul.bf16.gmra.mxu0 %v5352
      %v5529 = vpop.f32.mrf.mxu0
      %v5530 = vadd.f32 0.0, %v5529
      %v5531 = vpop.f32.mrf.mxu0
      %v5532 = vadd.f32 0.0, %v5531
      %5533 = vmatmul.bf16.gmra.mxu0 %v5354
      %v5534 = vpop.f32.mrf.mxu0
      %v5535 = vadd.f32 0.0, %v5534
      %v5536 = vpop.f32.mrf.mxu0
      %v5537 = vadd.f32 0.0, %v5536
      %5538 = vmatmul.bf16.gmra.mxu0 %v5356
      %v5539 = vpop.f32.mrf.mxu0
      %v5540 = vadd.f32 0.0, %v5539
      %v5541 = vpop.f32.mrf.mxu0
      %v5542 = vadd.f32 0.0, %v5541
      %5543 = vmatmul.bf16.gmra.mxu0 %v5358
      %v5544 = vpop.f32.mrf.mxu0
      %v5545 = vadd.f32 0.0, %v5544
      %v5546 = vpop.f32.mrf.mxu0
      %v5547 = vadd.f32 0.0, %v5546
      %5548 = vmatmul.bf16.gmra.mxu0 %v5360
      %v5549 = vpop.f32.mrf.mxu0
      %v5550 = vadd.f32 0.0, %v5549
      %v5551 = vpop.f32.mrf.mxu0
      %v5552 = vadd.f32 0.0, %v5551
      %5553 = vmatmul.bf16.gmra.mxu0 %v5362
      %v5554 = vpop.f32.mrf.mxu0
      %v5555 = vadd.f32 0.0, %v5554
      %v5556 = vpop.f32.mrf.mxu0
      %v5557 = vadd.f32 0.0, %v5556
      %5558 = vdwg.mxu0
      %5559 = vmatpush.bf16.msra.mxu0 %v5493
      %5560 = vmatpush.bf16.msra.mxu0 %v5492
      %5561 = vmatpush.bf16.msra.mxu0 %v5491
      %5562 = vmatpush.bf16.msra.mxu0 %v5490
      %5563 = vmatpush.bf16.msra.mxu0 %v5489
      %5564 = vmatpush.bf16.msra.mxu0 %v5488
      %5565 = vmatpush.bf16.msra.mxu0 %v5487
      %5566 = vmatpush.bf16.msra.mxu0 %v5486
      %5567 = vmatmul.bf16.gmra.mxu0 %v5349
      %v5568 = vpop.f32.mrf.mxu0
      %v5569 = vadd.f32 %v5520, %v5568
      %v5570 = vpop.f32.mrf.mxu0
      %v5571 = vadd.f32 %v5522, %v5570
      %5572 = vmatmul.bf16.gmra.mxu0 %v5351
      %v5573 = vpop.f32.mrf.mxu0
      %v5574 = vadd.f32 %v5525, %v5573
      %v5575 = vpop.f32.mrf.mxu0
      %v5576 = vadd.f32 %v5527, %v5575
      %5577 = vmatmul.bf16.gmra.mxu0 %v5353
      %v5578 = vpop.f32.mrf.mxu0
      %v5579 = vadd.f32 %v5530, %v5578
      %v5580 = vpop.f32.mrf.mxu0
      %v5581 = vadd.f32 %v5532, %v5580
      %5582 = vmatmul.bf16.gmra.mxu0 %v5355
      %v5583 = vpop.f32.mrf.mxu0
      %v5584 = vadd.f32 %v5535, %v5583
      %v5585 = vpop.f32.mrf.mxu0
      %v5586 = vadd.f32 %v5537, %v5585
      %5587 = vmatmul.bf16.gmra.mxu0 %v5357
      %v5588 = vpop.f32.mrf.mxu0
      %v5589 = vadd.f32 %v5540, %v5588
      %v5590 = vpop.f32.mrf.mxu0
      %v5591 = vadd.f32 %v5542, %v5590
      %5592 = vmatmul.bf16.gmra.mxu0 %v5359
      %v5593 = vpop.f32.mrf.mxu0
      %v5594 = vadd.f32 %v5545, %v5593
      %v5595 = vpop.f32.mrf.mxu0
      %v5596 = vadd.f32 %v5547, %v5595
      %5597 = vmatmul.bf16.gmra.mxu0 %v5361
      %v5598 = vpop.f32.mrf.mxu0
      %v5599 = vadd.f32 %v5550, %v5598
      %v5600 = vpop.f32.mrf.mxu0
      %v5601 = vadd.f32 %v5552, %v5600
      %5602 = vmatmul.bf16.gmra.mxu0 %v5363
      %v5603 = vpop.f32.mrf.mxu0
      %v5604 = vadd.f32 %v5555, %v5603
      %v5605 = vpop.f32.mrf.mxu0
      %v5606 = vadd.f32 %v5557, %v5605
      %5607 = vdwg.mxu0
      %v5608 = vadd.f32 %v5364, %v5569
      %v5609 = vadd.f32 %v5365, %v5571
      %v5610 = vadd.f32 %v5366, %v5574
      %v5611 = vadd.f32 %v5367, %v5576
      %v5612 = vadd.f32 %v5368, %v5579
      %v5613 = vadd.f32 %v5369, %v5581
      %v5614 = vadd.f32 %v5370, %v5584
      %v5615 = vadd.f32 %v5371, %v5586
      %v5616 = vadd.f32 %v5372, %v5589
      %v5617 = vadd.f32 %v5373, %v5591
      %v5618 = vadd.f32 %v5374, %v5594
      %v5619 = vadd.f32 %v5375, %v5596
      %v5620 = vadd.f32 %v5376, %v5599
      %v5621 = vadd.f32 %v5377, %v5601
      %v5622 = vadd.f32 %v5378, %v5604
      %v5623 = vadd.f32 %v5379, %v5606
      %5624 = vst [vmem:[#allocation2] sm:$0xff] %v5608
      %5625 = vst [vmem:[#allocation2 + $0x8] sm:$0xff] %v5609
      %5626 = vst [vmem:[#allocation2 + $0x10] sm:$0xff] %v5610
      %5627 = vst [vmem:[#allocation2 + $0x18] sm:$0xff] %v5611
      %5628 = vst [vmem:[#allocation2 + $0x20] sm:$0xff] %v5612
      %5629 = vst [vmem:[#allocation2 + $0x28] sm:$0xff] %v5613
      %5630 = vst [vmem:[#allocation2 + $0x30] sm:$0xff] %v5614
      %5631 = vst [vmem:[#allocation2 + $0x38] sm:$0xff] %v5615
      %5632 = vst [vmem:[#allocation2 + $0x40] sm:$0xff] %v5616
      %5633 = vst [vmem:[#allocation2 + $0x48] sm:$0xff] %v5617
      %5634 = vst [vmem:[#allocation2 + $0x50] sm:$0xff] %v5618
      %5635 = vst [vmem:[#allocation2 + $0x58] sm:$0xff] %v5619
      %5636 = vst [vmem:[#allocation2 + $0x60] sm:$0xff] %v5620
      %5637 = vst [vmem:[#allocation2 + $0x68] sm:$0xff] %v5621
      %5638 = vst [vmem:[#allocation2 + $0x70] sm:$0xff] %v5622
      %5639 = vst [vmem:[#allocation2 + $0x78] sm:$0xff] %v5623
      %v5640 = vld [vmem:[#allocation3] sm:$0xff]
      %v5641 = vld [vmem:[#allocation3 + $0x8] sm:$0xff]
      %v5642 = vld [vmem:[#allocation3 + $0x10] sm:$0xff]
      %v5643 = vld [vmem:[#allocation3 + $0x18] sm:$0xff]
      %v5644 = vld [vmem:[#allocation3 + $0x20] sm:$0xff]
      %v5645 = vld [vmem:[#allocation3 + $0x28] sm:$0xff]
      %v5646 = vld [vmem:[#allocation3 + $0x30] sm:$0xff]
      %v5647 = vld [vmem:[#allocation3 + $0x38] sm:$0xff]
      %v5648 = vld [vmem:[#allocation3 + $0x40] sm:$0xff]
      %v5649 = vld [vmem:[#allocation3 + $0x48] sm:$0xff]
      %v5650 = vld [vmem:[#allocation3 + $0x50] sm:$0xff]
      %v5651 = vld [vmem:[#allocation3 + $0x58] sm:$0xff]
      %v5652 = vld [vmem:[#allocation3 + $0x60] sm:$0xff]
      %v5653 = vld [vmem:[#allocation3 + $0x68] sm:$0xff]
      %v5654 = vld [vmem:[#allocation3 + $0x70] sm:$0xff]
      %v5655 = vld [vmem:[#allocation3 + $0x78] sm:$0xff]
      %s5656 = smul.addr %s465, 4
      %s5657 = scalar_lea.vmem %s7, %s5656
      %v5658 = vld [vmem:[%s5657] sm:$0xf]
      %v5659 = vld [vmem:[%s5657 + $0x4] sm:$0xf]
      %v5660 = vld [vmem:[%s5657 + $0x8] sm:$0xf]
      %v5661 = vld [vmem:[%s5657 + $0xc] sm:$0xf]
      %v5662 = vld [vmem:[%s5657 + $0x10] sm:$0xf]
      %v5663 = vld [vmem:[%s5657 + $0x14] sm:$0xf]
      %v5664 = vld [vmem:[%s5657 + $0x18] sm:$0xf]
      %v5665 = vld [vmem:[%s5657 + $0x1c] sm:$0xf]
      %v5666 = vld [vmem:[%s5657 + $0x20] sm:$0xf]
      %v5667 = vld [vmem:[%s5657 + $0x24] sm:$0xf]
      %v5668 = vld [vmem:[%s5657 + $0x28] sm:$0xf]
      %v5669 = vld [vmem:[%s5657 + $0x2c] sm:$0xf]
      %v5670 = vld [vmem:[%s5657 + $0x30] sm:$0xf]
      %v5671 = vld [vmem:[%s5657 + $0x34] sm:$0xf]
      %v5672 = vld [vmem:[%s5657 + $0x38] sm:$0xf]
      %v5673 = vld [vmem:[%s5657 + $0x3c] sm:$0xf]
      %v5674 = vld [vmem:[%s5657 + $0x40] sm:$0xf]
      %v5675 = vld [vmem:[%s5657 + $0x44] sm:$0xf]
      %v5676 = vld [vmem:[%s5657 + $0x48] sm:$0xf]
      %v5677 = vld [vmem:[%s5657 + $0x4c] sm:$0xf]
      %v5678 = vld [vmem:[%s5657 + $0x50] sm:$0xf]
      %v5679 = vld [vmem:[%s5657 + $0x54] sm:$0xf]
      %v5680 = vld [vmem:[%s5657 + $0x58] sm:$0xf]
      %v5681 = vld [vmem:[%s5657 + $0x5c] sm:$0xf]
      %v5682 = vld [vmem:[%s5657 + $0x60] sm:$0xf]
      %v5683 = vld [vmem:[%s5657 + $0x64] sm:$0xf]
      %v5684 = vld [vmem:[%s5657 + $0x68] sm:$0xf]
      %v5685 = vld [vmem:[%s5657 + $0x6c] sm:$0xf]
      %v5686 = vld [vmem:[%s5657 + $0x70] sm:$0xf]
      %v5687 = vld [vmem:[%s5657 + $0x74] sm:$0xf]
      %v5688 = vld [vmem:[%s5657 + $0x78] sm:$0xf]
      %v5689 = vld [vmem:[%s5657 + $0x7c] sm:$0xf]
      %v5738 = vunpack.c.l.b16 %v5658
      %v5739 = vunpack.c.l.b16 %v5659
      %v5740 = vunpack.c.l.b16 %v5660
      %v5741 = vunpack.c.l.b16 %v5661
      %v5742 = vunpack.c.l.b16 %v5662
      %v5743 = vunpack.c.l.b16 %v5663
      %v5744 = vunpack.c.l.b16 %v5664
      %v5745 = vunpack.c.l.b16 %v5665
      %v5746 = vunpack.c.l.b16 %v5666
      %v5747 = vunpack.c.l.b16 %v5667
      %v5748 = vunpack.c.l.b16 %v5668
      %v5749 = vunpack.c.l.b16 %v5669
      %v5750 = vunpack.c.l.b16 %v5670
      %v5751 = vunpack.c.l.b16 %v5671
      %v5752 = vunpack.c.l.b16 %v5672
      %v5753 = vunpack.c.l.b16 %v5673
      %v5754 = vunpack.c.l.b16 %v5674
      %v5755 = vunpack.c.l.b16 %v5675
      %v5756 = vunpack.c.l.b16 %v5676
      %v5757 = vunpack.c.l.b16 %v5677
      %v5758 = vunpack.c.l.b16 %v5678
      %v5759 = vunpack.c.l.b16 %v5679
      %v5760 = vunpack.c.l.b16 %v5680
      %v5761 = vunpack.c.l.b16 %v5681
      %v5762 = vunpack.c.l.b16 %v5682
      %v5763 = vunpack.c.l.b16 %v5683
      %v5764 = vunpack.c.l.b16 %v5684
      %v5765 = vunpack.c.l.b16 %v5685
      %v5766 = vunpack.c.l.b16 %v5686
      %v5767 = vunpack.c.l.b16 %v5687
      %v5768 = vunpack.c.l.b16 %v5688
      %v5769 = vunpack.c.l.b16 %v5689
      %v5770 = vpack.c.b16 %v5739, %v5738
      %v5771 = vpack.c.b16 %v5741, %v5740
      %v5772 = vpack.c.b16 %v5743, %v5742
      %v5773 = vpack.c.b16 %v5745, %v5744
      %v5774 = vpack.c.b16 %v5747, %v5746
      %v5775 = vpack.c.b16 %v5749, %v5748
      %v5776 = vpack.c.b16 %v5751, %v5750
      %v5777 = vpack.c.b16 %v5753, %v5752
      %v5778 = vpack.c.b16 %v5755, %v5754
      %v5779 = vpack.c.b16 %v5757, %v5756
      %v5780 = vpack.c.b16 %v5759, %v5758
      %v5781 = vpack.c.b16 %v5761, %v5760
      %v5782 = vpack.c.b16 %v5763, %v5762
      %v5783 = vpack.c.b16 %v5765, %v5764
      %v5784 = vpack.c.b16 %v5767, %v5766
      %v5785 = vpack.c.b16 %v5769, %v5768
      %5802 = vmatpush.bf16.msra.mxu0 %v5777
      %5803 = vmatpush.bf16.msra.mxu0 %v5776
      %5804 = vmatpush.bf16.msra.mxu0 %v5775
      %5805 = vmatpush.bf16.msra.mxu0 %v5774
      %5806 = vmatpush.bf16.msra.mxu0 %v5773
      %5807 = vmatpush.bf16.msra.mxu0 %v5772
      %5808 = vmatpush.bf16.msra.mxu0 %v5771
      %5809 = vmatpush.bf16.msra.mxu0 %v5770
      %5810 = vmatmul.bf16.gmra.mxu0 %v1969
      %v5811 = vpop.f32.mrf.mxu0
      %v5812 = vadd.f32 0.0, %v5811
      %v5813 = vpop.f32.mrf.mxu0
      %v5814 = vadd.f32 0.0, %v5813
      %5815 = vmatmul.bf16.gmra.mxu0 %v1970
      %v5816 = vpop.f32.mrf.mxu0
      %v5817 = vadd.f32 0.0, %v5816
      %v5818 = vpop.f32.mrf.mxu0
      %v5819 = vadd.f32 0.0, %v5818
      %5820 = vmatmul.bf16.gmra.mxu0 %v1971
      %v5821 = vpop.f32.mrf.mxu0
      %v5822 = vadd.f32 0.0, %v5821
      %v5823 = vpop.f32.mrf.mxu0
      %v5824 = vadd.f32 0.0, %v5823
      %5825 = vmatmul.bf16.gmra.mxu0 %v1972
      %v5826 = vpop.f32.mrf.mxu0
      %v5827 = vadd.f32 0.0, %v5826
      %v5828 = vpop.f32.mrf.mxu0
      %v5829 = vadd.f32 0.0, %v5828
      %5830 = vmatmul.bf16.gmra.mxu0 %v1973
      %v5831 = vpop.f32.mrf.mxu0
      %v5832 = vadd.f32 0.0, %v5831
      %v5833 = vpop.f32.mrf.mxu0
      %v5834 = vadd.f32 0.0, %v5833
      %5835 = vmatmul.bf16.gmra.mxu0 %v1974
      %v5836 = vpop.f32.mrf.mxu0
      %v5837 = vadd.f32 0.0, %v5836
      %v5838 = vpop.f32.mrf.mxu0
      %v5839 = vadd.f32 0.0, %v5838
      %5840 = vmatmul.bf16.gmra.mxu0 %v1975
      %v5841 = vpop.f32.mrf.mxu0
      %v5842 = vadd.f32 0.0, %v5841
      %v5843 = vpop.f32.mrf.mxu0
      %v5844 = vadd.f32 0.0, %v5843
      %5845 = vmatmul.bf16.gmra.mxu0 %v1976
      %v5846 = vpop.f32.mrf.mxu0
      %v5847 = vadd.f32 0.0, %v5846
      %v5848 = vpop.f32.mrf.mxu0
      %v5849 = vadd.f32 0.0, %v5848
      %5850 = vdwg.mxu0
      %5851 = vmatpush.bf16.msra.mxu0 %v5785
      %5852 = vmatpush.bf16.msra.mxu0 %v5784
      %5853 = vmatpush.bf16.msra.mxu0 %v5783
      %5854 = vmatpush.bf16.msra.mxu0 %v5782
      %5855 = vmatpush.bf16.msra.mxu0 %v5781
      %5856 = vmatpush.bf16.msra.mxu0 %v5780
      %5857 = vmatpush.bf16.msra.mxu0 %v5779
      %5858 = vmatpush.bf16.msra.mxu0 %v5778
      %5859 = vmatmul.bf16.gmra.mxu0 %v3442
      %v5860 = vpop.f32.mrf.mxu0
      %v5861 = vadd.f32 %v5812, %v5860
      %v5862 = vpop.f32.mrf.mxu0
      %v5863 = vadd.f32 %v5814, %v5862
      %5864 = vmatmul.bf16.gmra.mxu0 %v3443
      %v5865 = vpop.f32.mrf.mxu0
      %v5866 = vadd.f32 %v5817, %v5865
      %v5867 = vpop.f32.mrf.mxu0
      %v5868 = vadd.f32 %v5819, %v5867
      %5869 = vmatmul.bf16.gmra.mxu0 %v3444
      %v5870 = vpop.f32.mrf.mxu0
      %v5871 = vadd.f32 %v5822, %v5870
      %v5872 = vpop.f32.mrf.mxu0
      %v5873 = vadd.f32 %v5824, %v5872
      %5874 = vmatmul.bf16.gmra.mxu0 %v3445
      %v5875 = vpop.f32.mrf.mxu0
      %v5876 = vadd.f32 %v5827, %v5875
      %v5877 = vpop.f32.mrf.mxu0
      %v5878 = vadd.f32 %v5829, %v5877
      %5879 = vmatmul.bf16.gmra.mxu0 %v3446
      %v5880 = vpop.f32.mrf.mxu0
      %v5881 = vadd.f32 %v5832, %v5880
      %v5882 = vpop.f32.mrf.mxu0
      %v5883 = vadd.f32 %v5834, %v5882
      %5884 = vmatmul.bf16.gmra.mxu0 %v3447
      %v5885 = vpop.f32.mrf.mxu0
      %v5886 = vadd.f32 %v5837, %v5885
      %v5887 = vpop.f32.mrf.mxu0
      %v5888 = vadd.f32 %v5839, %v5887
      %5889 = vmatmul.bf16.gmra.mxu0 %v3448
      %v5890 = vpop.f32.mrf.mxu0
      %v5891 = vadd.f32 %v5842, %v5890
      %v5892 = vpop.f32.mrf.mxu0
      %v5893 = vadd.f32 %v5844, %v5892
      %5894 = vmatmul.bf16.gmra.mxu0 %v3449
      %v5895 = vpop.f32.mrf.mxu0
      %v5896 = vadd.f32 %v5847, %v5895
      %v5897 = vpop.f32.mrf.mxu0
      %v5898 = vadd.f32 %v5849, %v5897
      %5899 = vdwg.mxu0
      %v5900 = vadd.f32 %v5640, %v5861
      %v5901 = vadd.f32 %v5641, %v5863
      %v5902 = vadd.f32 %v5642, %v5866
      %v5903 = vadd.f32 %v5643, %v5868
      %v5904 = vadd.f32 %v5644, %v5871
      %v5905 = vadd.f32 %v5645, %v5873
      %v5906 = vadd.f32 %v5646, %v5876
      %v5907 = vadd.f32 %v5647, %v5878
      %v5908 = vadd.f32 %v5648, %v5881
      %v5909 = vadd.f32 %v5649, %v5883
      %v5910 = vadd.f32 %v5650, %v5886
      %v5911 = vadd.f32 %v5651, %v5888
      %v5912 = vadd.f32 %v5652, %v5891
      %v5913 = vadd.f32 %v5653, %v5893
      %v5914 = vadd.f32 %v5654, %v5896
      %v5915 = vadd.f32 %v5655, %v5898
      %5916 = vst [vmem:[#allocation3] sm:$0xff] %v5900
      %5917 = vst [vmem:[#allocation3 + $0x8] sm:$0xff] %v5901
      %5918 = vst [vmem:[#allocation3 + $0x10] sm:$0xff] %v5902
      %5919 = vst [vmem:[#allocation3 + $0x18] sm:$0xff] %v5903
      %5920 = vst [vmem:[#allocation3 + $0x20] sm:$0xff] %v5904
      %5921 = vst [vmem:[#allocation3 + $0x28] sm:$0xff] %v5905
      %5922 = vst [vmem:[#allocation3 + $0x30] sm:$0xff] %v5906
      %5923 = vst [vmem:[#allocation3 + $0x38] sm:$0xff] %v5907
      %5924 = vst [vmem:[#allocation3 + $0x40] sm:$0xff] %v5908
      %5925 = vst [vmem:[#allocation3 + $0x48] sm:$0xff] %v5909
      %5926 = vst [vmem:[#allocation3 + $0x50] sm:$0xff] %v5910
      %5927 = vst [vmem:[#allocation3 + $0x58] sm:$0xff] %v5911
      %5928 = vst [vmem:[#allocation3 + $0x60] sm:$0xff] %v5912
      %5929 = vst [vmem:[#allocation3 + $0x68] sm:$0xff] %v5913
      %5930 = vst [vmem:[#allocation3 + $0x70] sm:$0xff] %v5914
      %5931 = vst [vmem:[#allocation3 + $0x78] sm:$0xff] %v5915
      %p5932 = scmp.eq.s32.totalorder %s26, 1
      // Predicated region
      $region65: #{latent_guard_forward.1} parent=59 // pred_check
        %p5933 = pneg %p5932
      $region66: #{latent_guard_forward.1} parent=59 // pred_check_branch
        %5935 = sbr.rel (%p5933) target = $region68
      $region67: #{latent_guard_forward.1} parent=59 // pred_region
        %v5936 = vld [vmem:[#allocation2] sm:$0xff]
        %v5937 = vld [vmem:[#allocation2 + $0x8] sm:$0xff]
        %v5938 = vld [vmem:[#allocation2 + $0x10] sm:$0xff]
        %v5939 = vld [vmem:[#allocation2 + $0x18] sm:$0xff]
        %v5940 = vld [vmem:[#allocation2 + $0x20] sm:$0xff]
        %v5941 = vld [vmem:[#allocation2 + $0x28] sm:$0xff]
        %v5942 = vld [vmem:[#allocation2 + $0x30] sm:$0xff]
        %v5943 = vld [vmem:[#allocation2 + $0x38] sm:$0xff]
        %v5944 = vld [vmem:[#allocation2 + $0x40] sm:$0xff]
        %v5945 = vld [vmem:[#allocation2 + $0x48] sm:$0xff]
        %v5946 = vld [vmem:[#allocation2 + $0x50] sm:$0xff]
        %v5947 = vld [vmem:[#allocation2 + $0x58] sm:$0xff]
        %v5948 = vld [vmem:[#allocation2 + $0x60] sm:$0xff]
        %v5949 = vld [vmem:[#allocation2 + $0x68] sm:$0xff]
        %v5950 = vld [vmem:[#allocation2 + $0x70] sm:$0xff]
        %v5951 = vld [vmem:[#allocation2 + $0x78] sm:$0xff]
        %v5952 = vld [vmem:[#allocation3] sm:$0xff]
        %v5953 = vld [vmem:[#allocation3 + $0x8] sm:$0xff]
        %v5954 = vld [vmem:[#allocation3 + $0x10] sm:$0xff]
        %v5955 = vld [vmem:[#allocation3 + $0x18] sm:$0xff]
        %v5956 = vld [vmem:[#allocation3 + $0x20] sm:$0xff]
        %v5957 = vld [vmem:[#allocation3 + $0x28] sm:$0xff]
        %v5958 = vld [vmem:[#allocation3 + $0x30] sm:$0xff]
        %v5959 = vld [vmem:[#allocation3 + $0x38] sm:$0xff]
        %v5960 = vld [vmem:[#allocation3 + $0x40] sm:$0xff]
        %v5961 = vld [vmem:[#allocation3 + $0x48] sm:$0xff]
        %v5962 = vld [vmem:[#allocation3 + $0x50] sm:$0xff]
        %v5963 = vld [vmem:[#allocation3 + $0x58] sm:$0xff]
        %v5964 = vld [vmem:[#allocation3 + $0x60] sm:$0xff]
        %v5965 = vld [vmem:[#allocation3 + $0x68] sm:$0xff]
        %v5966 = vld [vmem:[#allocation3 + $0x70] sm:$0xff]
        %v5967 = vld [vmem:[#allocation3 + $0x78] sm:$0xff]
        %v5968 = vmul.f32 %v5936, %v5952
        %v5969 = vmul.f32 %v5937, %v5953
        %v5970 = vmul.f32 %v5938, %v5954
        %v5971 = vmul.f32 %v5939, %v5955
        %v5972 = vmul.f32 %v5940, %v5956
        %v5973 = vmul.f32 %v5941, %v5957
        %v5974 = vmul.f32 %v5942, %v5958
        %v5975 = vmul.f32 %v5943, %v5959
        %v5976 = vmul.f32 %v5944, %v5960
        %v5977 = vmul.f32 %v5945, %v5961
        %v5978 = vmul.f32 %v5946, %v5962
        %v5979 = vmul.f32 %v5947, %v5963
        %v5980 = vmul.f32 %v5948, %v5964
        %v5981 = vmul.f32 %v5949, %v5965
        %v5982 = vmul.f32 %v5950, %v5966
        %v5983 = vmul.f32 %v5951, %v5967
        %5984 = vadd.xlane.f32.xlu0 %v5968
        %v5985 = vpop.xlane.xlu0 %5984
        %5986 = vadd.xlane.f32.xlu0 %v5969
        %v5987 = vpop.xlane.xlu0 %5986
        %5988 = vadd.xlane.f32.xlu0 %v5970
        %v5989 = vpop.xlane.xlu0 %5988
        %5990 = vadd.xlane.f32.xlu0 %v5971
        %v5991 = vpop.xlane.xlu0 %5990
        %5992 = vadd.xlane.f32.xlu0 %v5972
        %v5993 = vpop.xlane.xlu0 %5992
        %5994 = vadd.xlane.f32.xlu0 %v5973
        %v5995 = vpop.xlane.xlu0 %5994
        %5996 = vadd.xlane.f32.xlu0 %v5974
        %v5997 = vpop.xlane.xlu0 %5996
        %5998 = vadd.xlane.f32.xlu0 %v5975
        %v5999 = vpop.xlane.xlu0 %5998
        %6000 = vadd.xlane.f32.xlu0 %v5976
        %v6001 = vpop.xlane.xlu0 %6000
        %6002 = vadd.xlane.f32.xlu0 %v5977
        %v6003 = vpop.xlane.xlu0 %6002
        %6004 = vadd.xlane.f32.xlu0 %v5978
        %v6005 = vpop.xlane.xlu0 %6004
        %6006 = vadd.xlane.f32.xlu0 %v5979
        %v6007 = vpop.xlane.xlu0 %6006
        %6008 = vadd.xlane.f32.xlu0 %v5980
        %v6009 = vpop.xlane.xlu0 %6008
        %6010 = vadd.xlane.f32.xlu0 %v5981
        %v6011 = vpop.xlane.xlu0 %6010
        %6012 = vadd.xlane.f32.xlu0 %v5982
        %v6013 = vpop.xlane.xlu0 %6012
        %6014 = vadd.xlane.f32.xlu0 %v5983
        %v6015 = vpop.xlane.xlu0 %6014
        %6016 = vxpose.xlu0.b32.start [1/16] %v5985, 128
        %6017 = vxpose.xlu0.b32.cont [2/16] %v5987, 128
        %6018 = vxpose.xlu0.b32.cont [3/16] %v5989, 128
        %6019 = vxpose.xlu0.b32.cont [4/16] %v5991, 128
        %6020 = vxpose.xlu0.b32.cont [5/16] %v5993, 128
        %6021 = vxpose.xlu0.b32.cont [6/16] %v5995, 128
        %6022 = vxpose.xlu0.b32.cont [7/16] %v5997, 128
        %6023 = vxpose.xlu0.b32.cont [8/16] %v5999, 128
        %6024 = vxpose.xlu0.b32.cont [9/16] %v6001, 128
        %6025 = vxpose.xlu0.b32.cont [10/16] %v6003, 128
        %6026 = vxpose.xlu0.b32.cont [11/16] %v6005, 128
        %6027 = vxpose.xlu0.b32.cont [12/16] %v6007, 128
        %6028 = vxpose.xlu0.b32.cont [13/16] %v6009, 128
        %6029 = vxpose.xlu0.b32.cont [14/16] %v6011, 128
        %6030 = vxpose.xlu0.b32.cont [15/16] %v6013, 128
        %6031 = vxpose.xlu0.b32.end [16/16] %v6015, 128
        %v6032 = vpop.trf.xlu0
        %v6033 = vpop.trf.xlu0
        %v6034 = vpop.trf.xlu0
        %v6035 = vpop.trf.xlu0
        %v6036 = vpop.trf.xlu0
        %v6037 = vpop.trf.xlu0
        %v6038 = vpop.trf.xlu0
        %v6039 = vpop.trf.xlu0
        %v6040 = vpop.trf.xlu0
        %v6041 = vpop.trf.xlu0
        %v6042 = vpop.trf.xlu0
        %v6043 = vpop.trf.xlu0
        %v6044 = vpop.trf.xlu0
        %v6045 = vpop.trf.xlu0
        %v6046 = vpop.trf.xlu0
        %v6047 = vpop.trf.xlu0
        %6048 = vst [vmem:[%s372] sm:$0x1] %v6032
      $region68: #{latent_guard_forward.1} parent=59 // pred_fallthru
        _
      %p6049 = scmp.lt.s32.totalorder %s25, 0
      %s6050 = scalar_select %p6049, %s25, 0
      %s6051 = scalar_lea.vmem %s10, %s6050
      // Predicated region
      $region69: #{latent_guard_forward.1} parent=59 // pred_check
        %p6052 = pneg %p266
      $region70: #{latent_guard_forward.1} parent=59 // pred_check_branch
        %6054 = sbr.rel (%p6052) target = $region72
      $region71: #{latent_guard_forward.1} parent=59 // pred_region
        _
      $region72: #{latent_guard_forward.1} parent=59 // pred_fallthru
        _
      // Predicated region
      $region73: #{latent_guard_forward.1} parent=59 // pred_check
        %p6055 = pneg %p266
      $region74: #{latent_guard_forward.1} parent=59 // pred_check_branch
        %6057 = sbr.rel (%p6055) target = $region76
      $region75: #{latent_guard_forward.1} parent=59 // pred_region
        %p6058 = scmp.lt.s32.totalorder %s25, 0
        %s6059 = scalar_select %p6058, %s25, 0
        %s6060 = scalar_lea.vmem %s10, %s6059
      $region76: #{latent_guard_forward.1} parent=59 // pred_fallthru
        _
    $region60: #{latent_guard_forward.1} parent=5 // pred_fallthru
      _
    %p6061 = scmp.le.s32.totalorder 2, %s16
    // Predicated region
    $region77: #{latent_guard_forward.1} parent=5 // pred_check
      %p6062 = pneg %p6061
    $region78: #{latent_guard_forward.1} parent=5 // pred_check_branch
      %6064 = sbr.rel (%p6062) target = $region80
    $region79: #{latent_guard_forward.1} parent=5 // pred_region
      %s6065 = ssub.s32 %s16, 2
    $region80: #{latent_guard_forward.1} parent=5 // pred_fallthru
      _
  $region6: #{latent_guard_forward.1} parent=0 // loop_footer
    %s20 = sadd.s32 1, %s16
  $region7: #{latent_guard_forward.1} parent=0 // loop_footer_branch
    %15 = sbr.rel target = $region3
  $region8: #{latent_guard_forward.1} parent=0 // loop_exit
    _

</llo_original>
